<compile_context>
chip_gen: v6e
topology: v6e:2x2x1
jax: 0.10.0
libtpu: 0.0.40
codegen_flags: <defaults>
</compile_context>

<pallas_src>
import jax
import jax.numpy as jnp
from jax import lax
from jax.experimental import pallas as pl
from jax.experimental.pallas import tpu as pltpu


def _fused_double_conv_kernel(
    x_c_ref, x_t_ref, x_b_ref,            # input row tile + top/bottom 8-row halo blocks
    w1_ref, s1_ref, b1_ref,               # conv1 bf16 weights + folded BN scale/shift (f32)
    w2_ref, s2_ref, b2_ref,               # conv2 bf16 weights + folded BN scale/shift (f32)
    o_ref,                                # (1, TH, W, CO_P) output tile
    xpad_ref, inter_ref, acc1_ref, acc2_ref,
):
    f32 = jnp.float32
    bf16 = jnp.bfloat16

    i = pl.program_id(1)                  # row-tile index
    n_row_tiles = pl.num_programs(1)

    TH = o_ref.shape[1]                   # output rows per tile
    W = o_ref.shape[2]
    CO_P = o_ref.shape[3]                 # lane-padded output channels
    CIN = xpad_ref.shape[2]               # true input channels
    R1 = TH + 2                           # intermediate rows computed (1-row halo each side)

    # ---- stage the input tile (image rows r0-2 .. r0+TH+1, 1-col zero halo) in VMEM ----
    xpad_ref[...] = jnp.zeros_like(xpad_ref)
    xpad_ref[2:TH + 2, 1:W + 1, :] = x_c_ref[0]

    @pl.when(i > 0)                       # top halo = last 2 rows of the previous 8-row block
    def _():
        xpad_ref[0:2, 1:W + 1, :] = x_t_ref[0, 6:8]

    @pl.when(i < n_row_tiles - 1)         # bottom halo = first 2 rows of the next 8-row block
    def _():
        xpad_ref[TH + 2:TH + 4, 1:W + 1, :] = x_b_ref[0, 0:2]

    # ---- conv1 (+ folded BN + ReLU): intermediate rows r0-1 .. r0+TH ----
    acc1_ref[...] = jnp.zeros_like(acc1_ref)
    for dy in range(3):
        for dx in range(3):
            patch = xpad_ref[dy:dy + R1, dx:dx + W, :]            # (R1, W, CIN)
            patch2d = patch.reshape(R1 * W, CIN).astype(bf16)
            acc1_ref[...] += jnp.dot(patch2d, w1_ref[dy * 3 + dx],
                                     preferred_element_type=f32)
    h = jnp.maximum(acc1_ref[...] * s1_ref[0, :] + b1_ref[0, :], 0.0)

    # stage the intermediate with a 1-px zero halo ('same' padding for conv2)
    inter_ref[...] = jnp.zeros_like(inter_ref)
    inter_ref[0:R1, 1:W + 1, :] = h.reshape(R1, W, CO_P)

    @pl.when(i == 0)                      # image row -1 is zero padding, not conv1-of-zeros
    def _():
        inter_ref[0:1, :, :] = jnp.zeros((1, W + 2, CO_P), f32)

    @pl.when(i == n_row_tiles - 1)        # image row H is zero padding
    def _():
        inter_ref[R1 - 1:R1, :, :] = jnp.zeros((1, W + 2, CO_P), f32)

    # ---- conv2 (+ folded BN + ReLU) ----
    acc2_ref[...] = jnp.zeros_like(acc2_ref)
    for dy in range(3):
        for dx in range(3):
            patch = inter_ref[dy:dy + TH, dx:dx + W, :]           # (TH, W, CO_P)
            patch2d = patch.reshape(TH * W, CO_P).astype(bf16)
            acc2_ref[...] += jnp.dot(patch2d, w2_ref[dy * 3 + dx],
                                     preferred_element_type=f32)
    y = jnp.maximum(acc2_ref[...] * s2_ref[0, :] + b2_ref[0, :], 0.0)
    o_ref[0, :, :, :] = y.reshape(TH, W, CO_P).astype(o_ref.dtype)


def _round_up(x, m):
    return (x + m - 1) // m * m


def fused_double_conv_nhwc(x_nhwc, p, block_h=None):
    """Fused DoubleConv.  x_nhwc: (N, H, W, Cin) f32 -> (N, H, W, Cout) f32."""
    N, H, W, Cin = x_nhwc.shape
    w1, w2 = p["w1"], p["w2"]
    Cout = w1.shape[-1]
    assert w1.shape == (3, 3, Cin, Cout) and w2.shape == (3, 3, Cout, Cout)

    # Row-halo blocks are fetched at 8-row granularity (f32 sublane tiling).
    # TODO(synk): generalize halo fetch to H that is not a multiple of 8.
    assert H % 8 == 0, "H must be a multiple of 8"

    if block_h is None:
        # Largest row tile <= 64 that divides H; keeps per-tile VMEM well under
        # the v7x 64 MiB budget even for wide UNet feature maps.
        block_h = H
        for cand in range(min(H, 64), 7, -8):
            if H % cand == 0:
                block_h = cand
                break
    assert block_h % 8 == 0 and H % block_h == 0, (block_h, H)
    th = block_h
    n_row_tiles = H // th
    hb = th // 8                          # row-tile size in 8-row blocks
    nb8 = H // 8                          # number of 8-row blocks in the image

    cin = Cin                             # conv1 K kept at true Cin (tiny)
    co_p = _round_up(Cout, 128)           # lane-dense intermediate/output channels

    bf16, f32 = jnp.bfloat16, jnp.float32
    # Pad / cast weights and folded-BN params once at trace time.
    w1p = jnp.zeros((9, cin, co_p), bf16).at[:, :, :Cout].set(
        w1.reshape(9, cin, Cout).astype(bf16))
    w2p = jnp.zeros((9, co_p, co_p), bf16).at[:, :Cout, :Cout].set(
        w2.reshape(9, Cout, Cout).astype(bf16))
    s1p = jnp.zeros((1, co_p), f32).at[0, :Cout].set(p["scale1"])
    b1p = jnp.zeros((1, co_p), f32).at[0, :Cout].set(p["bias1"])
    s2p = jnp.zeros((1, co_p), f32).at[0, :Cout].set(p["scale2"])
    b2p = jnp.zeros((1, co_p), f32).at[0, :Cout].set(p["bias2"])

    out = pl.pallas_call(
        _fused_double_conv_kernel,
        out_shape=jax.ShapeDtypeStruct((N, H, W, co_p), x_nhwc.dtype),
        grid=(N, n_row_tiles),
        in_specs=[
            # current row tile
            pl.BlockSpec((1, th, W, Cin), lambda n, i: (n, i, 0, 0)),
            # 8-row block containing the 2 top-halo rows (clamped; masked in-kernel)
            pl.BlockSpec((1, 8, W, Cin),
                         lambda n, i: (n, jnp.maximum(i * hb - 1, 0), 0, 0)),
            # 8-row block containing the 2 bottom-halo rows (clamped; masked in-kernel)
            pl.BlockSpec((1, 8, W, Cin),
                         lambda n, i: (n, jnp.minimum((i + 1) * hb, nb8 - 1), 0, 0)),
            pl.BlockSpec((9, cin, co_p), lambda n, i: (0, 0, 0)),
            pl.BlockSpec((1, co_p), lambda n, i: (0, 0)),
            pl.BlockSpec((1, co_p), lambda n, i: (0, 0)),
            pl.BlockSpec((9, co_p, co_p), lambda n, i: (0, 0, 0)),
            pl.BlockSpec((1, co_p), lambda n, i: (0, 0)),
            pl.BlockSpec((1, co_p), lambda n, i: (0, 0)),
        ],
        out_specs=pl.BlockSpec((1, th, W, co_p), lambda n, i: (n, i, 0, 0)),
        scratch_shapes=[
            pltpu.VMEM((th + 4, W + 2, cin), f32),        # zero-padded input tile
            pltpu.VMEM((th + 2, W + 2, co_p), f32),       # intermediate (+ zero halo)
            pltpu.VMEM(((th + 2) * W, co_p), f32),        # conv1 f32 accumulator
            pltpu.VMEM((th * W, co_p), f32),              # conv2 f32 accumulator
        ],
        compiler_params=pltpu.CompilerParams(
            dimension_semantics=("parallel", "parallel"),
            vmem_limit_bytes=48 * 1024 * 1024),           # room for larger row tiles
    )(x_nhwc, x_nhwc, x_nhwc, w1p, s1p, b1p, w2p, s2p, b2p)

    return out[..., :Cout]


def double_conv_forward(x_nchw, p, block_h=None):
    """Forward pass of conv_block. Input/output layout: NCHW (PyTorch convention)."""
    x = jnp.transpose(x_nchw, (0, 2, 3, 1))               # NCHW -> NHWC (lane = channels)
    y = fused_double_conv_nhwc(x, p, block_h=block_h)
    return jnp.transpose(y, (0, 3, 1, 2))                 # NHWC -> NCHW


def make_double_conv_params(key, in_channels, out_channels):
    """Deterministic synthetic parameters matching nn.Conv2d/nn.BatchNorm2d shapes."""
    ks = jax.random.split(key, 8)
    eps = 1e-5

    def conv_params(kw, kb, cin, cout):
        fan_in = cin * 9
        bound = 1.0 / jnp.sqrt(fan_in)
        w = jax.random.uniform(kw, (3, 3, cin, cout), jnp.float32, -bound, bound)
        b = jax.random.uniform(kb, (cout,), jnp.float32, -bound, bound)
        return w, b

    def bn_params(kg, kb, c):
        gamma = 1.0 + 0.1 * jax.random.normal(kg, (c,), jnp.float32)
        beta = 0.1 * jax.random.normal(kb, (c,), jnp.float32)
        return gamma, beta, jnp.zeros((c,), jnp.float32), jnp.ones((c,), jnp.float32)

    def fold(conv_b, gamma, beta, mean, var):
        scale = gamma / jnp.sqrt(var + eps)
        shift = (conv_b - mean) * scale + beta
        return scale, shift

    w1, b1 = conv_params(ks[0], ks[1], in_channels, out_channels)
    g1, be1, m1, v1 = bn_params(ks[2], ks[3], out_channels)
    s1, sh1 = fold(b1, g1, be1, m1, v1)

    w2, b2 = conv_params(ks[4], ks[5], out_channels, out_channels)
    g2, be2, m2, v2 = bn_params(ks[6], ks[7], out_channels)
    s2, sh2 = fold(b2, g2, be2, m2, v2)

    return dict(w1=w1, scale1=s1, bias1=sh1, w2=w2, scale2=s2, bias2=sh2)


def _reference(x_nchw, p):
    """Pure-JAX reference mirroring the kernel's precision policy
    (bf16 matmul operands, f32 accumulation, f32 BN/ReLU)."""
    bf16 = jnp.bfloat16

    def step(x, w, scale, bias):
        y = lax.conv_general_dilated(
            x.astype(bf16), w.astype(bf16),
            window_strides=(1, 1), padding="SAME",
            dimension_numbers=("NCHW", "HWIO", "NCHW"),
            preferred_element_type=jnp.float32)
        y = y * scale[None, :, None, None] + bias[None, :, None, None]
        return jnp.maximum(y, 0.0)

    y = step(x_nchw, p["w1"], p["scale1"], p["bias1"])
    y = step(y, p["w2"], p["scale2"], p["bias2"])
    return y


if __name__ == "__main__":
    key = jax.random.PRNGKey(0)
    kx, kp = jax.random.split(key)

    N, C_IN, C_OUT, H, W = 2, 4, 8, 16, 16
    x = jax.random.normal(kx, (N, C_IN, H, W), jnp.float32)
    params = make_double_conv_params(kp, C_IN, C_OUT)

    fwd = jax.jit(double_conv_forward, static_argnames=("block_h",))
    # block_h=8 -> 2 row tiles per image: exercises the halo-exchange path.
    out = fwd(x, params, block_h=8)
    out = jax.block_until_ready(out)

    ref = _reference(x, params)
    assert out.shape == (N, C_OUT, H, W), out.shape
    err = float(jnp.max(jnp.abs(out - ref)))
    # Tolerance loosened for bf16 matmul operands (f32 accumulation); the
    # reference applies the same operand casts.
    assert jnp.allclose(out, ref, rtol=2e-2, atol=2e-2), err

    print("KERNEL_OK")
</pallas_src>

<mosaic_0001>
module attributes {stable_mosaic.version = 11 : i64} {
  func.func @_fused_double_conv_kernel(%arg0: i32, %arg1: i32, %arg2: memref<1x8x16x4xf32, #tpu.memory_space<vmem>>, %arg3: memref<1x8x16x4xf32, #tpu.memory_space<vmem>>, %arg4: memref<1x8x16x4xf32, #tpu.memory_space<vmem>>, %arg5: memref<9x4x128xbf16, #tpu.memory_space<vmem>>, %arg6: memref<1x128xf32, #tpu.memory_space<vmem>>, %arg7: memref<1x128xf32, #tpu.memory_space<vmem>>, %arg8: memref<9x128x128xbf16, #tpu.memory_space<vmem>>, %arg9: memref<1x128xf32, #tpu.memory_space<vmem>>, %arg10: memref<1x128xf32, #tpu.memory_space<vmem>>, %arg11: memref<1x8x16x128xf32, #tpu.memory_space<vmem>>, %arg12: memref<12x18x4xf32, #tpu.memory_space<vmem>>, %arg13: memref<10x18x128xf32, #tpu.memory_space<vmem>>, %arg14: memref<160x128xf32, #tpu.memory_space<vmem>>, %arg15: memref<128x128xf32, #tpu.memory_space<vmem>>) attributes {dimension_semantics = [#tpu.dimension_semantics<parallel>, #tpu.dimension_semantics<parallel>], iteration_bounds = array<i64: 2, 2>, scalar_prefetch = 0 : i64, scratch_operands = 4 : i64, tpu.core_type = #tpu.core_type<tc>, window_params = [{transform_indices = @transform_0, window_bounds = array<i64: 1, 8, 16, 4>}, {transform_indices = @transform_1, window_bounds = array<i64: 1, 8, 16, 4>}, {transform_indices = @transform_2, window_bounds = array<i64: 1, 8, 16, 4>}, {pipeline_mode = #tpu.pipeline_mode<synchronous>, transform_indices = @transform_3, window_bounds = array<i64: 9, 4, 128>}, {pipeline_mode = #tpu.pipeline_mode<synchronous>, transform_indices = @transform_4, window_bounds = array<i64: 1, 128>}, {pipeline_mode = #tpu.pipeline_mode<synchronous>, transform_indices = @transform_5, window_bounds = array<i64: 1, 128>}, {pipeline_mode = #tpu.pipeline_mode<synchronous>, transform_indices = @transform_6, window_bounds = array<i64: 9, 128, 128>}, {pipeline_mode = #tpu.pipeline_mode<synchronous>, transform_indices = @transform_7, window_bounds = array<i64: 1, 128>}, {pipeline_mode = #tpu.pipeline_mode<synchronous>, transform_indices = @transform_8, window_bounds = array<i64: 1, 128>}, {transform_indices = @transform_9, window_bounds = array<i64: 1, 8, 16, 128>}]} {
    %cst = arith.constant 0.000000e+00 : f32
    %0 = vector.broadcast %cst : f32 to vector<12x18x4xf32>
    %c0 = arith.constant 0 : index
    %c0_0 = arith.constant 0 : index
    %c0_1 = arith.constant 0 : index
    %1 = vector.load %arg12[%c0, %c0_0, %c0_1] : memref<12x18x4xf32, #tpu.memory_space<vmem>>, vector<12x18x4xf32>
    tpu.vector_store %arg12[%c0, %c0_0, %c0_1], %0 {strides = array<i32>} : memref<12x18x4xf32, #tpu.memory_space<vmem>>, vector<12x18x4xf32>,
    %c0_2 = arith.constant 0 : index
    %c0_3 = arith.constant 0 : index
    %c0_4 = arith.constant 0 : index
    %c0_5 = arith.constant 0 : index
    %2 = vector.load %arg2[%c0_2, %c0_3, %c0_4, %c0_5] : memref<1x8x16x4xf32, #tpu.memory_space<vmem>>, vector<1x8x16x4xf32>
    %3 = vector.shape_cast %2 : vector<1x8x16x4xf32> to vector<8x16x4xf32>
    %c2 = arith.constant 2 : index
    %c1 = arith.constant 1 : index
    %c0_6 = arith.constant 0 : index
    %4 = vector.load %arg12[%c2, %c1, %c0_6] : memref<12x18x4xf32, #tpu.memory_space<vmem>>, vector<8x16x4xf32>
    tpu.vector_store %arg12[%c2, %c1, %c0_6], %3 {strides = array<i32>} : memref<12x18x4xf32, #tpu.memory_space<vmem>>, vector<8x16x4xf32>,
    %c0_i32 = arith.constant 0 : i32
    %5 = arith.cmpi sgt, %arg1, %c0_i32 : i32
    %6 = arith.extui %5 : i1 to i32
    %c0_i32_7 = arith.constant 0 : i32
    %7 = arith.cmpi ne, %6, %c0_i32_7 : i32
    scf.if %7 {
      %c0_236 = arith.constant 0 : index
      %c6_237 = arith.constant 6 : index
      %c0_238 = arith.constant 0 : index
      %c0_239 = arith.constant 0 : index
      %217 = vector.load %arg3[%c0_236, %c6_237, %c0_238, %c0_239] : memref<1x8x16x4xf32, #tpu.memory_space<vmem>>, vector<1x2x16x4xf32>
      %218 = vector.shape_cast %217 : vector<1x2x16x4xf32> to vector<2x16x4xf32>
      %c0_240 = arith.constant 0 : index
      %c1_241 = arith.constant 1 : index
      %c0_242 = arith.constant 0 : index
      %219 = vector.load %arg12[%c0_240, %c1_241, %c0_242] : memref<12x18x4xf32, #tpu.memory_space<vmem>>, vector<2x16x4xf32>
      tpu.vector_store %arg12[%c0_240, %c1_241, %c0_242], %218 {strides = array<i32>} : memref<12x18x4xf32, #tpu.memory_space<vmem>>, vector<2x16x4xf32>,
    } else {
    }
    %c1_i32 = arith.constant 1 : i32
    %8 = arith.cmpi slt, %arg1, %c1_i32 : i32
    %9 = arith.extui %8 : i1 to i32
    %c0_i32_8 = arith.constant 0 : i32
    %10 = arith.cmpi ne, %9, %c0_i32_8 : i32
    scf.if %10 {
      %c0_236 = arith.constant 0 : index
      %c0_237 = arith.constant 0 : index
      %c0_238 = arith.constant 0 : index
      %c0_239 = arith.constant 0 : index
      %217 = vector.load %arg4[%c0_236, %c0_237, %c0_238, %c0_239] : memref<1x8x16x4xf32, #tpu.memory_space<vmem>>, vector<1x2x16x4xf32>
      %218 = vector.shape_cast %217 : vector<1x2x16x4xf32> to vector<2x16x4xf32>
      %c10 = arith.constant 10 : index
      %c1_240 = arith.constant 1 : index
      %c0_241 = arith.constant 0 : index
      %219 = vector.load %arg12[%c10, %c1_240, %c0_241] : memref<12x18x4xf32, #tpu.memory_space<vmem>>, vector<2x16x4xf32>
      tpu.vector_store %arg12[%c10, %c1_240, %c0_241], %218 {strides = array<i32>} : memref<12x18x4xf32, #tpu.memory_space<vmem>>, vector<2x16x4xf32>,
    } else {
    }
    %cst_9 = arith.constant 0.000000e+00 : f32
    %11 = vector.broadcast %cst_9 : f32 to vector<160x128xf32>
    %c0_10 = arith.constant 0 : index
    %c0_11 = arith.constant 0 : index
    %12 = vector.load %arg14[%c0_10, %c0_11] : memref<160x128xf32, #tpu.memory_space<vmem>>, vector<160x128xf32>
    tpu.vector_store %arg14[%c0_10, %c0_11], %11 {strides = array<i32>} : memref<160x128xf32, #tpu.memory_space<vmem>>, vector<160x128xf32>,
    %c0_12 = arith.constant 0 : index
    %c0_13 = arith.constant 0 : index
    %c0_14 = arith.constant 0 : index
    %13 = vector.load %arg12[%c0_12, %c0_13, %c0_14] : memref<12x18x4xf32, #tpu.memory_space<vmem>>, vector<10x16x4xf32>
    %14 = vector.shape_cast %13 : vector<10x16x4xf32> to vector<160x4xf32>
    %15 = arith.truncf %14 : vector<160x4xf32> to vector<160x4xbf16>
    %c0_15 = arith.constant 0 : index
    %c0_16 = arith.constant 0 : index
    %16 = vector.load %arg14[%c0_15, %c0_16] : memref<160x128xf32, #tpu.memory_space<vmem>>, vector<160x128xf32>
    %c0_17 = arith.constant 0 : index
    %c0_18 = arith.constant 0 : index
    %c0_19 = arith.constant 0 : index
    %17 = vector.load %arg5[%c0_17, %c0_18, %c0_19] : memref<9x4x128xbf16, #tpu.memory_space<vmem>>, vector<1x4x128xbf16>
    %18 = vector.shape_cast %17 : vector<1x4x128xbf16> to vector<4x128xbf16>
    %cst_20 = arith.constant dense<0.000000e+00> : vector<160x128xf32>
    %19 = tpu.matmul %15, %18, %cst_20 {dimension_numbers = #tpu.dot_dimension_numbers<[1], [0], [0], [1], [0, 0, 1, 1], [], []>} : vector<160x4xbf16>, vector<4x128xbf16>, vector<160x128xf32> -> vector<160x128xf32>
    %20 = arith.addf %16, %19 : vector<160x128xf32>
    %c0_21 = arith.constant 0 : index
    %c0_22 = arith.constant 0 : index
    %21 = vector.load %arg14[%c0_21, %c0_22] : memref<160x128xf32, #tpu.memory_space<vmem>>, vector<160x128xf32>
    tpu.vector_store %arg14[%c0_21, %c0_22], %20 {strides = array<i32>} : memref<160x128xf32, #tpu.memory_space<vmem>>, vector<160x128xf32>,
    %c0_23 = arith.constant 0 : index
    %c1_24 = arith.constant 1 : index
    %c0_25 = arith.constant 0 : index
    %22 = vector.load %arg12[%c0_23, %c1_24, %c0_25] : memref<12x18x4xf32, #tpu.memory_space<vmem>>, vector<10x16x4xf32>
    %23 = vector.shape_cast %22 : vector<10x16x4xf32> to vector<160x4xf32>
    %24 = arith.truncf %23 : vector<160x4xf32> to vector<160x4xbf16>
    %c0_26 = arith.constant 0 : index
    %c0_27 = arith.constant 0 : index
    %25 = vector.load %arg14[%c0_26, %c0_27] : memref<160x128xf32, #tpu.memory_space<vmem>>, vector<160x128xf32>
    %c1_28 = arith.constant 1 : index
    %c0_29 = arith.constant 0 : index
    %c0_30 = arith.constant 0 : index
    %26 = vector.load %arg5[%c1_28, %c0_29, %c0_30] : memref<9x4x128xbf16, #tpu.memory_space<vmem>>, vector<1x4x128xbf16>
    %27 = vector.shape_cast %26 : vector<1x4x128xbf16> to vector<4x128xbf16>
    %cst_31 = arith.constant dense<0.000000e+00> : vector<160x128xf32>
    %28 = tpu.matmul %24, %27, %cst_31 {dimension_numbers = #tpu.dot_dimension_numbers<[1], [0], [0], [1], [0, 0, 1, 1], [], []>} : vector<160x4xbf16>, vector<4x128xbf16>, vector<160x128xf32> -> vector<160x128xf32>
    %29 = arith.addf %25, %28 : vector<160x128xf32>
    %c0_32 = arith.constant 0 : index
    %c0_33 = arith.constant 0 : index
    %30 = vector.load %arg14[%c0_32, %c0_33] : memref<160x128xf32, #tpu.memory_space<vmem>>, vector<160x128xf32>
    tpu.vector_store %arg14[%c0_32, %c0_33], %29 {strides = array<i32>} : memref<160x128xf32, #tpu.memory_space<vmem>>, vector<160x128xf32>,
    %c0_34 = arith.constant 0 : index
    %c2_35 = arith.constant 2 : index
    %c0_36 = arith.constant 0 : index
    %31 = vector.load %arg12[%c0_34, %c2_35, %c0_36] : memref<12x18x4xf32, #tpu.memory_space<vmem>>, vector<10x16x4xf32>
    %32 = vector.shape_cast %31 : vector<10x16x4xf32> to vector<160x4xf32>
    %33 = arith.truncf %32 : vector<160x4xf32> to vector<160x4xbf16>
    %c0_37 = arith.constant 0 : index
    %c0_38 = arith.constant 0 : index
    %34 = vector.load %arg14[%c0_37, %c0_38] : memref<160x128xf32, #tpu.memory_space<vmem>>, vector<160x128xf32>
    %c2_39 = arith.constant 2 : index
    %c0_40 = arith.constant 0 : index
    %c0_41 = arith.constant 0 : index
    %35 = vector.load %arg5[%c2_39, %c0_40, %c0_41] : memref<9x4x128xbf16, #tpu.memory_space<vmem>>, vector<1x4x128xbf16>
    %36 = vector.shape_cast %35 : vector<1x4x128xbf16> to vector<4x128xbf16>
    %cst_42 = arith.constant dense<0.000000e+00> : vector<160x128xf32>
    %37 = tpu.matmul %33, %36, %cst_42 {dimension_numbers = #tpu.dot_dimension_numbers<[1], [0], [0], [1], [0, 0, 1, 1], [], []>} : vector<160x4xbf16>, vector<4x128xbf16>, vector<160x128xf32> -> vector<160x128xf32>
    %38 = arith.addf %34, %37 : vector<160x128xf32>
    %c0_43 = arith.constant 0 : index
    %c0_44 = arith.constant 0 : index
    %39 = vector.load %arg14[%c0_43, %c0_44] : memref<160x128xf32, #tpu.memory_space<vmem>>, vector<160x128xf32>
    tpu.vector_store %arg14[%c0_43, %c0_44], %38 {strides = array<i32>} : memref<160x128xf32, #tpu.memory_space<vmem>>, vector<160x128xf32>,
    %c1_45 = arith.constant 1 : index
    %c0_46 = arith.constant 0 : index
    %c0_47 = arith.constant 0 : index
    %40 = vector.load %arg12[%c1_45, %c0_46, %c0_47] : memref<12x18x4xf32, #tpu.memory_space<vmem>>, vector<10x16x4xf32>
    %41 = vector.shape_cast %40 : vector<10x16x4xf32> to vector<160x4xf32>
    %42 = arith.truncf %41 : vector<160x4xf32> to vector<160x4xbf16>
    %c0_48 = arith.constant 0 : index
    %c0_49 = arith.constant 0 : index
    %43 = vector.load %arg14[%c0_48, %c0_49] : memref<160x128xf32, #tpu.memory_space<vmem>>, vector<160x128xf32>
    %c3 = arith.constant 3 : index
    %c0_50 = arith.constant 0 : index
    %c0_51 = arith.constant 0 : index
    %44 = vector.load %arg5[%c3, %c0_50, %c0_51] : memref<9x4x128xbf16, #tpu.memory_space<vmem>>, vector<1x4x128xbf16>
    %45 = vector.shape_cast %44 : vector<1x4x128xbf16> to vector<4x128xbf16>
    %cst_52 = arith.constant dense<0.000000e+00> : vector<160x128xf32>
    %46 = tpu.matmul %42, %45, %cst_52 {dimension_numbers = #tpu.dot_dimension_numbers<[1], [0], [0], [1], [0, 0, 1, 1], [], []>} : vector<160x4xbf16>, vector<4x128xbf16>, vector<160x128xf32> -> vector<160x128xf32>
    %47 = arith.addf %43, %46 : vector<160x128xf32>
    %c0_53 = arith.constant 0 : index
    %c0_54 = arith.constant 0 : index
    %48 = vector.load %arg14[%c0_53, %c0_54] : memref<160x128xf32, #tpu.memory_space<vmem>>, vector<160x128xf32>
    tpu.vector_store %arg14[%c0_53, %c0_54], %47 {strides = array<i32>} : memref<160x128xf32, #tpu.memory_space<vmem>>, vector<160x128xf32>,
    %c1_55 = arith.constant 1 : index
    %c1_56 = arith.constant 1 : index
    %c0_57 = arith.constant 0 : index
    %49 = vector.load %arg12[%c1_55, %c1_56, %c0_57] : memref<12x18x4xf32, #tpu.memory_space<vmem>>, vector<10x16x4xf32>
    %50 = vector.shape_cast %49 : vector<10x16x4xf32> to vector<160x4xf32>
    %51 = arith.truncf %50 : vector<160x4xf32> to vector<160x4xbf16>
    %c0_58 = arith.constant 0 : index
    %c0_59 = arith.constant 0 : index
    %52 = vector.load %arg14[%c0_58, %c0_59] : memref<160x128xf32, #tpu.memory_space<vmem>>, vector<160x128xf32>
    %c4 = arith.constant 4 : index
    %c0_60 = arith.constant 0 : index
    %c0_61 = arith.constant 0 : index
    %53 = vector.load %arg5[%c4, %c0_60, %c0_61] : memref<9x4x128xbf16, #tpu.memory_space<vmem>>, vector<1x4x128xbf16>
    %54 = vector.shape_cast %53 : vector<1x4x128xbf16> to vector<4x128xbf16>
    %cst_62 = arith.constant dense<0.000000e+00> : vector<160x128xf32>
    %55 = tpu.matmul %51, %54, %cst_62 {dimension_numbers = #tpu.dot_dimension_numbers<[1], [0], [0], [1], [0, 0, 1, 1], [], []>} : vector<160x4xbf16>, vector<4x128xbf16>, vector<160x128xf32> -> vector<160x128xf32>
    %56 = arith.addf %52, %55 : vector<160x128xf32>
    %c0_63 = arith.constant 0 : index
    %c0_64 = arith.constant 0 : index
    %57 = vector.load %arg14[%c0_63, %c0_64] : memref<160x128xf32, #tpu.memory_space<vmem>>, vector<160x128xf32>
    tpu.vector_store %arg14[%c0_63, %c0_64], %56 {strides = array<i32>} : memref<160x128xf32, #tpu.memory_space<vmem>>, vector<160x128xf32>,
    %c1_65 = arith.constant 1 : index
    %c2_66 = arith.constant 2 : index
    %c0_67 = arith.constant 0 : index
    %58 = vector.load %arg12[%c1_65, %c2_66, %c0_67] : memref<12x18x4xf32, #tpu.memory_space<vmem>>, vector<10x16x4xf32>
    %59 = vector.shape_cast %58 : vector<10x16x4xf32> to vector<160x4xf32>
    %60 = arith.truncf %59 : vector<160x4xf32> to vector<160x4xbf16>
    %c0_68 = arith.constant 0 : index
    %c0_69 = arith.constant 0 : index
    %61 = vector.load %arg14[%c0_68, %c0_69] : memref<160x128xf32, #tpu.memory_space<vmem>>, vector<160x128xf32>
    %c5 = arith.constant 5 : index
    %c0_70 = arith.constant 0 : index
    %c0_71 = arith.constant 0 : index
    %62 = vector.load %arg5[%c5, %c0_70, %c0_71] : memref<9x4x128xbf16, #tpu.memory_space<vmem>>, vector<1x4x128xbf16>
    %63 = vector.shape_cast %62 : vector<1x4x128xbf16> to vector<4x128xbf16>
    %cst_72 = arith.constant dense<0.000000e+00> : vector<160x128xf32>
    %64 = tpu.matmul %60, %63, %cst_72 {dimension_numbers = #tpu.dot_dimension_numbers<[1], [0], [0], [1], [0, 0, 1, 1], [], []>} : vector<160x4xbf16>, vector<4x128xbf16>, vector<160x128xf32> -> vector<160x128xf32>
    %65 = arith.addf %61, %64 : vector<160x128xf32>
    %c0_73 = arith.constant 0 : index
    %c0_74 = arith.constant 0 : index
    %66 = vector.load %arg14[%c0_73, %c0_74] : memref<160x128xf32, #tpu.memory_space<vmem>>, vector<160x128xf32>
    tpu.vector_store %arg14[%c0_73, %c0_74], %65 {strides = array<i32>} : memref<160x128xf32, #tpu.memory_space<vmem>>, vector<160x128xf32>,
    %c2_75 = arith.constant 2 : index
    %c0_76 = arith.constant 0 : index
    %c0_77 = arith.constant 0 : index
    %67 = vector.load %arg12[%c2_75, %c0_76, %c0_77] : memref<12x18x4xf32, #tpu.memory_space<vmem>>, vector<10x16x4xf32>
    %68 = vector.shape_cast %67 : vector<10x16x4xf32> to vector<160x4xf32>
    %69 = arith.truncf %68 : vector<160x4xf32> to vector<160x4xbf16>
    %c0_78 = arith.constant 0 : index
    %c0_79 = arith.constant 0 : index
    %70 = vector.load %arg14[%c0_78, %c0_79] : memref<160x128xf32, #tpu.memory_space<vmem>>, vector<160x128xf32>
    %c6 = arith.constant 6 : index
    %c0_80 = arith.constant 0 : index
    %c0_81 = arith.constant 0 : index
    %71 = vector.load %arg5[%c6, %c0_80, %c0_81] : memref<9x4x128xbf16, #tpu.memory_space<vmem>>, vector<1x4x128xbf16>
    %72 = vector.shape_cast %71 : vector<1x4x128xbf16> to vector<4x128xbf16>
    %cst_82 = arith.constant dense<0.000000e+00> : vector<160x128xf32>
    %73 = tpu.matmul %69, %72, %cst_82 {dimension_numbers = #tpu.dot_dimension_numbers<[1], [0], [0], [1], [0, 0, 1, 1], [], []>} : vector<160x4xbf16>, vector<4x128xbf16>, vector<160x128xf32> -> vector<160x128xf32>
    %74 = arith.addf %70, %73 : vector<160x128xf32>
    %c0_83 = arith.constant 0 : index
    %c0_84 = arith.constant 0 : index
    %75 = vector.load %arg14[%c0_83, %c0_84] : memref<160x128xf32, #tpu.memory_space<vmem>>, vector<160x128xf32>
    tpu.vector_store %arg14[%c0_83, %c0_84], %74 {strides = array<i32>} : memref<160x128xf32, #tpu.memory_space<vmem>>, vector<160x128xf32>,
    %c2_85 = arith.constant 2 : index
    %c1_86 = arith.constant 1 : index
    %c0_87 = arith.constant 0 : index
    %76 = vector.load %arg12[%c2_85, %c1_86, %c0_87] : memref<12x18x4xf32, #tpu.memory_space<vmem>>, vector<10x16x4xf32>
    %77 = vector.shape_cast %76 : vector<10x16x4xf32> to vector<160x4xf32>
    %78 = arith.truncf %77 : vector<160x4xf32> to vector<160x4xbf16>
    %c0_88 = arith.constant 0 : index
    %c0_89 = arith.constant 0 : index
    %79 = vector.load %arg14[%c0_88, %c0_89] : memref<160x128xf32, #tpu.memory_space<vmem>>, vector<160x128xf32>
    %c7 = arith.constant 7 : index
    %c0_90 = arith.constant 0 : index
    %c0_91 = arith.constant 0 : index
    %80 = vector.load %arg5[%c7, %c0_90, %c0_91] : memref<9x4x128xbf16, #tpu.memory_space<vmem>>, vector<1x4x128xbf16>
    %81 = vector.shape_cast %80 : vector<1x4x128xbf16> to vector<4x128xbf16>
    %cst_92 = arith.constant dense<0.000000e+00> : vector<160x128xf32>
    %82 = tpu.matmul %78, %81, %cst_92 {dimension_numbers = #tpu.dot_dimension_numbers<[1], [0], [0], [1], [0, 0, 1, 1], [], []>} : vector<160x4xbf16>, vector<4x128xbf16>, vector<160x128xf32> -> vector<160x128xf32>
    %83 = arith.addf %79, %82 : vector<160x128xf32>
    %c0_93 = arith.constant 0 : index
    %c0_94 = arith.constant 0 : index
    %84 = vector.load %arg14[%c0_93, %c0_94] : memref<160x128xf32, #tpu.memory_space<vmem>>, vector<160x128xf32>
    tpu.vector_store %arg14[%c0_93, %c0_94], %83 {strides = array<i32>} : memref<160x128xf32, #tpu.memory_space<vmem>>, vector<160x128xf32>,
    %c2_95 = arith.constant 2 : index
    %c2_96 = arith.constant 2 : index
    %c0_97 = arith.constant 0 : index
    %85 = vector.load %arg12[%c2_95, %c2_96, %c0_97] : memref<12x18x4xf32, #tpu.memory_space<vmem>>, vector<10x16x4xf32>
    %86 = vector.shape_cast %85 : vector<10x16x4xf32> to vector<160x4xf32>
    %87 = arith.truncf %86 : vector<160x4xf32> to vector<160x4xbf16>
    %c0_98 = arith.constant 0 : index
    %c0_99 = arith.constant 0 : index
    %88 = vector.load %arg14[%c0_98, %c0_99] : memref<160x128xf32, #tpu.memory_space<vmem>>, vector<160x128xf32>
    %c8 = arith.constant 8 : index
    %c0_100 = arith.constant 0 : index
    %c0_101 = arith.constant 0 : index
    %89 = vector.load %arg5[%c8, %c0_100, %c0_101] : memref<9x4x128xbf16, #tpu.memory_space<vmem>>, vector<1x4x128xbf16>
    %90 = vector.shape_cast %89 : vector<1x4x128xbf16> to vector<4x128xbf16>
    %cst_102 = arith.constant dense<0.000000e+00> : vector<160x128xf32>
    %91 = tpu.matmul %87, %90, %cst_102 {dimension_numbers = #tpu.dot_dimension_numbers<[1], [0], [0], [1], [0, 0, 1, 1], [], []>} : vector<160x4xbf16>, vector<4x128xbf16>, vector<160x128xf32> -> vector<160x128xf32>
    %92 = arith.addf %88, %91 : vector<160x128xf32>
    %c0_103 = arith.constant 0 : index
    %c0_104 = arith.constant 0 : index
    %93 = vector.load %arg14[%c0_103, %c0_104] : memref<160x128xf32, #tpu.memory_space<vmem>>, vector<160x128xf32>
    tpu.vector_store %arg14[%c0_103, %c0_104], %92 {strides = array<i32>} : memref<160x128xf32, #tpu.memory_space<vmem>>, vector<160x128xf32>,
    %c0_105 = arith.constant 0 : index
    %c0_106 = arith.constant 0 : index
    %94 = vector.load %arg14[%c0_105, %c0_106] : memref<160x128xf32, #tpu.memory_space<vmem>>, vector<160x128xf32>
    %c0_107 = arith.constant 0 : index
    %c0_108 = arith.constant 0 : index
    %95 = vector.load %arg6[%c0_107, %c0_108] : memref<1x128xf32, #tpu.memory_space<vmem>>, vector<1x128xf32>
    %96 = vector.shape_cast %95 : vector<1x128xf32> to vector<128xf32>
    %97 = vector.shape_cast %96 : vector<128xf32> to vector<1x128xf32>
    %98 = vector.broadcast %97 : vector<1x128xf32> to vector<160x128xf32>
    %99 = arith.mulf %94, %98 : vector<160x128xf32>
    %c0_109 = arith.constant 0 : index
    %c0_110 = arith.constant 0 : index
    %100 = vector.load %arg7[%c0_109, %c0_110] : memref<1x128xf32, #tpu.memory_space<vmem>>, vector<1x128xf32>
    %101 = vector.shape_cast %100 : vector<1x128xf32> to vector<128xf32>
    %102 = vector.shape_cast %101 : vector<128xf32> to vector<1x128xf32>
    %103 = vector.broadcast %102 : vector<1x128xf32> to vector<160x128xf32>
    %104 = arith.addf %99, %103 : vector<160x128xf32>
    %cst_111 = arith.constant 0.000000e+00 : f32
    %105 = vector.broadcast %cst_111 : f32 to vector<160x128xf32>
    %106 = arith.maximumf %104, %105 : vector<160x128xf32>
    %cst_112 = arith.constant 0.000000e+00 : f32
    %107 = vector.broadcast %cst_112 : f32 to vector<10x18x128xf32>
    %c0_113 = arith.constant 0 : index
    %c0_114 = arith.constant 0 : index
    %c0_115 = arith.constant 0 : index
    %108 = vector.load %arg13[%c0_113, %c0_114, %c0_115] : memref<10x18x128xf32, #tpu.memory_space<vmem>>, vector<10x18x128xf32>
    tpu.vector_store %arg13[%c0_113, %c0_114, %c0_115], %107 {strides = array<i32>} : memref<10x18x128xf32, #tpu.memory_space<vmem>>, vector<10x18x128xf32>,
    %109 = vector.shape_cast %106 : vector<160x128xf32> to vector<10x16x128xf32>
    %c0_116 = arith.constant 0 : index
    %c1_117 = arith.constant 1 : index
    %c0_118 = arith.constant 0 : index
    %110 = vector.load %arg13[%c0_116, %c1_117, %c0_118] : memref<10x18x128xf32, #tpu.memory_space<vmem>>, vector<10x16x128xf32>
    tpu.vector_store %arg13[%c0_116, %c1_117, %c0_118], %109 {strides = array<i32>} : memref<10x18x128xf32, #tpu.memory_space<vmem>>, vector<10x16x128xf32>,
    %c0_i32_119 = arith.constant 0 : i32
    %111 = arith.cmpi eq, %arg1, %c0_i32_119 : i32
    %112 = arith.extui %111 : i1 to i32
    %c0_i32_120 = arith.constant 0 : i32
    %113 = arith.cmpi ne, %112, %c0_i32_120 : i32
    scf.if %113 {
      %cst_236 = arith.constant 0.000000e+00 : f32
      %217 = vector.broadcast %cst_236 : f32 to vector<1x18x128xf32>
      %c0_237 = arith.constant 0 : index
      %c0_238 = arith.constant 0 : index
      %c0_239 = arith.constant 0 : index
      %218 = vector.load %arg13[%c0_237, %c0_238, %c0_239] : memref<10x18x128xf32, #tpu.memory_space<vmem>>, vector<1x18x128xf32>
      tpu.vector_store %arg13[%c0_237, %c0_238, %c0_239], %217 {strides = array<i32>} : memref<10x18x128xf32, #tpu.memory_space<vmem>>, vector<1x18x128xf32>,
    } else {
    }
    %c1_i32_121 = arith.constant 1 : i32
    %114 = arith.cmpi eq, %arg1, %c1_i32_121 : i32
    %115 = arith.extui %114 : i1 to i32
    %c0_i32_122 = arith.constant 0 : i32
    %116 = arith.cmpi ne, %115, %c0_i32_122 : i32
    scf.if %116 {
      %cst_236 = arith.constant 0.000000e+00 : f32
      %217 = vector.broadcast %cst_236 : f32 to vector<1x18x128xf32>
      %c9 = arith.constant 9 : index
      %c0_237 = arith.constant 0 : index
      %c0_238 = arith.constant 0 : index
      %218 = vector.load %arg13[%c9, %c0_237, %c0_238] : memref<10x18x128xf32, #tpu.memory_space<vmem>>, vector<1x18x128xf32>
      tpu.vector_store %arg13[%c9, %c0_237, %c0_238], %217 {strides = array<i32>} : memref<10x18x128xf32, #tpu.memory_space<vmem>>, vector<1x18x128xf32>,
    } else {
    }
    %cst_123 = arith.constant 0.000000e+00 : f32
    %117 = vector.broadcast %cst_123 : f32 to vector<128x128xf32>
    %c0_124 = arith.constant 0 : index
    %c0_125 = arith.constant 0 : index
    %118 = vector.load %arg15[%c0_124, %c0_125] : memref<128x128xf32, #tpu.memory_space<vmem>>, vector<128x128xf32>
    tpu.vector_store %arg15[%c0_124, %c0_125], %117 {strides = array<i32>} : memref<128x128xf32, #tpu.memory_space<vmem>>, vector<128x128xf32>,
    %c0_126 = arith.constant 0 : index
    %c0_127 = arith.constant 0 : index
    %c0_128 = arith.constant 0 : index
    %119 = vector.load %arg13[%c0_126, %c0_127, %c0_128] : memref<10x18x128xf32, #tpu.memory_space<vmem>>, vector<8x16x128xf32>
    %120 = vector.shape_cast %119 : vector<8x16x128xf32> to vector<128x128xf32>
    %121 = arith.truncf %120 : vector<128x128xf32> to vector<128x128xbf16>
    %c0_129 = arith.constant 0 : index
    %c0_130 = arith.constant 0 : index
    %122 = vector.load %arg15[%c0_129, %c0_130] : memref<128x128xf32, #tpu.memory_space<vmem>>, vector<128x128xf32>
    %c0_131 = arith.constant 0 : index
    %c0_132 = arith.constant 0 : index
    %c0_133 = arith.constant 0 : index
    %123 = vector.load %arg8[%c0_131, %c0_132, %c0_133] : memref<9x128x128xbf16, #tpu.memory_space<vmem>>, vector<1x128x128xbf16>
    %124 = vector.shape_cast %123 : vector<1x128x128xbf16> to vector<128x128xbf16>
    %cst_134 = arith.constant dense<0.000000e+00> : vector<128x128xf32>
    %125 = tpu.matmul %121, %124, %cst_134 {dimension_numbers = #tpu.dot_dimension_numbers<[1], [0], [0], [1], [0, 0, 1, 1], [], []>} : vector<128x128xbf16>, vector<128x128xbf16>, vector<128x128xf32> -> vector<128x128xf32>
    %126 = arith.addf %122, %125 : vector<128x128xf32>
    %c0_135 = arith.constant 0 : index
    %c0_136 = arith.constant 0 : index
    %127 = vector.load %arg15[%c0_135, %c0_136] : memref<128x128xf32, #tpu.memory_space<vmem>>, vector<128x128xf32>
    tpu.vector_store %arg15[%c0_135, %c0_136], %126 {strides = array<i32>} : memref<128x128xf32, #tpu.memory_space<vmem>>, vector<128x128xf32>,
    %c0_137 = arith.constant 0 : index
    %c1_138 = arith.constant 1 : index
    %c0_139 = arith.constant 0 : index
    %128 = vector.load %arg13[%c0_137, %c1_138, %c0_139] : memref<10x18x128xf32, #tpu.memory_space<vmem>>, vector<8x16x128xf32>
    %129 = vector.shape_cast %128 : vector<8x16x128xf32> to vector<128x128xf32>
    %130 = arith.truncf %129 : vector<128x128xf32> to vector<128x128xbf16>
    %c0_140 = arith.constant 0 : index
    %c0_141 = arith.constant 0 : index
    %131 = vector.load %arg15[%c0_140, %c0_141] : memref<128x128xf32, #tpu.memory_space<vmem>>, vector<128x128xf32>
    %c1_142 = arith.constant 1 : index
    %c0_143 = arith.constant 0 : index
    %c0_144 = arith.constant 0 : index
    %132 = vector.load %arg8[%c1_142, %c0_143, %c0_144] : memref<9x128x128xbf16, #tpu.memory_space<vmem>>, vector<1x128x128xbf16>
    %133 = vector.shape_cast %132 : vector<1x128x128xbf16> to vector<128x128xbf16>
    %cst_145 = arith.constant dense<0.000000e+00> : vector<128x128xf32>
    %134 = tpu.matmul %130, %133, %cst_145 {dimension_numbers = #tpu.dot_dimension_numbers<[1], [0], [0], [1], [0, 0, 1, 1], [], []>} : vector<128x128xbf16>, vector<128x128xbf16>, vector<128x128xf32> -> vector<128x128xf32>
    %135 = arith.addf %131, %134 : vector<128x128xf32>
    %c0_146 = arith.constant 0 : index
    %c0_147 = arith.constant 0 : index
    %136 = vector.load %arg15[%c0_146, %c0_147] : memref<128x128xf32, #tpu.memory_space<vmem>>, vector<128x128xf32>
    tpu.vector_store %arg15[%c0_146, %c0_147], %135 {strides = array<i32>} : memref<128x128xf32, #tpu.memory_space<vmem>>, vector<128x128xf32>,
    %c0_148 = arith.constant 0 : index
    %c2_149 = arith.constant 2 : index
    %c0_150 = arith.constant 0 : index
    %137 = vector.load %arg13[%c0_148, %c2_149, %c0_150] : memref<10x18x128xf32, #tpu.memory_space<vmem>>, vector<8x16x128xf32>
    %138 = vector.shape_cast %137 : vector<8x16x128xf32> to vector<128x128xf32>
    %139 = arith.truncf %138 : vector<128x128xf32> to vector<128x128xbf16>
    %c0_151 = arith.constant 0 : index
    %c0_152 = arith.constant 0 : index
    %140 = vector.load %arg15[%c0_151, %c0_152] : memref<128x128xf32, #tpu.memory_space<vmem>>, vector<128x128xf32>
    %c2_153 = arith.constant 2 : index
    %c0_154 = arith.constant 0 : index
    %c0_155 = arith.constant 0 : index
    %141 = vector.load %arg8[%c2_153, %c0_154, %c0_155] : memref<9x128x128xbf16, #tpu.memory_space<vmem>>, vector<1x128x128xbf16>
    %142 = vector.shape_cast %141 : vector<1x128x128xbf16> to vector<128x128xbf16>
    %cst_156 = arith.constant dense<0.000000e+00> : vector<128x128xf32>
    %143 = tpu.matmul %139, %142, %cst_156 {dimension_numbers = #tpu.dot_dimension_numbers<[1], [0], [0], [1], [0, 0, 1, 1], [], []>} : vector<128x128xbf16>, vector<128x128xbf16>, vector<128x128xf32> -> vector<128x128xf32>
    %144 = arith.addf %140, %143 : vector<128x128xf32>
    %c0_157 = arith.constant 0 : index
    %c0_158 = arith.constant 0 : index
    %145 = vector.load %arg15[%c0_157, %c0_158] : memref<128x128xf32, #tpu.memory_space<vmem>>, vector<128x128xf32>
    tpu.vector_store %arg15[%c0_157, %c0_158], %144 {strides = array<i32>} : memref<128x128xf32, #tpu.memory_space<vmem>>, vector<128x128xf32>,
    %c1_159 = arith.constant 1 : index
    %c0_160 = arith.constant 0 : index
    %c0_161 = arith.constant 0 : index
    %146 = vector.load %arg13[%c1_159, %c0_160, %c0_161] : memref<10x18x128xf32, #tpu.memory_space<vmem>>, vector<8x16x128xf32>
    %147 = vector.shape_cast %146 : vector<8x16x128xf32> to vector<128x128xf32>
    %148 = arith.truncf %147 : vector<128x128xf32> to vector<128x128xbf16>
    %c0_162 = arith.constant 0 : index
    %c0_163 = arith.constant 0 : index
    %149 = vector.load %arg15[%c0_162, %c0_163] : memref<128x128xf32, #tpu.memory_space<vmem>>, vector<128x128xf32>
    %c3_164 = arith.constant 3 : index
    %c0_165 = arith.constant 0 : index
    %c0_166 = arith.constant 0 : index
    %150 = vector.load %arg8[%c3_164, %c0_165, %c0_166] : memref<9x128x128xbf16, #tpu.memory_space<vmem>>, vector<1x128x128xbf16>
    %151 = vector.shape_cast %150 : vector<1x128x128xbf16> to vector<128x128xbf16>
    %cst_167 = arith.constant dense<0.000000e+00> : vector<128x128xf32>
    %152 = tpu.matmul %148, %151, %cst_167 {dimension_numbers = #tpu.dot_dimension_numbers<[1], [0], [0], [1], [0, 0, 1, 1], [], []>} : vector<128x128xbf16>, vector<128x128xbf16>, vector<128x128xf32> -> vector<128x128xf32>
    %153 = arith.addf %149, %152 : vector<128x128xf32>
    %c0_168 = arith.constant 0 : index
    %c0_169 = arith.constant 0 : index
    %154 = vector.load %arg15[%c0_168, %c0_169] : memref<128x128xf32, #tpu.memory_space<vmem>>, vector<128x128xf32>
    tpu.vector_store %arg15[%c0_168, %c0_169], %153 {strides = array<i32>} : memref<128x128xf32, #tpu.memory_space<vmem>>, vector<128x128xf32>,
    %c1_170 = arith.constant 1 : index
    %c1_171 = arith.constant 1 : index
    %c0_172 = arith.constant 0 : index
    %155 = vector.load %arg13[%c1_170, %c1_171, %c0_172] : memref<10x18x128xf32, #tpu.memory_space<vmem>>, vector<8x16x128xf32>
    %156 = vector.shape_cast %155 : vector<8x16x128xf32> to vector<128x128xf32>
    %157 = arith.truncf %156 : vector<128x128xf32> to vector<128x128xbf16>
    %c0_173 = arith.constant 0 : index
    %c0_174 = arith.constant 0 : index
    %158 = vector.load %arg15[%c0_173, %c0_174] : memref<128x128xf32, #tpu.memory_space<vmem>>, vector<128x128xf32>
    %c4_175 = arith.constant 4 : index
    %c0_176 = arith.constant 0 : index
    %c0_177 = arith.constant 0 : index
    %159 = vector.load %arg8[%c4_175, %c0_176, %c0_177] : memref<9x128x128xbf16, #tpu.memory_space<vmem>>, vector<1x128x128xbf16>
    %160 = vector.shape_cast %159 : vector<1x128x128xbf16> to vector<128x128xbf16>
    %cst_178 = arith.constant dense<0.000000e+00> : vector<128x128xf32>
    %161 = tpu.matmul %157, %160, %cst_178 {dimension_numbers = #tpu.dot_dimension_numbers<[1], [0], [0], [1], [0, 0, 1, 1], [], []>} : vector<128x128xbf16>, vector<128x128xbf16>, vector<128x128xf32> -> vector<128x128xf32>
    %162 = arith.addf %158, %161 : vector<128x128xf32>
    %c0_179 = arith.constant 0 : index
    %c0_180 = arith.constant 0 : index
    %163 = vector.load %arg15[%c0_179, %c0_180] : memref<128x128xf32, #tpu.memory_space<vmem>>, vector<128x128xf32>
    tpu.vector_store %arg15[%c0_179, %c0_180], %162 {strides = array<i32>} : memref<128x128xf32, #tpu.memory_space<vmem>>, vector<128x128xf32>,
    %c1_181 = arith.constant 1 : index
    %c2_182 = arith.constant 2 : index
    %c0_183 = arith.constant 0 : index
    %164 = vector.load %arg13[%c1_181, %c2_182, %c0_183] : memref<10x18x128xf32, #tpu.memory_space<vmem>>, vector<8x16x128xf32>
    %165 = vector.shape_cast %164 : vector<8x16x128xf32> to vector<128x128xf32>
    %166 = arith.truncf %165 : vector<128x128xf32> to vector<128x128xbf16>
    %c0_184 = arith.constant 0 : index
    %c0_185 = arith.constant 0 : index
    %167 = vector.load %arg15[%c0_184, %c0_185] : memref<128x128xf32, #tpu.memory_space<vmem>>, vector<128x128xf32>
    %c5_186 = arith.constant 5 : index
    %c0_187 = arith.constant 0 : index
    %c0_188 = arith.constant 0 : index
    %168 = vector.load %arg8[%c5_186, %c0_187, %c0_188] : memref<9x128x128xbf16, #tpu.memory_space<vmem>>, vector<1x128x128xbf16>
    %169 = vector.shape_cast %168 : vector<1x128x128xbf16> to vector<128x128xbf16>
    %cst_189 = arith.constant dense<0.000000e+00> : vector<128x128xf32>
    %170 = tpu.matmul %166, %169, %cst_189 {dimension_numbers = #tpu.dot_dimension_numbers<[1], [0], [0], [1], [0, 0, 1, 1], [], []>} : vector<128x128xbf16>, vector<128x128xbf16>, vector<128x128xf32> -> vector<128x128xf32>
    %171 = arith.addf %167, %170 : vector<128x128xf32>
    %c0_190 = arith.constant 0 : index
    %c0_191 = arith.constant 0 : index
    %172 = vector.load %arg15[%c0_190, %c0_191] : memref<128x128xf32, #tpu.memory_space<vmem>>, vector<128x128xf32>
    tpu.vector_store %arg15[%c0_190, %c0_191], %171 {strides = array<i32>} : memref<128x128xf32, #tpu.memory_space<vmem>>, vector<128x128xf32>,
    %c2_192 = arith.constant 2 : index
    %c0_193 = arith.constant 0 : index
    %c0_194 = arith.constant 0 : index
    %173 = vector.load %arg13[%c2_192, %c0_193, %c0_194] : memref<10x18x128xf32, #tpu.memory_space<vmem>>, vector<8x16x128xf32>
    %174 = vector.shape_cast %173 : vector<8x16x128xf32> to vector<128x128xf32>
    %175 = arith.truncf %174 : vector<128x128xf32> to vector<128x128xbf16>
    %c0_195 = arith.constant 0 : index
    %c0_196 = arith.constant 0 : index
    %176 = vector.load %arg15[%c0_195, %c0_196] : memref<128x128xf32, #tpu.memory_space<vmem>>, vector<128x128xf32>
    %c6_197 = arith.constant 6 : index
    %c0_198 = arith.constant 0 : index
    %c0_199 = arith.constant 0 : index
    %177 = vector.load %arg8[%c6_197, %c0_198, %c0_199] : memref<9x128x128xbf16, #tpu.memory_space<vmem>>, vector<1x128x128xbf16>
    %178 = vector.shape_cast %177 : vector<1x128x128xbf16> to vector<128x128xbf16>
    %cst_200 = arith.constant dense<0.000000e+00> : vector<128x128xf32>
    %179 = tpu.matmul %175, %178, %cst_200 {dimension_numbers = #tpu.dot_dimension_numbers<[1], [0], [0], [1], [0, 0, 1, 1], [], []>} : vector<128x128xbf16>, vector<128x128xbf16>, vector<128x128xf32> -> vector<128x128xf32>
    %180 = arith.addf %176, %179 : vector<128x128xf32>
    %c0_201 = arith.constant 0 : index
    %c0_202 = arith.constant 0 : index
    %181 = vector.load %arg15[%c0_201, %c0_202] : memref<128x128xf32, #tpu.memory_space<vmem>>, vector<128x128xf32>
    tpu.vector_store %arg15[%c0_201, %c0_202], %180 {strides = array<i32>} : memref<128x128xf32, #tpu.memory_space<vmem>>, vector<128x128xf32>,
    %c2_203 = arith.constant 2 : index
    %c1_204 = arith.constant 1 : index
    %c0_205 = arith.constant 0 : index
    %182 = vector.load %arg13[%c2_203, %c1_204, %c0_205] : memref<10x18x128xf32, #tpu.memory_space<vmem>>, vector<8x16x128xf32>
    %183 = vector.shape_cast %182 : vector<8x16x128xf32> to vector<128x128xf32>
    %184 = arith.truncf %183 : vector<128x128xf32> to vector<128x128xbf16>
    %c0_206 = arith.constant 0 : index
    %c0_207 = arith.constant 0 : index
    %185 = vector.load %arg15[%c0_206, %c0_207] : memref<128x128xf32, #tpu.memory_space<vmem>>, vector<128x128xf32>
    %c7_208 = arith.constant 7 : index
    %c0_209 = arith.constant 0 : index
    %c0_210 = arith.constant 0 : index
    %186 = vector.load %arg8[%c7_208, %c0_209, %c0_210] : memref<9x128x128xbf16, #tpu.memory_space<vmem>>, vector<1x128x128xbf16>
    %187 = vector.shape_cast %186 : vector<1x128x128xbf16> to vector<128x128xbf16>
    %cst_211 = arith.constant dense<0.000000e+00> : vector<128x128xf32>
    %188 = tpu.matmul %184, %187, %cst_211 {dimension_numbers = #tpu.dot_dimension_numbers<[1], [0], [0], [1], [0, 0, 1, 1], [], []>} : vector<128x128xbf16>, vector<128x128xbf16>, vector<128x128xf32> -> vector<128x128xf32>
    %189 = arith.addf %185, %188 : vector<128x128xf32>
    %c0_212 = arith.constant 0 : index
    %c0_213 = arith.constant 0 : index
    %190 = vector.load %arg15[%c0_212, %c0_213] : memref<128x128xf32, #tpu.memory_space<vmem>>, vector<128x128xf32>
    tpu.vector_store %arg15[%c0_212, %c0_213], %189 {strides = array<i32>} : memref<128x128xf32, #tpu.memory_space<vmem>>, vector<128x128xf32>,
    %c2_214 = arith.constant 2 : index
    %c2_215 = arith.constant 2 : index
    %c0_216 = arith.constant 0 : index
    %191 = vector.load %arg13[%c2_214, %c2_215, %c0_216] : memref<10x18x128xf32, #tpu.memory_space<vmem>>, vector<8x16x128xf32>
    %192 = vector.shape_cast %191 : vector<8x16x128xf32> to vector<128x128xf32>
    %193 = arith.truncf %192 : vector<128x128xf32> to vector<128x128xbf16>
    %c0_217 = arith.constant 0 : index
    %c0_218 = arith.constant 0 : index
    %194 = vector.load %arg15[%c0_217, %c0_218] : memref<128x128xf32, #tpu.memory_space<vmem>>, vector<128x128xf32>
    %c8_219 = arith.constant 8 : index
    %c0_220 = arith.constant 0 : index
    %c0_221 = arith.constant 0 : index
    %195 = vector.load %arg8[%c8_219, %c0_220, %c0_221] : memref<9x128x128xbf16, #tpu.memory_space<vmem>>, vector<1x128x128xbf16>
    %196 = vector.shape_cast %195 : vector<1x128x128xbf16> to vector<128x128xbf16>
    %cst_222 = arith.constant dense<0.000000e+00> : vector<128x128xf32>
    %197 = tpu.matmul %193, %196, %cst_222 {dimension_numbers = #tpu.dot_dimension_numbers<[1], [0], [0], [1], [0, 0, 1, 1], [], []>} : vector<128x128xbf16>, vector<128x128xbf16>, vector<128x128xf32> -> vector<128x128xf32>
    %198 = arith.addf %194, %197 : vector<128x128xf32>
    %c0_223 = arith.constant 0 : index
    %c0_224 = arith.constant 0 : index
    %199 = vector.load %arg15[%c0_223, %c0_224] : memref<128x128xf32, #tpu.memory_space<vmem>>, vector<128x128xf32>
    tpu.vector_store %arg15[%c0_223, %c0_224], %198 {strides = array<i32>} : memref<128x128xf32, #tpu.memory_space<vmem>>, vector<128x128xf32>,
    %c0_225 = arith.constant 0 : index
    %c0_226 = arith.constant 0 : index
    %200 = vector.load %arg15[%c0_225, %c0_226] : memref<128x128xf32, #tpu.memory_space<vmem>>, vector<128x128xf32>
    %c0_227 = arith.constant 0 : index
    %c0_228 = arith.constant 0 : index
    %201 = vector.load %arg9[%c0_227, %c0_228] : memref<1x128xf32, #tpu.memory_space<vmem>>, vector<1x128xf32>
    %202 = vector.shape_cast %201 : vector<1x128xf32> to vector<128xf32>
    %203 = vector.shape_cast %202 : vector<128xf32> to vector<1x128xf32>
    %204 = vector.broadcast %203 : vector<1x128xf32> to vector<128x128xf32>
    %205 = arith.mulf %200, %204 : vector<128x128xf32>
    %c0_229 = arith.constant 0 : index
    %c0_230 = arith.constant 0 : index
    %206 = vector.load %arg10[%c0_229, %c0_230] : memref<1x128xf32, #tpu.memory_space<vmem>>, vector<1x128xf32>
    %207 = vector.shape_cast %206 : vector<1x128xf32> to vector<128xf32>
    %208 = vector.shape_cast %207 : vector<128xf32> to vector<1x128xf32>
    %209 = vector.broadcast %208 : vector<1x128xf32> to vector<128x128xf32>
    %210 = arith.addf %205, %209 : vector<128x128xf32>
    %cst_231 = arith.constant 0.000000e+00 : f32
    %211 = vector.broadcast %cst_231 : f32 to vector<128x128xf32>
    %212 = arith.maximumf %210, %211 : vector<128x128xf32>
    %213 = vector.shape_cast %212 : vector<128x128xf32> to vector<8x16x128xf32>
    %c0_232 = arith.constant 0 : index
    %c0_233 = arith.constant 0 : index
    %c0_234 = arith.constant 0 : index
    %c0_235 = arith.constant 0 : index
    %214 = vector.load %arg11[%c0_232, %c0_233, %c0_234, %c0_235] : memref<1x8x16x128xf32, #tpu.memory_space<vmem>>, vector<1x8x16x128xf32>
    %215 = vector.shape_cast %214 : vector<1x8x16x128xf32> to vector<8x16x128xf32>
    %216 = vector.shape_cast %213 : vector<8x16x128xf32> to vector<1x8x16x128xf32>
    tpu.vector_store %arg11[%c0_232, %c0_233, %c0_234, %c0_235], %216 {strides = array<i32>} : memref<1x8x16x128xf32, #tpu.memory_space<vmem>>, vector<1x8x16x128xf32>,
    return
  }
  func.func @transform_0(%arg0: i32, %arg1: i32) -> (i32, i32, i32, i32) {
    %c0_i32 = arith.constant 0 : i32
    %c0_i32_0 = arith.constant 0 : i32
    %c0_i32_1 = arith.constant 0 : i32
    return %arg0, %arg1, %c0_i32, %c0_i32_0 : i32, i32, i32, i32
  }
  func.func @transform_1(%arg0: i32, %arg1: i32) -> (i32, i32, i32, i32) {
    %c1_i32 = arith.constant 1 : i32
    %0 = arith.muli %arg1, %c1_i32 : i32
    %c1_i32_0 = arith.constant 1 : i32
    %1 = arith.subi %0, %c1_i32_0 : i32
    %c0_i32 = arith.constant 0 : i32
    %2 = arith.maxsi %1, %c0_i32 : i32
    %c0_i32_1 = arith.constant 0 : i32
    %c0_i32_2 = arith.constant 0 : i32
    %c0_i32_3 = arith.constant 0 : i32
    return %arg0, %2, %c0_i32_1, %c0_i32_2 : i32, i32, i32, i32
  }
  func.func @transform_2(%arg0: i32, %arg1: i32) -> (i32, i32, i32, i32) {
    %c1_i32 = arith.constant 1 : i32
    %0 = arith.addi %arg1, %c1_i32 : i32
    %c1_i32_0 = arith.constant 1 : i32
    %1 = arith.muli %0, %c1_i32_0 : i32
    %c1_i32_1 = arith.constant 1 : i32
    %2 = arith.minsi %1, %c1_i32_1 : i32
    %c0_i32 = arith.constant 0 : i32
    %c0_i32_2 = arith.constant 0 : i32
    %c0_i32_3 = arith.constant 0 : i32
    return %arg0, %2, %c0_i32, %c0_i32_2 : i32, i32, i32, i32
  }
  func.func @transform_3(%arg0: i32, %arg1: i32) -> (i32, i32, i32) {
    %c0_i32 = arith.constant 0 : i32
    %c0_i32_0 = arith.constant 0 : i32
    %c0_i32_1 = arith.constant 0 : i32
    %c0_i32_2 = arith.constant 0 : i32
    return %c0_i32, %c0_i32_0, %c0_i32_1 : i32, i32, i32
  }
  func.func @transform_4(%arg0: i32, %arg1: i32) -> (i32, i32) {
    %c0_i32 = arith.constant 0 : i32
    %c0_i32_0 = arith.constant 0 : i32
    %c0_i32_1 = arith.constant 0 : i32
    return %c0_i32, %c0_i32_0 : i32, i32
  }
  func.func @transform_5(%arg0: i32, %arg1: i32) -> (i32, i32) {
    %c0_i32 = arith.constant 0 : i32
    %c0_i32_0 = arith.constant 0 : i32
    %c0_i32_1 = arith.constant 0 : i32
    return %c0_i32, %c0_i32_0 : i32, i32
  }
  func.func @transform_6(%arg0: i32, %arg1: i32) -> (i32, i32, i32) {
    %c0_i32 = arith.constant 0 : i32
    %c0_i32_0 = arith.constant 0 : i32
    %c0_i32_1 = arith.constant 0 : i32
    %c0_i32_2 = arith.constant 0 : i32
    return %c0_i32, %c0_i32_0, %c0_i32_1 : i32, i32, i32
  }
  func.func @transform_7(%arg0: i32, %arg1: i32) -> (i32, i32) {
    %c0_i32 = arith.constant 0 : i32
    %c0_i32_0 = arith.constant 0 : i32
    %c0_i32_1 = arith.constant 0 : i32
    return %c0_i32, %c0_i32_0 : i32, i32
  }
  func.func @transform_8(%arg0: i32, %arg1: i32) -> (i32, i32) {
    %c0_i32 = arith.constant 0 : i32
    %c0_i32_0 = arith.constant 0 : i32
    %c0_i32_1 = arith.constant 0 : i32
    return %c0_i32, %c0_i32_0 : i32, i32
  }
  func.func @transform_9(%arg0: i32, %arg1: i32) -> (i32, i32, i32, i32) {
    %c0_i32 = arith.constant 0 : i32
    %c0_i32_0 = arith.constant 0 : i32
    %c0_i32_1 = arith.constant 0 : i32
    return %arg0, %arg1, %c0_i32, %c0_i32_0 : i32, i32, i32, i32
  }
}

</mosaic_0001>

<llo_original>
// kernel: double_conv_forward.1
$region0: #{double_conv_forward.1}
  #allocation0 [shape = 'u32[]', space=smem, size = 0x4, offset = 0x4, fixed_abs, tag = 'smem constant byte address 0x4 - core index']
  #allocation1 [shape = 'u32[144,128]{1,0:T(1,128)}', space=vmem, size = 0x12000, scoped, tag = 'internal scratch']
  #allocation2 [shape = 'f32[12,18,4]{2,1,0:T(8,128)}', space=vmem, size = 0x24000, scoped, tag = 'scratch operand']
  #allocation3 [shape = 'f32[10,18,128]{2,1,0:T(8,128)}', space=vmem, size = 0x1e000, scoped, tag = 'scratch operand']
  #allocation4 [shape = 'f32[160,128]{1,0:T(8,128)}', space=vmem, size = 0x14000, scoped, tag = 'scratch operand']
  #allocation5 [shape = 'f32[128,128]{1,0:T(8,128)}', space=vmem, size = 0x10000, scoped, tag = 'scratch operand']
  %s0 = inlined_call_operand.vmem [shape: f32[2,16,16,4], index: 0, kind: input, shape index: {}, may-alias: {0,1,2}]
  %s1 = inlined_call_operand.vmem [shape: f32[2,16,16,4], index: 1, kind: input, shape index: {}, may-alias: {0,1,2}]
  %s2 = inlined_call_operand.vmem [shape: f32[2,16,16,4], index: 2, kind: input, shape index: {}, may-alias: {0,1,2}]
  %s3 = inlined_call_operand.vmem [shape: bf16[9,4,128], index: 3, kind: input, shape index: {}]
  %s4 = inlined_call_operand.vmem [shape: f32[1,128], index: 4, kind: input, shape index: {}]
  %s5 = inlined_call_operand.vmem [shape: f32[1,128], index: 5, kind: input, shape index: {}]
  %s6 = inlined_call_operand.vmem [shape: bf16[9,128,128], index: 6, kind: input, shape index: {}]
  %s7 = inlined_call_operand.vmem [shape: f32[1,128], index: 7, kind: input, shape index: {}]
  %s8 = inlined_call_operand.vmem [shape: f32[1,128], index: 8, kind: input, shape index: {}]
  %s9 = inlined_call_operand.vmem [shape: f32[2,16,16,128], index: 9, kind: output, shape index: {}]
  %s10 = sld [smem:[#allocation0]]
  $region85: #{double_conv_forward.1} parent=0
    _
  %s12 = ssub.s32 1, %s10
  %s13 = scalar_select 0, %s12, %s10
  loop: start=0, step=1, limit=6
  $region2: #{double_conv_forward.1} parent=0 // loop_pre_header
    _
  $region3: #{double_conv_forward.1} parent=0 // loop_header
    %s15 = sphi 0, %s19
    %p16 = scmp.ge.s32.totalorder %s15, 6
    %s22 = sphi 0, %s34
    %s23 = sphi 0, %s30
    %s24 = sphi 0, %s22
    %s25 = sphi 0, %s23
    %s26 = sphi 0, %s24
    %s27 = sphi 0, %s25
    %s39 = sphi 0, %s41
    %s42 = sphi 0, %s39
    %s43 = sphi 0, %s42
    %s59 = sphi 0, %s43
    %s73 = sphi 0, %s75
    %s76 = sphi 0, %s73
    %s77 = sphi 0, %s76
    %s93 = sphi 0, %s77
    %s107 = sphi 0, %s109
    %s110 = sphi 0, %s107
    %s111 = sphi 0, %s110
    %s127 = sphi 0, %s111
    %s131 = sphi 0, %s131
    %s133 = sphi 0, %s131
    %s134 = sphi 0, %s133
    %s148 = sphi 0, %s134
    %s152 = sphi 0, %s152
    %s154 = sphi 0, %s152
    %s155 = sphi 0, %s154
    %s169 = sphi 0, %s155
    %s173 = sphi 0, %s173
    %s175 = sphi 0, %s173
    %s176 = sphi 0, %s175
    %s190 = sphi 0, %s176
    %s194 = sphi 0, %s194
    %s196 = sphi 0, %s194
    %s197 = sphi 0, %s196
    %s211 = sphi 0, %s197
    %s215 = sphi 0, %s215
    %s217 = sphi 0, %s215
    %s218 = sphi 0, %s217
    %s232 = sphi 0, %s218
    %s236 = sphi 0, %s236
    %s238 = sphi 0, %s236
    %s239 = sphi 0, %s238
    %s253 = sphi 0, %s239
    %s261 = sphi 0, %s263
    %s264 = sphi 0, %s261
    %s265 = sphi 0, %s264
    %s281 = sphi 0, %s265
  $region4: #{double_conv_forward.1} parent=0 // loop_header_branch
    %18 = sbr.rel (%p16) target = $region8
  $region5: #{double_conv_forward.1} parent=0 // loop_body
    %s20 = ssub.s32 %s15, 1
    %s21 = ssub.s32 %s15, 2
    %s28 = sadd.s32 1, %s23
    %p29 = scmp.ge.s32.totalorder %s28, 2
    %s30 = scalar_select %p29, 0, %s28
    %s31 = sadd.s32 1, %s22
    %s32 = scalar_select %p29, %s31, %s22
    %p33 = scmp.ge.s32.totalorder %s32, 2
    %s34 = scalar_select %p33, 0, %s32
    %s35 = ssub.s32 %s22, %s34
    %s36 = ssub.s32 %s23, %s30
    %s37 = sor.u32 %s35, %s36
    %p38 = scmp.eq.s32.totalorder %s37, 0
    %s40 = sadd.s32 %s39, 1
    %s41 = scalar_select %p38, %s39, %s40
    %p44 = pneg %p38
    %p45 = scmp.eq.s32.totalorder %s15, 3
    %p46 = por %p44, %p45
    %p47 = scmp.ne.s32.totalorder %s39, %s42
    %p48 = scmp.eq.s32.totalorder %s15, 0
    %p49 = por %p47, %p48
    %p50 = scmp.ne.s32.totalorder %s39, %s42
    %p51 = scmp.eq.s32.totalorder %s20, 3
    %p52 = por %p50, %p51
    %p53 = scmp.ne.s32.totalorder %s42, %s43
    %p54 = scmp.eq.s32.totalorder %s20, 0
    %p55 = por %p53, %p54
    %p56 = scmp.ne.s32.totalorder %s42, %s43
    %p57 = scmp.eq.s32.totalorder %s21, 3
    %p58 = por %p56, %p57
    %p60 = scmp.ne.s32.totalorder %s43, %s59
    %p61 = scmp.eq.s32.totalorder %s21, 0
    %p62 = por %p60, %p61
    %s63 = ssub.s32 %s23, 1
    %p64 = scmp.gt.s32.totalorder %s63, 0
    %s65 = scalar_select %p64, %s63, 0
    %s66 = ssub.s32 %s30, 1
    %p67 = scmp.gt.s32.totalorder %s66, 0
    %s68 = scalar_select %p67, %s66, 0
    %s69 = ssub.s32 %s22, %s34
    %s70 = ssub.s32 %s65, %s68
    %s71 = sor.u32 %s69, %s70
    %p72 = scmp.eq.s32.totalorder %s71, 0
    %s74 = sadd.s32 %s73, 1
    %s75 = scalar_select %p72, %s73, %s74
    %p78 = pneg %p72
    %p79 = scmp.eq.s32.totalorder %s15, 3
    %p80 = por %p78, %p79
    %p81 = scmp.ne.s32.totalorder %s73, %s76
    %p82 = scmp.eq.s32.totalorder %s15, 0
    %p83 = por %p81, %p82
    %p84 = scmp.ne.s32.totalorder %s73, %s76
    %p85 = scmp.eq.s32.totalorder %s20, 3
    %p86 = por %p84, %p85
    %p87 = scmp.ne.s32.totalorder %s76, %s77
    %p88 = scmp.eq.s32.totalorder %s20, 0
    %p89 = por %p87, %p88
    %p90 = scmp.ne.s32.totalorder %s76, %s77
    %p91 = scmp.eq.s32.totalorder %s21, 3
    %p92 = por %p90, %p91
    %p94 = scmp.ne.s32.totalorder %s77, %s93
    %p95 = scmp.eq.s32.totalorder %s21, 0
    %p96 = por %p94, %p95
    %s97 = sadd.s32 %s23, 1
    %p98 = scmp.lt.s32.totalorder %s97, 1
    %s99 = scalar_select %p98, %s97, 1
    %s100 = sadd.s32 %s30, 1
    %p101 = scmp.lt.s32.totalorder %s100, 1
    %s102 = scalar_select %p101, %s100, 1
    %s103 = ssub.s32 %s22, %s34
    %s104 = ssub.s32 %s99, %s102
    %s105 = sor.u32 %s103, %s104
    %p106 = scmp.eq.s32.totalorder %s105, 0
    %s108 = sadd.s32 %s107, 1
    %s109 = scalar_select %p106, %s107, %s108
    %p112 = pneg %p106
    %p113 = scmp.eq.s32.totalorder %s15, 3
    %p114 = por %p112, %p113
    %p115 = scmp.ne.s32.totalorder %s107, %s110
    %p116 = scmp.eq.s32.totalorder %s15, 0
    %p117 = por %p115, %p116
    %p118 = scmp.ne.s32.totalorder %s107, %s110
    %p119 = scmp.eq.s32.totalorder %s20, 3
    %p120 = por %p118, %p119
    %p121 = scmp.ne.s32.totalorder %s110, %s111
    %p122 = scmp.eq.s32.totalorder %s20, 0
    %p123 = por %p121, %p122
    %p124 = scmp.ne.s32.totalorder %s110, %s111
    %p125 = scmp.eq.s32.totalorder %s21, 3
    %p126 = por %p124, %p125
    %p128 = scmp.ne.s32.totalorder %s111, %s127
    %p129 = scmp.eq.s32.totalorder %s21, 0
    %p130 = por %p128, %p129
    %s132 = sadd.s32 %s131, 1
    %p135 = scmp.eq.s32.totalorder %s15, 3
    %p136 = scmp.ne.s32.totalorder %s131, %s133
    %p137 = scmp.eq.s32.totalorder %s15, 0
    %p138 = por %p136, %p137
    %p139 = scmp.ne.s32.totalorder %s131, %s133
    %p140 = scmp.eq.s32.totalorder %s20, 3
    %p141 = por %p139, %p140
    %p142 = scmp.ne.s32.totalorder %s133, %s134
    %p143 = scmp.eq.s32.totalorder %s20, 0
    %p144 = por %p142, %p143
    %p145 = scmp.ne.s32.totalorder %s133, %s134
    %p146 = scmp.eq.s32.totalorder %s21, 3
    %p147 = por %p145, %p146
    %p149 = scmp.ne.s32.totalorder %s134, %s148
    %p150 = scmp.eq.s32.totalorder %s21, 0
    %p151 = por %p149, %p150
    %s153 = sadd.s32 %s152, 1
    %p156 = scmp.eq.s32.totalorder %s15, 3
    %p157 = scmp.ne.s32.totalorder %s152, %s154
    %p158 = scmp.eq.s32.totalorder %s15, 0
    %p159 = por %p157, %p158
    %p160 = scmp.ne.s32.totalorder %s152, %s154
    %p161 = scmp.eq.s32.totalorder %s20, 3
    %p162 = por %p160, %p161
    %p163 = scmp.ne.s32.totalorder %s154, %s155
    %p164 = scmp.eq.s32.totalorder %s20, 0
    %p165 = por %p163, %p164
    %p166 = scmp.ne.s32.totalorder %s154, %s155
    %p167 = scmp.eq.s32.totalorder %s21, 3
    %p168 = por %p166, %p167
    %p170 = scmp.ne.s32.totalorder %s155, %s169
    %p171 = scmp.eq.s32.totalorder %s21, 0
    %p172 = por %p170, %p171
    %s174 = sadd.s32 %s173, 1
    %p177 = scmp.eq.s32.totalorder %s15, 3
    %p178 = scmp.ne.s32.totalorder %s173, %s175
    %p179 = scmp.eq.s32.totalorder %s15, 0
    %p180 = por %p178, %p179
    %p181 = scmp.ne.s32.totalorder %s173, %s175
    %p182 = scmp.eq.s32.totalorder %s20, 3
    %p183 = por %p181, %p182
    %p184 = scmp.ne.s32.totalorder %s175, %s176
    %p185 = scmp.eq.s32.totalorder %s20, 0
    %p186 = por %p184, %p185
    %p187 = scmp.ne.s32.totalorder %s175, %s176
    %p188 = scmp.eq.s32.totalorder %s21, 3
    %p189 = por %p187, %p188
    %p191 = scmp.ne.s32.totalorder %s176, %s190
    %p192 = scmp.eq.s32.totalorder %s21, 0
    %p193 = por %p191, %p192
    %s195 = sadd.s32 %s194, 1
    %p198 = scmp.eq.s32.totalorder %s15, 3
    %p199 = scmp.ne.s32.totalorder %s194, %s196
    %p200 = scmp.eq.s32.totalorder %s15, 0
    %p201 = por %p199, %p200
    %p202 = scmp.ne.s32.totalorder %s194, %s196
    %p203 = scmp.eq.s32.totalorder %s20, 3
    %p204 = por %p202, %p203
    %p205 = scmp.ne.s32.totalorder %s196, %s197
    %p206 = scmp.eq.s32.totalorder %s20, 0
    %p207 = por %p205, %p206
    %p208 = scmp.ne.s32.totalorder %s196, %s197
    %p209 = scmp.eq.s32.totalorder %s21, 3
    %p210 = por %p208, %p209
    %p212 = scmp.ne.s32.totalorder %s197, %s211
    %p213 = scmp.eq.s32.totalorder %s21, 0
    %p214 = por %p212, %p213
    %s216 = sadd.s32 %s215, 1
    %p219 = scmp.eq.s32.totalorder %s15, 3
    %p220 = scmp.ne.s32.totalorder %s215, %s217
    %p221 = scmp.eq.s32.totalorder %s15, 0
    %p222 = por %p220, %p221
    %p223 = scmp.ne.s32.totalorder %s215, %s217
    %p224 = scmp.eq.s32.totalorder %s20, 3
    %p225 = por %p223, %p224
    %p226 = scmp.ne.s32.totalorder %s217, %s218
    %p227 = scmp.eq.s32.totalorder %s20, 0
    %p228 = por %p226, %p227
    %p229 = scmp.ne.s32.totalorder %s217, %s218
    %p230 = scmp.eq.s32.totalorder %s21, 3
    %p231 = por %p229, %p230
    %p233 = scmp.ne.s32.totalorder %s218, %s232
    %p234 = scmp.eq.s32.totalorder %s21, 0
    %p235 = por %p233, %p234
    %s237 = sadd.s32 %s236, 1
    %p240 = scmp.eq.s32.totalorder %s15, 3
    %p241 = scmp.ne.s32.totalorder %s236, %s238
    %p242 = scmp.eq.s32.totalorder %s15, 0
    %p243 = por %p241, %p242
    %p244 = scmp.ne.s32.totalorder %s236, %s238
    %p245 = scmp.eq.s32.totalorder %s20, 3
    %p246 = por %p244, %p245
    %p247 = scmp.ne.s32.totalorder %s238, %s239
    %p248 = scmp.eq.s32.totalorder %s20, 0
    %p249 = por %p247, %p248
    %p250 = scmp.ne.s32.totalorder %s238, %s239
    %p251 = scmp.eq.s32.totalorder %s21, 3
    %p252 = por %p250, %p251
    %p254 = scmp.ne.s32.totalorder %s239, %s253
    %p255 = scmp.eq.s32.totalorder %s21, 0
    %p256 = por %p254, %p255
    %s257 = ssub.s32 %s22, %s34
    %s258 = ssub.s32 %s23, %s30
    %s259 = sor.u32 %s257, %s258
    %p260 = scmp.eq.s32.totalorder %s259, 0
    %s262 = sadd.s32 %s261, 1
    %s263 = scalar_select %p260, %s261, %s262
    %p266 = pneg %p260
    %p267 = scmp.eq.s32.totalorder %s15, 3
    %p268 = por %p266, %p267
    %p269 = scmp.ne.s32.totalorder %s261, %s264
    %p270 = scmp.eq.s32.totalorder %s15, 0
    %p271 = por %p269, %p270
    %p272 = scmp.ne.s32.totalorder %s261, %s264
    %p273 = scmp.eq.s32.totalorder %s20, 3
    %p274 = por %p272, %p273
    %p275 = scmp.ne.s32.totalorder %s264, %s265
    %p276 = scmp.eq.s32.totalorder %s20, 0
    %p277 = por %p275, %p276
    %p278 = scmp.ne.s32.totalorder %s264, %s265
    %p279 = scmp.eq.s32.totalorder %s21, 3
    %p280 = por %p278, %p279
    %p282 = scmp.ne.s32.totalorder %s265, %s281
    %p283 = scmp.eq.s32.totalorder %s21, 0
    %p284 = por %p282, %p283
    %p285 = scmp.le.s32.totalorder 1, %s15
    %p286 = scmp.lt.s32.totalorder %s15, 5
    %p287 = pnand %p285, %p286
    %p288 = pneg %p287
    // Predicated region
    $region9: #{double_conv_forward.1} parent=5 // pred_check
      _
    $region10: #{double_conv_forward.1} parent=5 // pred_check_branch
      %290 = sbr.rel (%p287) target = $region12
    $region11: #{double_conv_forward.1} parent=5 // pred_region
      %s291 = ssub.s32 %s15, 1
      // Predicated region
      $region13: #{double_conv_forward.1} parent=11 // pred_check
        %p292 = pneg %p144
      $region14: #{double_conv_forward.1} parent=11 // pred_check_branch
        %294 = sbr.rel (%p292) target = $region16
      $region15: #{double_conv_forward.1} parent=11 // pred_region
        _
      $region16: #{double_conv_forward.1} parent=11 // pred_fallthru
        _
      // Predicated region
      $region17: #{double_conv_forward.1} parent=11 // pred_check
        %p295 = pneg %p165
      $region18: #{double_conv_forward.1} parent=11 // pred_check_branch
        %297 = sbr.rel (%p295) target = $region20
      $region19: #{double_conv_forward.1} parent=11 // pred_region
        _
      $region20: #{double_conv_forward.1} parent=11 // pred_fallthru
        _
      // Predicated region
      $region21: #{double_conv_forward.1} parent=11 // pred_check
        %p298 = pneg %p186
      $region22: #{double_conv_forward.1} parent=11 // pred_check_branch
        %300 = sbr.rel (%p298) target = $region24
      $region23: #{double_conv_forward.1} parent=11 // pred_region
        _
      $region24: #{double_conv_forward.1} parent=11 // pred_fallthru
        _
      // Predicated region
      $region25: #{double_conv_forward.1} parent=11 // pred_check
        %p301 = pneg %p207
      $region26: #{double_conv_forward.1} parent=11 // pred_check_branch
        %303 = sbr.rel (%p301) target = $region28
      $region27: #{double_conv_forward.1} parent=11 // pred_region
        _
      $region28: #{double_conv_forward.1} parent=11 // pred_fallthru
        _
      // Predicated region
      $region29: #{double_conv_forward.1} parent=11 // pred_check
        %p304 = pneg %p228
      $region30: #{double_conv_forward.1} parent=11 // pred_check_branch
        %306 = sbr.rel (%p304) target = $region32
      $region31: #{double_conv_forward.1} parent=11 // pred_region
        _
      $region32: #{double_conv_forward.1} parent=11 // pred_fallthru
        _
      // Predicated region
      $region33: #{double_conv_forward.1} parent=11 // pred_check
        %p307 = pneg %p249
      $region34: #{double_conv_forward.1} parent=11 // pred_check_branch
        %309 = sbr.rel (%p307) target = $region36
      $region35: #{double_conv_forward.1} parent=11 // pred_region
        _
      $region36: #{double_conv_forward.1} parent=11 // pred_fallthru
        _
    $region12: #{double_conv_forward.1} parent=5 // pred_fallthru
      _
    %p310 = scmp.lt.s32.totalorder %s15, 4
    // Predicated region
    $region37: #{double_conv_forward.1} parent=5 // pred_check
      %p311 = pneg %p310
    $region38: #{double_conv_forward.1} parent=5 // pred_check_branch
      %313 = sbr.rel (%p311) target = $region40
    $region39: #{double_conv_forward.1} parent=5 // pred_region
      // Predicated region
      $region41: #{double_conv_forward.1} parent=39 // pred_check
        %p314 = pneg %p49
      $region42: #{double_conv_forward.1} parent=39 // pred_check_branch
        %316 = sbr.rel (%p314) target = $region44
      $region43: #{double_conv_forward.1} parent=39 // pred_region
        %s317 = smul.u32 8, %s23
        %p318 = scmp.lt.s32.totalorder %s22, 1
        %s319 = scalar_select %p318, %s22, 1
        %p320 = scmp.lt.s32.totalorder %s317, 15
        %s321 = scalar_select %p320, %s317, 15
        %s322 = smul.addr %s321, 2
        %s323 = smul.addr %s319, 32
        %s324 = sadd.s32 %s322, %s323
        %s325 = smul.addr %s324, 8
        %s326 = scalar_lea.vmem %s0, %s325
        %s327 = smul.u32 8, %s23
      $region44: #{double_conv_forward.1} parent=39 // pred_fallthru
        _
      // Predicated region
      $region45: #{double_conv_forward.1} parent=39 // pred_check
        %p328 = pneg %p83
      $region46: #{double_conv_forward.1} parent=39 // pred_check_branch
        %330 = sbr.rel (%p328) target = $region48
      $region47: #{double_conv_forward.1} parent=39 // pred_region
        %s331 = ssub.s32 %s23, 1
        %p332 = scmp.gt.s32.totalorder %s331, 0
        %s333 = scalar_select %p332, %s331, 0
        %s334 = smul.u32 8, %s333
        %p335 = scmp.lt.s32.totalorder %s22, 1
        %s336 = scalar_select %p335, %s22, 1
        %p337 = scmp.lt.s32.totalorder %s334, 15
        %s338 = scalar_select %p337, %s334, 15
        %s339 = smul.addr %s338, 2
        %s340 = smul.addr %s336, 32
        %s341 = sadd.s32 %s339, %s340
        %s342 = smul.addr %s341, 8
        %s343 = scalar_lea.vmem %s1, %s342
        %s344 = ssub.s32 %s23, 1
        %p345 = scmp.gt.s32.totalorder %s344, 0
        %s346 = scalar_select %p345, %s344, 0
        %s347 = smul.u32 8, %s346
      $region48: #{double_conv_forward.1} parent=39 // pred_fallthru
        _
      // Predicated region
      $region49: #{double_conv_forward.1} parent=39 // pred_check
        %p348 = pneg %p117
      $region50: #{double_conv_forward.1} parent=39 // pred_check_branch
        %350 = sbr.rel (%p348) target = $region52
      $region51: #{double_conv_forward.1} parent=39 // pred_region
        %s351 = sadd.s32 %s23, 1
        %p352 = scmp.lt.s32.totalorder %s351, 1
        %s353 = scalar_select %p352, %s351, 1
        %s354 = smul.u32 8, %s353
        %p355 = scmp.lt.s32.totalorder %s22, 1
        %s356 = scalar_select %p355, %s22, 1
        %p357 = scmp.lt.s32.totalorder %s354, 15
        %s358 = scalar_select %p357, %s354, 15
        %s359 = smul.addr %s358, 2
        %s360 = smul.addr %s356, 32
        %s361 = sadd.s32 %s359, %s360
        %s362 = smul.addr %s361, 8
        %s363 = scalar_lea.vmem %s2, %s362
        %s364 = sadd.s32 %s23, 1
        %p365 = scmp.lt.s32.totalorder %s364, 1
        %s366 = scalar_select %p365, %s364, 1
        %s367 = smul.u32 8, %s366
      $region52: #{double_conv_forward.1} parent=39 // pred_fallthru
        _
    $region40: #{double_conv_forward.1} parent=5 // pred_fallthru
      _
    %p368 = scmp.le.s32.totalorder 1, %s15
    %p369 = scmp.lt.s32.totalorder %s15, 5
    %p370 = pnand %p368, %p369
    %p371 = pneg %p370
    // Predicated region
    $region53: #{double_conv_forward.1} parent=5 // pred_check
      _
    $region54: #{double_conv_forward.1} parent=5 // pred_check_branch
      %373 = sbr.rel (%p370) target = $region56
    $region55: #{double_conv_forward.1} parent=5 // pred_region
      %s374 = ssub.s32 %s15, 1
      %s375 = smul.u32 8, %s25
      %p376 = scmp.lt.s32.totalorder %s24, 1
      %s377 = scalar_select %p376, %s24, 1
      %p378 = scmp.lt.s32.totalorder %s375, 15
      %s379 = scalar_select %p378, %s375, 15
      %s380 = smul.addr %s379, 2
      %s381 = smul.addr %s377, 32
      %s382 = sadd.s32 %s380, %s381
      %s383 = smul.addr %s382, 8
      %s384 = scalar_lea.vmem %s0, %s383
      %p385 = pneg %p55
      %p386 = pneg %p52
      %s387 = ssub.s32 %s25, 1
      %p388 = scmp.gt.s32.totalorder %s387, 0
      %s389 = scalar_select %p388, %s387, 0
      %s390 = smul.u32 8, %s389
      %p391 = scmp.lt.s32.totalorder %s24, 1
      %s392 = scalar_select %p391, %s24, 1
      %p393 = scmp.lt.s32.totalorder %s390, 15
      %s394 = scalar_select %p393, %s390, 15
      %s395 = smul.addr %s394, 2
      %s396 = smul.addr %s392, 32
      %s397 = sadd.s32 %s395, %s396
      %s398 = smul.addr %s397, 8
      %s399 = scalar_lea.vmem %s1, %s398
      %p400 = pneg %p89
      %p401 = pneg %p86
      %s402 = sadd.s32 %s25, 1
      %p403 = scmp.lt.s32.totalorder %s402, 1
      %s404 = scalar_select %p403, %s402, 1
      %s405 = smul.u32 8, %s404
      %p406 = scmp.lt.s32.totalorder %s24, 1
      %s407 = scalar_select %p406, %s24, 1
      %p408 = scmp.lt.s32.totalorder %s405, 15
      %s409 = scalar_select %p408, %s405, 15
      %s410 = smul.addr %s409, 2
      %s411 = smul.addr %s407, 32
      %s412 = sadd.s32 %s410, %s411
      %s413 = smul.addr %s412, 8
      %s414 = scalar_lea.vmem %s2, %s413
      %p415 = pneg %p123
      %p416 = pneg %p120
      %p417 = pneg %p144
      %p418 = pneg %p141
      %p419 = pneg %p165
      %p420 = pneg %p162
      %p421 = pneg %p186
      %p422 = pneg %p183
      %p423 = pneg %p207
      %p424 = pneg %p204
      %p425 = pneg %p228
      %p426 = pneg %p225
      %p427 = pneg %p249
      %p428 = pneg %p246
      %p429 = pneg %p277
      %p430 = pneg %p274
      %s431 = smul.u32 8, %s25
      %p432 = scmp.lt.s32.totalorder %s24, 1
      %s433 = scalar_select %p432, %s24, 1
      %p434 = scmp.lt.s32.totalorder %s431, 15
      %s435 = scalar_select %p434, %s431, 15
      %s436 = smul.addr %s435, 2
      %s437 = smul.addr %s433, 32
      %s438 = sadd.s32 %s436, %s437
      %s439 = smul.addr %s438, 8
      %s440 = scalar_lea.vmem %s9, %s439
      %s441 = smul.u32 8, %s25
      %p442 = scmp.lt.s32.totalorder %s24, 1
      %s443 = scalar_select %p442, %s24, 1
      %p444 = scmp.lt.s32.totalorder %s441, 15
      %s445 = scalar_select %p444, %s441, 15
      %s446 = smul.addr %s445, 2
      %s447 = smul.addr %s443, 32
      %s448 = sadd.s32 %s446, %s447
      %s449 = smul.addr %s448, 8
      %s450 = scalar_lea.vmem %s0, %s449
      %s451 = smul.u32 8, %s25
      %s452 = ssub.s32 %s25, 1
      %p453 = scmp.gt.s32.totalorder %s452, 0
      %s454 = scalar_select %p453, %s452, 0
      %s455 = smul.u32 8, %s454
      %p456 = scmp.lt.s32.totalorder %s24, 1
      %s457 = scalar_select %p456, %s24, 1
      %p458 = scmp.lt.s32.totalorder %s455, 15
      %s459 = scalar_select %p458, %s455, 15
      %s460 = smul.addr %s459, 2
      %s461 = smul.addr %s457, 32
      %s462 = sadd.s32 %s460, %s461
      %s463 = smul.addr %s462, 8
      %s464 = scalar_lea.vmem %s1, %s463
      %s465 = ssub.s32 %s25, 1
      %p466 = scmp.gt.s32.totalorder %s465, 0
      %s467 = scalar_select %p466, %s465, 0
      %s468 = smul.u32 8, %s467
      %s469 = sadd.s32 %s25, 1
      %p470 = scmp.lt.s32.totalorder %s469, 1
      %s471 = scalar_select %p470, %s469, 1
      %s472 = smul.u32 8, %s471
      %p473 = scmp.lt.s32.totalorder %s24, 1
      %s474 = scalar_select %p473, %s24, 1
      %p475 = scmp.lt.s32.totalorder %s472, 15
      %s476 = scalar_select %p475, %s472, 15
      %s477 = smul.addr %s476, 2
      %s478 = smul.addr %s474, 32
      %s479 = sadd.s32 %s477, %s478
      %s480 = smul.addr %s479, 8
      %s481 = scalar_lea.vmem %s2, %s480
      %s482 = sadd.s32 %s25, 1
      %p483 = scmp.lt.s32.totalorder %s482, 1
      %s484 = scalar_select %p483, %s482, 1
      %s485 = smul.u32 8, %s484
      %s486 = smul.u32 8, %s25
      %p487 = scmp.lt.s32.totalorder %s24, 1
      %s488 = scalar_select %p487, %s24, 1
      %p489 = scmp.lt.s32.totalorder %s486, 15
      %s490 = scalar_select %p489, %s486, 15
      %s491 = smul.addr %s490, 2
      %s492 = smul.addr %s488, 32
      %s493 = sadd.s32 %s491, %s492
      %s494 = smul.addr %s493, 8
      %s495 = scalar_lea.vmem %s9, %s494
      %s496 = smul.u32 8, %s25
      %vm498 = vcmask 31744
      %499 = vst.msk [vmem:[#allocation2] sm:$0xff] %vm498, 0.0
      %500 = vst.msk [vmem:[#allocation2 + $0x8] sm:$0xff] %vm498, 0.0
      %vm501 = vcmask 25600
      %502 = vst.msk [vmem:[#allocation2 + $0x10] sm:$0x3] %vm501, 0.0
      %503 = vst.msk [vmem:[#allocation2 + $0x18] sm:$0xff] %vm498, 0.0
      %504 = vst.msk [vmem:[#allocation2 + $0x20] sm:$0xff] %vm498, 0.0
      %505 = vst.msk [vmem:[#allocation2 + $0x28] sm:$0x3] %vm501, 0.0
      %506 = vst.msk [vmem:[#allocation2 + $0x30] sm:$0xff] %vm498, 0.0
      %507 = vst.msk [vmem:[#allocation2 + $0x38] sm:$0xff] %vm498, 0.0
      %508 = vst.msk [vmem:[#allocation2 + $0x40] sm:$0x3] %vm501, 0.0
      %509 = vst.msk [vmem:[#allocation2 + $0x48] sm:$0xff] %vm498, 0.0
      %510 = vst.msk [vmem:[#allocation2 + $0x50] sm:$0xff] %vm498, 0.0
      %511 = vst.msk [vmem:[#allocation2 + $0x58] sm:$0x3] %vm501, 0.0
      %512 = vst.msk [vmem:[#allocation2 + $0x60] sm:$0xff] %vm498, 0.0
      %513 = vst.msk [vmem:[#allocation2 + $0x68] sm:$0xff] %vm498, 0.0
      %514 = vst.msk [vmem:[#allocation2 + $0x70] sm:$0x3] %vm501, 0.0
      %515 = vst.msk [vmem:[#allocation2 + $0x78] sm:$0xff] %vm498, 0.0
      %516 = vst.msk [vmem:[#allocation2 + $0x80] sm:$0xff] %vm498, 0.0
      %517 = vst.msk [vmem:[#allocation2 + $0x88] sm:$0x3] %vm501, 0.0
      %518 = vst.msk [vmem:[#allocation2 + $0x90] sm:$0xff] %vm498, 0.0
      %519 = vst.msk [vmem:[#allocation2 + $0x98] sm:$0xff] %vm498, 0.0
      %520 = vst.msk [vmem:[#allocation2 + $0xa0] sm:$0x3] %vm501, 0.0
      %521 = vst.msk [vmem:[#allocation2 + $0xa8] sm:$0xff] %vm498, 0.0
      %522 = vst.msk [vmem:[#allocation2 + $0xb0] sm:$0xff] %vm498, 0.0
      %523 = vst.msk [vmem:[#allocation2 + $0xb8] sm:$0x3] %vm501, 0.0
      %524 = vst.msk [vmem:[#allocation2 + $0xc0] sm:$0xff] %vm498, 0.0
      %525 = vst.msk [vmem:[#allocation2 + $0xc8] sm:$0xff] %vm498, 0.0
      %526 = vst.msk [vmem:[#allocation2 + $0xd0] sm:$0x3] %vm501, 0.0
      %527 = vst.msk [vmem:[#allocation2 + $0xd8] sm:$0xff] %vm498, 0.0
      %528 = vst.msk [vmem:[#allocation2 + $0xe0] sm:$0xff] %vm498, 0.0
      %529 = vst.msk [vmem:[#allocation2 + $0xe8] sm:$0x3] %vm501, 0.0
      %530 = vst.msk [vmem:[#allocation2 + $0xf0] sm:$0xff] %vm498, 0.0
      %531 = vst.msk [vmem:[#allocation2 + $0xf8] sm:$0xff] %vm498, 0.0
      %532 = vst.msk [vmem:[#allocation2 + $0x100] sm:$0x3] %vm501, 0.0
      %533 = vst.msk [vmem:[#allocation2 + $0x108] sm:$0xff] %vm498, 0.0
      %534 = vst.msk [vmem:[#allocation2 + $0x110] sm:$0xff] %vm498, 0.0
      %535 = vst.msk [vmem:[#allocation2 + $0x118] sm:$0x3] %vm501, 0.0
      %v536 = vld [vmem:[%s450] sm:$0xff]
      %v537 = vld [vmem:[%s450 + $0x8] sm:$0xff]
      %v538 = vld [vmem:[%s450 + $0x10] sm:$0xff]
      %v539 = vld [vmem:[%s450 + $0x18] sm:$0xff]
      %v540 = vld [vmem:[%s450 + $0x20] sm:$0xff]
      %v541 = vld [vmem:[%s450 + $0x28] sm:$0xff]
      %v542 = vld [vmem:[%s450 + $0x30] sm:$0xff]
      %v543 = vld [vmem:[%s450 + $0x38] sm:$0xff]
      %v544 = vld [vmem:[%s450 + $0x40] sm:$0xff]
      %v545 = vld [vmem:[%s450 + $0x48] sm:$0xff]
      %v546 = vld [vmem:[%s450 + $0x50] sm:$0xff]
      %v547 = vld [vmem:[%s450 + $0x58] sm:$0xff]
      %v548 = vld [vmem:[%s450 + $0x60] sm:$0xff]
      %v549 = vld [vmem:[%s450 + $0x68] sm:$0xff]
      %v550 = vld [vmem:[%s450 + $0x70] sm:$0xff]
      %v551 = vld [vmem:[%s450 + $0x78] sm:$0xff]
      %s552 = scalar_lea.vmem [#allocation2], 48
      %553 = vst.msk [vmem:[%s552 + $0x1] sm:$0xff] %vm498, %v536
      %554 = vst.msk [vmem:[%s552 + $0x9] sm:$0xff] %vm498, %v537
      %555 = vst.msk [vmem:[%s552 + $0x19] sm:$0xff] %vm498, %v538
      %556 = vst.msk [vmem:[%s552 + $0x21] sm:$0xff] %vm498, %v539
      %557 = vst.msk [vmem:[%s552 + $0x31] sm:$0xff] %vm498, %v540
      %558 = vst.msk [vmem:[%s552 + $0x39] sm:$0xff] %vm498, %v541
      %559 = vst.msk [vmem:[%s552 + $0x49] sm:$0xff] %vm498, %v542
      %560 = vst.msk [vmem:[%s552 + $0x51] sm:$0xff] %vm498, %v543
      %561 = vst.msk [vmem:[%s552 + $0x61] sm:$0xff] %vm498, %v544
      %562 = vst.msk [vmem:[%s552 + $0x69] sm:$0xff] %vm498, %v545
      %563 = vst.msk [vmem:[%s552 + $0x79] sm:$0xff] %vm498, %v546
      %564 = vst.msk [vmem:[%s552 + $0x81] sm:$0xff] %vm498, %v547
      %565 = vst.msk [vmem:[%s552 + $0x91] sm:$0xff] %vm498, %v548
      %566 = vst.msk [vmem:[%s552 + $0x99] sm:$0xff] %vm498, %v549
      %567 = vst.msk [vmem:[%s552 + $0xa9] sm:$0xff] %vm498, %v550
      %568 = vst.msk [vmem:[%s552 + $0xb1] sm:$0xff] %vm498, %v551
      %p569 = scmp.gt.s32.totalorder %s25, 0
      // Predicated region
      $region57: #{double_conv_forward.1} parent=55 // pred_check
        %p570 = pneg %p569
      $region58: #{double_conv_forward.1} parent=55 // pred_check_branch
        %572 = sbr.rel (%p570) target = $region60
      $region59: #{double_conv_forward.1} parent=55 // pred_region
        %s573 = scalar_lea.vmem %s464, 96
        %v574 = vld [vmem:[%s573] sm:$0xff]
        %v575 = vld [vmem:[%s573 + $0x8] sm:$0xff]
        %v576 = vld [vmem:[%s573 + $0x10] sm:$0xff]
        %v577 = vld [vmem:[%s573 + $0x18] sm:$0xff]
        %578 = vst.msk [vmem:[#allocation2 + $0x1] sm:$0xff] %vm498, %v574
        %579 = vst.msk [vmem:[#allocation2 + $0x9] sm:$0xff] %vm498, %v575
        %580 = vst.msk [vmem:[#allocation2 + $0x19] sm:$0xff] %vm498, %v576
        %581 = vst.msk [vmem:[#allocation2 + $0x21] sm:$0xff] %vm498, %v577
      $region60: #{double_conv_forward.1} parent=55 // pred_fallthru
        _
      %p582 = scmp.lt.s32.totalorder %s25, 1
      // Predicated region
      $region61: #{double_conv_forward.1} parent=55 // pred_check
        %p583 = pneg %p582
      $region62: #{double_conv_forward.1} parent=55 // pred_check_branch
        %585 = sbr.rel (%p583) target = $region64
      $region63: #{double_conv_forward.1} parent=55 // pred_region
        %v586 = vld [vmem:[%s481] sm:$0xff]
        %v587 = vld [vmem:[%s481 + $0x8] sm:$0xff]
        %v588 = vld [vmem:[%s481 + $0x10] sm:$0xff]
        %v589 = vld [vmem:[%s481 + $0x18] sm:$0xff]
        %s590 = scalar_lea.vmem [#allocation2], 240
        %591 = vst.msk [vmem:[%s590 + $0x1] sm:$0xff] %vm498, %v586
        %592 = vst.msk [vmem:[%s590 + $0x9] sm:$0xff] %vm498, %v587
        %593 = vst.msk [vmem:[%s590 + $0x19] sm:$0xff] %vm498, %v588
        %594 = vst.msk [vmem:[%s590 + $0x21] sm:$0xff] %vm498, %v589
      $region64: #{double_conv_forward.1} parent=55 // pred_fallthru
        _
      %595 = vst [vmem:[#allocation4] sm:$0xff] 0.0
      %596 = vst [vmem:[#allocation4 + $0x8] sm:$0xff] 0.0
      %597 = vst [vmem:[#allocation4 + $0x10] sm:$0xff] 0.0
      %598 = vst [vmem:[#allocation4 + $0x18] sm:$0xff] 0.0
      %599 = vst [vmem:[#allocation4 + $0x20] sm:$0xff] 0.0
      %600 = vst [vmem:[#allocation4 + $0x28] sm:$0xff] 0.0
      %601 = vst [vmem:[#allocation4 + $0x30] sm:$0xff] 0.0
      %602 = vst [vmem:[#allocation4 + $0x38] sm:$0xff] 0.0
      %603 = vst [vmem:[#allocation4 + $0x40] sm:$0xff] 0.0
      %604 = vst [vmem:[#allocation4 + $0x48] sm:$0xff] 0.0
      %605 = vst [vmem:[#allocation4 + $0x50] sm:$0xff] 0.0
      %606 = vst [vmem:[#allocation4 + $0x58] sm:$0xff] 0.0
      %607 = vst [vmem:[#allocation4 + $0x60] sm:$0xff] 0.0
      %608 = vst [vmem:[#allocation4 + $0x68] sm:$0xff] 0.0
      %609 = vst [vmem:[#allocation4 + $0x70] sm:$0xff] 0.0
      %610 = vst [vmem:[#allocation4 + $0x78] sm:$0xff] 0.0
      %611 = vst [vmem:[#allocation4 + $0x80] sm:$0xff] 0.0
      %612 = vst [vmem:[#allocation4 + $0x88] sm:$0xff] 0.0
      %613 = vst [vmem:[#allocation4 + $0x90] sm:$0xff] 0.0
      %614 = vst [vmem:[#allocation4 + $0x98] sm:$0xff] 0.0
      %v615 = vld [vmem:[#allocation2] sm:$0xff]
      %v616 = vld [vmem:[#allocation2 + $0x8] sm:$0xff]
      %v617 = vld [vmem:[#allocation2 + $0x18] sm:$0xff]
      %v618 = vld [vmem:[#allocation2 + $0x20] sm:$0xff]
      %v619 = vld [vmem:[#allocation2 + $0x30] sm:$0xff]
      %v620 = vld [vmem:[#allocation2 + $0x38] sm:$0xff]
      %v621 = vld [vmem:[#allocation2 + $0x48] sm:$0xff]
      %v622 = vld [vmem:[#allocation2 + $0x50] sm:$0xff]
      %v623 = vld [vmem:[#allocation2 + $0x60] sm:$0xff]
      %v624 = vld [vmem:[#allocation2 + $0x68] sm:$0xff]
      %v625 = vld [vmem:[#allocation2 + $0x78] sm:$0xff]
      %v626 = vld [vmem:[#allocation2 + $0x80] sm:$0xff]
      %v627 = vld [vmem:[#allocation2 + $0x90] sm:$0xff]
      %v628 = vld [vmem:[#allocation2 + $0x98] sm:$0xff]
      %v629 = vld [vmem:[#allocation2 + $0xa8] sm:$0xff]
      %v630 = vld [vmem:[#allocation2 + $0xb0] sm:$0xff]
      %v631 = vld [vmem:[#allocation2 + $0xc0] sm:$0xff]
      %v632 = vld [vmem:[#allocation2 + $0xc8] sm:$0xff]
      %v633 = vld [vmem:[#allocation2 + $0xd8] sm:$0xff]
      %v634 = vld [vmem:[#allocation2 + $0xe0] sm:$0xff]
      %v635 = vpack.c.bf16 %v616, %v615
      %v636 = vpack.c.bf16 %v618, %v617
      %v637 = vpack.c.bf16 %v620, %v619
      %v638 = vpack.c.bf16 %v622, %v621
      %v639 = vpack.c.bf16 %v624, %v623
      %v640 = vpack.c.bf16 %v626, %v625
      %v641 = vpack.c.bf16 %v628, %v627
      %v642 = vpack.c.bf16 %v630, %v629
      %v643 = vpack.c.bf16 %v632, %v631
      %v644 = vpack.c.bf16 %v634, %v633
      %v645 = vld [vmem:[#allocation4] sm:$0xff]
      %v646 = vld [vmem:[#allocation4 + $0x8] sm:$0xff]
      %v647 = vld [vmem:[#allocation4 + $0x10] sm:$0xff]
      %v648 = vld [vmem:[#allocation4 + $0x18] sm:$0xff]
      %v649 = vld [vmem:[#allocation4 + $0x20] sm:$0xff]
      %v650 = vld [vmem:[#allocation4 + $0x28] sm:$0xff]
      %v651 = vld [vmem:[#allocation4 + $0x30] sm:$0xff]
      %v652 = vld [vmem:[#allocation4 + $0x38] sm:$0xff]
      %v653 = vld [vmem:[#allocation4 + $0x40] sm:$0xff]
      %v654 = vld [vmem:[#allocation4 + $0x48] sm:$0xff]
      %v655 = vld [vmem:[#allocation4 + $0x50] sm:$0xff]
      %v656 = vld [vmem:[#allocation4 + $0x58] sm:$0xff]
      %v657 = vld [vmem:[#allocation4 + $0x60] sm:$0xff]
      %v658 = vld [vmem:[#allocation4 + $0x68] sm:$0xff]
      %v659 = vld [vmem:[#allocation4 + $0x70] sm:$0xff]
      %v660 = vld [vmem:[#allocation4 + $0x78] sm:$0xff]
      %v661 = vld [vmem:[#allocation4 + $0x80] sm:$0xff]
      %v662 = vld [vmem:[#allocation4 + $0x88] sm:$0xff]
      %v663 = vld [vmem:[#allocation4 + $0x90] sm:$0xff]
      %v664 = vld [vmem:[#allocation4 + $0x98] sm:$0xff]
      %v665 = vld [vmem:[%s3] sm:$0x3]
      %v667 = vsel %vm498, %v635, 0
      %v670 = vsel %vm498, %v636, 0
      %v673 = vsel %vm498, %v637, 0
      %v676 = vsel %vm498, %v638, 0
      %v679 = vsel %vm498, %v639, 0
      %v682 = vsel %vm498, %v640, 0
      %v685 = vsel %vm498, %v641, 0
      %v688 = vsel %vm498, %v642, 0
      %v691 = vsel %vm498, %v643, 0
      %v694 = vsel %vm498, %v644, 0
      %vm696 = vcmask 1041408
      %v698 = vsel %vm696, %v665, 0
      %700 = vmatprep.subr.bf16.mxu0 0
      %701 = vmatpush1.bf16.msra.mxu0 0
      %702 = vmatprep.subr.bf16.mxu0 0
      %703 = vmatpush1.bf16.msra.mxu0 0
      %704 = vmatprep.subr.bf16.mxu0 0
      %705 = vmatpush1.bf16.msra.mxu0 0
      %706 = vmatprep.subr.bf16.mxu0 0
      %707 = vmatpush1.bf16.msra.mxu0 0
      %708 = vmatprep.subr.bf16.mxu0 0
      %709 = vmatpush1.bf16.msra.mxu0 0
      %710 = vmatprep.subr.bf16.mxu0 0
      %711 = vmatpush1.bf16.msra.mxu0 0
      %712 = vmatprep.subr.bf16.mxu0 0
      %713 = vmatpush1.bf16.msra.mxu0 0
      %714 = vmatprep.subr.bf16.mxu0 0
      %715 = vmatpush1.bf16.msra.mxu0 %v698
      %716 = vmatprep.subr.bf16.mxu0 0
      %717 = vmatpush2.bf16.msra.mxu0 0
      %718 = vmatprep.subr.bf16.mxu0 0
      %719 = vmatpush2.bf16.msra.mxu0 0
      %720 = vmatprep.subr.bf16.mxu0 0
      %721 = vmatpush2.bf16.msra.mxu0 0
      %722 = vmatprep.subr.bf16.mxu0 0
      %723 = vmatpush2.bf16.msra.mxu0 0
      %724 = vmatprep.subr.bf16.mxu0 0
      %725 = vmatpush2.bf16.msra.mxu0 0
      %726 = vmatprep.subr.bf16.mxu0 0
      %727 = vmatpush2.bf16.msra.mxu0 0
      %728 = vmatprep.subr.bf16.mxu0 0
      %729 = vmatpush2.bf16.msra.mxu0 0
      %730 = vmatprep.subr.bf16.mxu0 0
      %731 = vmatpush2.bf16.msra.mxu0 0
      %732 = vmatprep.mubr.bf16.mxu0 0
      %733 = vmatmul.mubr.bf16.gmra.mxu0 %v667
      %v734 = vpop.f32.mrf.mxu0
      %v735 = vadd.f32 0.0, %v734
      %v736 = vpop.f32.mrf.mxu0
      %v737 = vpop.f32.mrf.mxu0
      %v738 = vadd.f32 0.0, %v737
      %v739 = vpop.f32.mrf.mxu0
      %740 = vmatprep.mubr.bf16.mxu0 0
      %741 = vmatmul.mubr.bf16.gmra.mxu0 %v670
      %v742 = vpop.f32.mrf.mxu0
      %v743 = vadd.f32 0.0, %v742
      %v744 = vpop.f32.mrf.mxu0
      %v745 = vpop.f32.mrf.mxu0
      %v746 = vadd.f32 0.0, %v745
      %v747 = vpop.f32.mrf.mxu0
      %748 = vmatprep.mubr.bf16.mxu0 0
      %749 = vmatmul.mubr.bf16.gmra.mxu0 %v673
      %v750 = vpop.f32.mrf.mxu0
      %v751 = vadd.f32 0.0, %v750
      %v752 = vpop.f32.mrf.mxu0
      %v753 = vpop.f32.mrf.mxu0
      %v754 = vadd.f32 0.0, %v753
      %v755 = vpop.f32.mrf.mxu0
      %756 = vmatprep.mubr.bf16.mxu0 0
      %757 = vmatmul.mubr.bf16.gmra.mxu0 %v676
      %v758 = vpop.f32.mrf.mxu0
      %v759 = vadd.f32 0.0, %v758
      %v760 = vpop.f32.mrf.mxu0
      %v761 = vpop.f32.mrf.mxu0
      %v762 = vadd.f32 0.0, %v761
      %v763 = vpop.f32.mrf.mxu0
      %764 = vmatprep.mubr.bf16.mxu0 0
      %765 = vmatmul.mubr.bf16.gmra.mxu0 %v679
      %v766 = vpop.f32.mrf.mxu0
      %v767 = vadd.f32 0.0, %v766
      %v768 = vpop.f32.mrf.mxu0
      %v769 = vpop.f32.mrf.mxu0
      %v770 = vadd.f32 0.0, %v769
      %v771 = vpop.f32.mrf.mxu0
      %772 = vmatprep.mubr.bf16.mxu0 0
      %773 = vmatmul.mubr.bf16.gmra.mxu0 %v682
      %v774 = vpop.f32.mrf.mxu0
      %v775 = vadd.f32 0.0, %v774
      %v776 = vpop.f32.mrf.mxu0
      %v777 = vpop.f32.mrf.mxu0
      %v778 = vadd.f32 0.0, %v777
      %v779 = vpop.f32.mrf.mxu0
      %780 = vmatprep.mubr.bf16.mxu0 0
      %781 = vmatmul.mubr.bf16.gmra.mxu0 %v685
      %v782 = vpop.f32.mrf.mxu0
      %v783 = vadd.f32 0.0, %v782
      %v784 = vpop.f32.mrf.mxu0
      %v785 = vpop.f32.mrf.mxu0
      %v786 = vadd.f32 0.0, %v785
      %v787 = vpop.f32.mrf.mxu0
      %788 = vmatprep.mubr.bf16.mxu0 0
      %789 = vmatmul.mubr.bf16.gmra.mxu0 %v688
      %v790 = vpop.f32.mrf.mxu0
      %v791 = vadd.f32 0.0, %v790
      %v792 = vpop.f32.mrf.mxu0
      %v793 = vpop.f32.mrf.mxu0
      %v794 = vadd.f32 0.0, %v793
      %v795 = vpop.f32.mrf.mxu0
      %796 = vmatprep.mubr.bf16.mxu0 0
      %797 = vmatmul.mubr.bf16.gmra.mxu0 %v691
      %v798 = vpop.f32.mrf.mxu0
      %v799 = vadd.f32 0.0, %v798
      %v800 = vpop.f32.mrf.mxu0
      %v801 = vpop.f32.mrf.mxu0
      %v802 = vadd.f32 0.0, %v801
      %v803 = vpop.f32.mrf.mxu0
      %804 = vmatprep.mubr.bf16.mxu0 0
      %805 = vmatmul.mubr.bf16.gmra.mxu0 %v694
      %v806 = vpop.f32.mrf.mxu0
      %v807 = vadd.f32 0.0, %v806
      %v808 = vpop.f32.mrf.mxu0
      %v809 = vpop.f32.mrf.mxu0
      %v810 = vadd.f32 0.0, %v809
      %v811 = vpop.f32.mrf.mxu0
      %812 = vdwg.mxu0
      %v813 = vadd.f32 %v645, %v735
      %v814 = vadd.f32 %v646, %v738
      %v815 = vadd.f32 %v647, %v743
      %v816 = vadd.f32 %v648, %v746
      %v817 = vadd.f32 %v649, %v751
      %v818 = vadd.f32 %v650, %v754
      %v819 = vadd.f32 %v651, %v759
      %v820 = vadd.f32 %v652, %v762
      %v821 = vadd.f32 %v653, %v767
      %v822 = vadd.f32 %v654, %v770
      %v823 = vadd.f32 %v655, %v775
      %v824 = vadd.f32 %v656, %v778
      %v825 = vadd.f32 %v657, %v783
      %v826 = vadd.f32 %v658, %v786
      %v827 = vadd.f32 %v659, %v791
      %v828 = vadd.f32 %v660, %v794
      %v829 = vadd.f32 %v661, %v799
      %v830 = vadd.f32 %v662, %v802
      %v831 = vadd.f32 %v663, %v807
      %v832 = vadd.f32 %v664, %v810
      %833 = vst [vmem:[#allocation4] sm:$0xff] %v813
      %834 = vst [vmem:[#allocation4 + $0x8] sm:$0xff] %v814
      %835 = vst [vmem:[#allocation4 + $0x10] sm:$0xff] %v815
      %836 = vst [vmem:[#allocation4 + $0x18] sm:$0xff] %v816
      %837 = vst [vmem:[#allocation4 + $0x20] sm:$0xff] %v817
      %838 = vst [vmem:[#allocation4 + $0x28] sm:$0xff] %v818
      %839 = vst [vmem:[#allocation4 + $0x30] sm:$0xff] %v819
      %840 = vst [vmem:[#allocation4 + $0x38] sm:$0xff] %v820
      %841 = vst [vmem:[#allocation4 + $0x40] sm:$0xff] %v821
      %842 = vst [vmem:[#allocation4 + $0x48] sm:$0xff] %v822
      %843 = vst [vmem:[#allocation4 + $0x50] sm:$0xff] %v823
      %844 = vst [vmem:[#allocation4 + $0x58] sm:$0xff] %v824
      %845 = vst [vmem:[#allocation4 + $0x60] sm:$0xff] %v825
      %846 = vst [vmem:[#allocation4 + $0x68] sm:$0xff] %v826
      %847 = vst [vmem:[#allocation4 + $0x70] sm:$0xff] %v827
      %848 = vst [vmem:[#allocation4 + $0x78] sm:$0xff] %v828
      %849 = vst [vmem:[#allocation4 + $0x80] sm:$0xff] %v829
      %850 = vst [vmem:[#allocation4 + $0x88] sm:$0xff] %v830
      %851 = vst [vmem:[#allocation4 + $0x90] sm:$0xff] %v831
      %852 = vst [vmem:[#allocation4 + $0x98] sm:$0xff] %v832
      %v853 = vld [vmem:[#allocation2 + $0x1] sm:$0xff]
      %v854 = vld [vmem:[#allocation2 + $0x9] sm:$0xff]
      %v855 = vld [vmem:[#allocation2 + $0x19] sm:$0xff]
      %v856 = vld [vmem:[#allocation2 + $0x21] sm:$0xff]
      %v857 = vld [vmem:[#allocation2 + $0x31] sm:$0xff]
      %v858 = vld [vmem:[#allocation2 + $0x39] sm:$0xff]
      %v859 = vld [vmem:[#allocation2 + $0x49] sm:$0xff]
      %v860 = vld [vmem:[#allocation2 + $0x51] sm:$0xff]
      %v861 = vld [vmem:[#allocation2 + $0x61] sm:$0xff]
      %v862 = vld [vmem:[#allocation2 + $0x69] sm:$0xff]
      %v863 = vld [vmem:[#allocation2 + $0x79] sm:$0xff]
      %v864 = vld [vmem:[#allocation2 + $0x81] sm:$0xff]
      %v865 = vld [vmem:[#allocation2 + $0x91] sm:$0xff]
      %v866 = vld [vmem:[#allocation2 + $0x99] sm:$0xff]
      %v867 = vld [vmem:[#allocation2 + $0xa9] sm:$0xff]
      %v868 = vld [vmem:[#allocation2 + $0xb1] sm:$0xff]
      %v869 = vld [vmem:[#allocation2 + $0xc1] sm:$0xff]
      %v870 = vld [vmem:[#allocation2 + $0xc9] sm:$0xff]
      %v871 = vld [vmem:[#allocation2 + $0xd9] sm:$0xff]
      %v872 = vld [vmem:[#allocation2 + $0xe1] sm:$0xff]
      %v873 = vpack.c.bf16 %v854, %v853
      %v874 = vpack.c.bf16 %v856, %v855
      %v875 = vpack.c.bf16 %v858, %v857
      %v876 = vpack.c.bf16 %v860, %v859
      %v877 = vpack.c.bf16 %v862, %v861
      %v878 = vpack.c.bf16 %v864, %v863
      %v879 = vpack.c.bf16 %v866, %v865
      %v880 = vpack.c.bf16 %v868, %v867
      %v881 = vpack.c.bf16 %v870, %v869
      %v882 = vpack.c.bf16 %v872, %v871
      %v883 = vld [vmem:[#allocation4] sm:$0xff]
      %v884 = vld [vmem:[#allocation4 + $0x8] sm:$0xff]
      %v885 = vld [vmem:[#allocation4 + $0x10] sm:$0xff]
      %v886 = vld [vmem:[#allocation4 + $0x18] sm:$0xff]
      %v887 = vld [vmem:[#allocation4 + $0x20] sm:$0xff]
      %v888 = vld [vmem:[#allocation4 + $0x28] sm:$0xff]
      %v889 = vld [vmem:[#allocation4 + $0x30] sm:$0xff]
      %v890 = vld [vmem:[#allocation4 + $0x38] sm:$0xff]
      %v891 = vld [vmem:[#allocation4 + $0x40] sm:$0xff]
      %v892 = vld [vmem:[#allocation4 + $0x48] sm:$0xff]
      %v893 = vld [vmem:[#allocation4 + $0x50] sm:$0xff]
      %v894 = vld [vmem:[#allocation4 + $0x58] sm:$0xff]
      %v895 = vld [vmem:[#allocation4 + $0x60] sm:$0xff]
      %v896 = vld [vmem:[#allocation4 + $0x68] sm:$0xff]
      %v897 = vld [vmem:[#allocation4 + $0x70] sm:$0xff]
      %v898 = vld [vmem:[#allocation4 + $0x78] sm:$0xff]
      %v899 = vld [vmem:[#allocation4 + $0x80] sm:$0xff]
      %v900 = vld [vmem:[#allocation4 + $0x88] sm:$0xff]
      %v901 = vld [vmem:[#allocation4 + $0x90] sm:$0xff]
      %v902 = vld [vmem:[#allocation4 + $0x98] sm:$0xff]
      %s903 = scalar_lea.vmem %s3, 2
      %v904 = vld [vmem:[%s903] sm:$0x3]
      %v906 = vsel %vm498, %v873, 0
      %v909 = vsel %vm498, %v874, 0
      %v912 = vsel %vm498, %v875, 0
      %v915 = vsel %vm498, %v876, 0
      %v918 = vsel %vm498, %v877, 0
      %v921 = vsel %vm498, %v878, 0
      %v924 = vsel %vm498, %v879, 0
      %v927 = vsel %vm498, %v880, 0
      %v930 = vsel %vm498, %v881, 0
      %v933 = vsel %vm498, %v882, 0
      %v936 = vsel %vm696, %v904, 0
      %938 = vmatprep.subr.bf16.mxu0 0
      %939 = vmatpush1.bf16.msra.mxu0 0
      %940 = vmatprep.subr.bf16.mxu0 0
      %941 = vmatpush1.bf16.msra.mxu0 0
      %942 = vmatprep.subr.bf16.mxu0 0
      %943 = vmatpush1.bf16.msra.mxu0 0
      %944 = vmatprep.subr.bf16.mxu0 0
      %945 = vmatpush1.bf16.msra.mxu0 0
      %946 = vmatprep.subr.bf16.mxu0 0
      %947 = vmatpush1.bf16.msra.mxu0 0
      %948 = vmatprep.subr.bf16.mxu0 0
      %949 = vmatpush1.bf16.msra.mxu0 0
      %950 = vmatprep.subr.bf16.mxu0 0
      %951 = vmatpush1.bf16.msra.mxu0 0
      %952 = vmatprep.subr.bf16.mxu0 0
      %953 = vmatpush1.bf16.msra.mxu0 %v936
      %954 = vmatprep.subr.bf16.mxu0 0
      %955 = vmatpush2.bf16.msra.mxu0 0
      %956 = vmatprep.subr.bf16.mxu0 0
      %957 = vmatpush2.bf16.msra.mxu0 0
      %958 = vmatprep.subr.bf16.mxu0 0
      %959 = vmatpush2.bf16.msra.mxu0 0
      %960 = vmatprep.subr.bf16.mxu0 0
      %961 = vmatpush2.bf16.msra.mxu0 0
      %962 = vmatprep.subr.bf16.mxu0 0
      %963 = vmatpush2.bf16.msra.mxu0 0
      %964 = vmatprep.subr.bf16.mxu0 0
      %965 = vmatpush2.bf16.msra.mxu0 0
      %966 = vmatprep.subr.bf16.mxu0 0
      %967 = vmatpush2.bf16.msra.mxu0 0
      %968 = vmatprep.subr.bf16.mxu0 0
      %969 = vmatpush2.bf16.msra.mxu0 0
      %970 = vmatprep.mubr.bf16.mxu0 0
      %971 = vmatmul.mubr.bf16.gmra.mxu0 %v906
      %v972 = vpop.f32.mrf.mxu0
      %v973 = vadd.f32 0.0, %v972
      %v974 = vpop.f32.mrf.mxu0
      %v975 = vpop.f32.mrf.mxu0
      %v976 = vadd.f32 0.0, %v975
      %v977 = vpop.f32.mrf.mxu0
      %978 = vmatprep.mubr.bf16.mxu0 0
      %979 = vmatmul.mubr.bf16.gmra.mxu0 %v909
      %v980 = vpop.f32.mrf.mxu0
      %v981 = vadd.f32 0.0, %v980
      %v982 = vpop.f32.mrf.mxu0
      %v983 = vpop.f32.mrf.mxu0
      %v984 = vadd.f32 0.0, %v983
      %v985 = vpop.f32.mrf.mxu0
      %986 = vmatprep.mubr.bf16.mxu0 0
      %987 = vmatmul.mubr.bf16.gmra.mxu0 %v912
      %v988 = vpop.f32.mrf.mxu0
      %v989 = vadd.f32 0.0, %v988
      %v990 = vpop.f32.mrf.mxu0
      %v991 = vpop.f32.mrf.mxu0
      %v992 = vadd.f32 0.0, %v991
      %v993 = vpop.f32.mrf.mxu0
      %994 = vmatprep.mubr.bf16.mxu0 0
      %995 = vmatmul.mubr.bf16.gmra.mxu0 %v915
      %v996 = vpop.f32.mrf.mxu0
      %v997 = vadd.f32 0.0, %v996
      %v998 = vpop.f32.mrf.mxu0
      %v999 = vpop.f32.mrf.mxu0
      %v1000 = vadd.f32 0.0, %v999
      %v1001 = vpop.f32.mrf.mxu0
      %1002 = vmatprep.mubr.bf16.mxu0 0
      %1003 = vmatmul.mubr.bf16.gmra.mxu0 %v918
      %v1004 = vpop.f32.mrf.mxu0
      %v1005 = vadd.f32 0.0, %v1004
      %v1006 = vpop.f32.mrf.mxu0
      %v1007 = vpop.f32.mrf.mxu0
      %v1008 = vadd.f32 0.0, %v1007
      %v1009 = vpop.f32.mrf.mxu0
      %1010 = vmatprep.mubr.bf16.mxu0 0
      %1011 = vmatmul.mubr.bf16.gmra.mxu0 %v921
      %v1012 = vpop.f32.mrf.mxu0
      %v1013 = vadd.f32 0.0, %v1012
      %v1014 = vpop.f32.mrf.mxu0
      %v1015 = vpop.f32.mrf.mxu0
      %v1016 = vadd.f32 0.0, %v1015
      %v1017 = vpop.f32.mrf.mxu0
      %1018 = vmatprep.mubr.bf16.mxu0 0
      %1019 = vmatmul.mubr.bf16.gmra.mxu0 %v924
      %v1020 = vpop.f32.mrf.mxu0
      %v1021 = vadd.f32 0.0, %v1020
      %v1022 = vpop.f32.mrf.mxu0
      %v1023 = vpop.f32.mrf.mxu0
      %v1024 = vadd.f32 0.0, %v1023
      %v1025 = vpop.f32.mrf.mxu0
      %1026 = vmatprep.mubr.bf16.mxu0 0
      %1027 = vmatmul.mubr.bf16.gmra.mxu0 %v927
      %v1028 = vpop.f32.mrf.mxu0
      %v1029 = vadd.f32 0.0, %v1028
      %v1030 = vpop.f32.mrf.mxu0
      %v1031 = vpop.f32.mrf.mxu0
      %v1032 = vadd.f32 0.0, %v1031
      %v1033 = vpop.f32.mrf.mxu0
      %1034 = vmatprep.mubr.bf16.mxu0 0
      %1035 = vmatmul.mubr.bf16.gmra.mxu0 %v930
      %v1036 = vpop.f32.mrf.mxu0
      %v1037 = vadd.f32 0.0, %v1036
      %v1038 = vpop.f32.mrf.mxu0
      %v1039 = vpop.f32.mrf.mxu0
      %v1040 = vadd.f32 0.0, %v1039
      %v1041 = vpop.f32.mrf.mxu0
      %1042 = vmatprep.mubr.bf16.mxu0 0
      %1043 = vmatmul.mubr.bf16.gmra.mxu0 %v933
      %v1044 = vpop.f32.mrf.mxu0
      %v1045 = vadd.f32 0.0, %v1044
      %v1046 = vpop.f32.mrf.mxu0
      %v1047 = vpop.f32.mrf.mxu0
      %v1048 = vadd.f32 0.0, %v1047
      %v1049 = vpop.f32.mrf.mxu0
      %1050 = vdwg.mxu0
      %v1051 = vadd.f32 %v883, %v973
      %v1052 = vadd.f32 %v884, %v976
      %v1053 = vadd.f32 %v885, %v981
      %v1054 = vadd.f32 %v886, %v984
      %v1055 = vadd.f32 %v887, %v989
      %v1056 = vadd.f32 %v888, %v992
      %v1057 = vadd.f32 %v889, %v997
      %v1058 = vadd.f32 %v890, %v1000
      %v1059 = vadd.f32 %v891, %v1005
      %v1060 = vadd.f32 %v892, %v1008
      %v1061 = vadd.f32 %v893, %v1013
      %v1062 = vadd.f32 %v894, %v1016
      %v1063 = vadd.f32 %v895, %v1021
      %v1064 = vadd.f32 %v896, %v1024
      %v1065 = vadd.f32 %v897, %v1029
      %v1066 = vadd.f32 %v898, %v1032
      %v1067 = vadd.f32 %v899, %v1037
      %v1068 = vadd.f32 %v900, %v1040
      %v1069 = vadd.f32 %v901, %v1045
      %v1070 = vadd.f32 %v902, %v1048
      %1071 = vst [vmem:[#allocation4] sm:$0xff] %v1051
      %1072 = vst [vmem:[#allocation4 + $0x8] sm:$0xff] %v1052
      %1073 = vst [vmem:[#allocation4 + $0x10] sm:$0xff] %v1053
      %1074 = vst [vmem:[#allocation4 + $0x18] sm:$0xff] %v1054
      %1075 = vst [vmem:[#allocation4 + $0x20] sm:$0xff] %v1055
      %1076 = vst [vmem:[#allocation4 + $0x28] sm:$0xff] %v1056
      %1077 = vst [vmem:[#allocation4 + $0x30] sm:$0xff] %v1057
      %1078 = vst [vmem:[#allocation4 + $0x38] sm:$0xff] %v1058
      %1079 = vst [vmem:[#allocation4 + $0x40] sm:$0xff] %v1059
      %1080 = vst [vmem:[#allocation4 + $0x48] sm:$0xff] %v1060
      %1081 = vst [vmem:[#allocation4 + $0x50] sm:$0xff] %v1061
      %1082 = vst [vmem:[#allocation4 + $0x58] sm:$0xff] %v1062
      %1083 = vst [vmem:[#allocation4 + $0x60] sm:$0xff] %v1063
      %1084 = vst [vmem:[#allocation4 + $0x68] sm:$0xff] %v1064
      %1085 = vst [vmem:[#allocation4 + $0x70] sm:$0xff] %v1065
      %1086 = vst [vmem:[#allocation4 + $0x78] sm:$0xff] %v1066
      %1087 = vst [vmem:[#allocation4 + $0x80] sm:$0xff] %v1067
      %1088 = vst [vmem:[#allocation4 + $0x88] sm:$0xff] %v1068
      %1089 = vst [vmem:[#allocation4 + $0x90] sm:$0xff] %v1069
      %1090 = vst [vmem:[#allocation4 + $0x98] sm:$0xff] %v1070
      %v1091 = vld [vmem:[#allocation2 + $0x2] sm:$0xff]
      %v1092 = vld [vmem:[#allocation2 + $0xa] sm:$0xff]
      %v1093 = vld [vmem:[#allocation2 + $0x1a] sm:$0xff]
      %v1094 = vld [vmem:[#allocation2 + $0x22] sm:$0xff]
      %v1095 = vld [vmem:[#allocation2 + $0x32] sm:$0xff]
      %v1096 = vld [vmem:[#allocation2 + $0x3a] sm:$0xff]
      %v1097 = vld [vmem:[#allocation2 + $0x4a] sm:$0xff]
      %v1098 = vld [vmem:[#allocation2 + $0x52] sm:$0xff]
      %v1099 = vld [vmem:[#allocation2 + $0x62] sm:$0xff]
      %v1100 = vld [vmem:[#allocation2 + $0x6a] sm:$0xff]
      %v1101 = vld [vmem:[#allocation2 + $0x7a] sm:$0xff]
      %v1102 = vld [vmem:[#allocation2 + $0x82] sm:$0xff]
      %v1103 = vld [vmem:[#allocation2 + $0x92] sm:$0xff]
      %v1104 = vld [vmem:[#allocation2 + $0x9a] sm:$0xff]
      %v1105 = vld [vmem:[#allocation2 + $0xaa] sm:$0xff]
      %v1106 = vld [vmem:[#allocation2 + $0xb2] sm:$0xff]
      %v1107 = vld [vmem:[#allocation2 + $0xc2] sm:$0xff]
      %v1108 = vld [vmem:[#allocation2 + $0xca] sm:$0xff]
      %v1109 = vld [vmem:[#allocation2 + $0xda] sm:$0xff]
      %v1110 = vld [vmem:[#allocation2 + $0xe2] sm:$0xff]
      %v1111 = vpack.c.bf16 %v1092, %v1091
      %v1112 = vpack.c.bf16 %v1094, %v1093
      %v1113 = vpack.c.bf16 %v1096, %v1095
      %v1114 = vpack.c.bf16 %v1098, %v1097
      %v1115 = vpack.c.bf16 %v1100, %v1099
      %v1116 = vpack.c.bf16 %v1102, %v1101
      %v1117 = vpack.c.bf16 %v1104, %v1103
      %v1118 = vpack.c.bf16 %v1106, %v1105
      %v1119 = vpack.c.bf16 %v1108, %v1107
      %v1120 = vpack.c.bf16 %v1110, %v1109
      %v1121 = vld [vmem:[#allocation4] sm:$0xff]
      %v1122 = vld [vmem:[#allocation4 + $0x8] sm:$0xff]
      %v1123 = vld [vmem:[#allocation4 + $0x10] sm:$0xff]
      %v1124 = vld [vmem:[#allocation4 + $0x18] sm:$0xff]
      %v1125 = vld [vmem:[#allocation4 + $0x20] sm:$0xff]
      %v1126 = vld [vmem:[#allocation4 + $0x28] sm:$0xff]
      %v1127 = vld [vmem:[#allocation4 + $0x30] sm:$0xff]
      %v1128 = vld [vmem:[#allocation4 + $0x38] sm:$0xff]
      %v1129 = vld [vmem:[#allocation4 + $0x40] sm:$0xff]
      %v1130 = vld [vmem:[#allocation4 + $0x48] sm:$0xff]
      %v1131 = vld [vmem:[#allocation4 + $0x50] sm:$0xff]
      %v1132 = vld [vmem:[#allocation4 + $0x58] sm:$0xff]
      %v1133 = vld [vmem:[#allocation4 + $0x60] sm:$0xff]
      %v1134 = vld [vmem:[#allocation4 + $0x68] sm:$0xff]
      %v1135 = vld [vmem:[#allocation4 + $0x70] sm:$0xff]
      %v1136 = vld [vmem:[#allocation4 + $0x78] sm:$0xff]
      %v1137 = vld [vmem:[#allocation4 + $0x80] sm:$0xff]
      %v1138 = vld [vmem:[#allocation4 + $0x88] sm:$0xff]
      %v1139 = vld [vmem:[#allocation4 + $0x90] sm:$0xff]
      %v1140 = vld [vmem:[#allocation4 + $0x98] sm:$0xff]
      %s1141 = scalar_lea.vmem %s3, 4
      %v1142 = vld [vmem:[%s1141] sm:$0x3]
      %v1144 = vsel %vm498, %v1111, 0
      %v1147 = vsel %vm498, %v1112, 0
      %v1150 = vsel %vm498, %v1113, 0
      %v1153 = vsel %vm498, %v1114, 0
      %v1156 = vsel %vm498, %v1115, 0
      %v1159 = vsel %vm498, %v1116, 0
      %v1162 = vsel %vm498, %v1117, 0
      %v1165 = vsel %vm498, %v1118, 0
      %v1168 = vsel %vm498, %v1119, 0
      %v1171 = vsel %vm498, %v1120, 0
      %v1174 = vsel %vm696, %v1142, 0
      %1176 = vmatprep.subr.bf16.mxu0 0
      %1177 = vmatpush1.bf16.msra.mxu0 0
      %1178 = vmatprep.subr.bf16.mxu0 0
      %1179 = vmatpush1.bf16.msra.mxu0 0
      %1180 = vmatprep.subr.bf16.mxu0 0
      %1181 = vmatpush1.bf16.msra.mxu0 0
      %1182 = vmatprep.subr.bf16.mxu0 0
      %1183 = vmatpush1.bf16.msra.mxu0 0
      %1184 = vmatprep.subr.bf16.mxu0 0
      %1185 = vmatpush1.bf16.msra.mxu0 0
      %1186 = vmatprep.subr.bf16.mxu0 0
      %1187 = vmatpush1.bf16.msra.mxu0 0
      %1188 = vmatprep.subr.bf16.mxu0 0
      %1189 = vmatpush1.bf16.msra.mxu0 0
      %1190 = vmatprep.subr.bf16.mxu0 0
      %1191 = vmatpush1.bf16.msra.mxu0 %v1174
      %1192 = vmatprep.subr.bf16.mxu0 0
      %1193 = vmatpush2.bf16.msra.mxu0 0
      %1194 = vmatprep.subr.bf16.mxu0 0
      %1195 = vmatpush2.bf16.msra.mxu0 0
      %1196 = vmatprep.subr.bf16.mxu0 0
      %1197 = vmatpush2.bf16.msra.mxu0 0
      %1198 = vmatprep.subr.bf16.mxu0 0
      %1199 = vmatpush2.bf16.msra.mxu0 0
      %1200 = vmatprep.subr.bf16.mxu0 0
      %1201 = vmatpush2.bf16.msra.mxu0 0
      %1202 = vmatprep.subr.bf16.mxu0 0
      %1203 = vmatpush2.bf16.msra.mxu0 0
      %1204 = vmatprep.subr.bf16.mxu0 0
      %1205 = vmatpush2.bf16.msra.mxu0 0
      %1206 = vmatprep.subr.bf16.mxu0 0
      %1207 = vmatpush2.bf16.msra.mxu0 0
      %1208 = vmatprep.mubr.bf16.mxu0 0
      %1209 = vmatmul.mubr.bf16.gmra.mxu0 %v1144
      %v1210 = vpop.f32.mrf.mxu0
      %v1211 = vadd.f32 0.0, %v1210
      %v1212 = vpop.f32.mrf.mxu0
      %v1213 = vpop.f32.mrf.mxu0
      %v1214 = vadd.f32 0.0, %v1213
      %v1215 = vpop.f32.mrf.mxu0
      %1216 = vmatprep.mubr.bf16.mxu0 0
      %1217 = vmatmul.mubr.bf16.gmra.mxu0 %v1147
      %v1218 = vpop.f32.mrf.mxu0
      %v1219 = vadd.f32 0.0, %v1218
      %v1220 = vpop.f32.mrf.mxu0
      %v1221 = vpop.f32.mrf.mxu0
      %v1222 = vadd.f32 0.0, %v1221
      %v1223 = vpop.f32.mrf.mxu0
      %1224 = vmatprep.mubr.bf16.mxu0 0
      %1225 = vmatmul.mubr.bf16.gmra.mxu0 %v1150
      %v1226 = vpop.f32.mrf.mxu0
      %v1227 = vadd.f32 0.0, %v1226
      %v1228 = vpop.f32.mrf.mxu0
      %v1229 = vpop.f32.mrf.mxu0
      %v1230 = vadd.f32 0.0, %v1229
      %v1231 = vpop.f32.mrf.mxu0
      %1232 = vmatprep.mubr.bf16.mxu0 0
      %1233 = vmatmul.mubr.bf16.gmra.mxu0 %v1153
      %v1234 = vpop.f32.mrf.mxu0
      %v1235 = vadd.f32 0.0, %v1234
      %v1236 = vpop.f32.mrf.mxu0
      %v1237 = vpop.f32.mrf.mxu0
      %v1238 = vadd.f32 0.0, %v1237
      %v1239 = vpop.f32.mrf.mxu0
      %1240 = vmatprep.mubr.bf16.mxu0 0
      %1241 = vmatmul.mubr.bf16.gmra.mxu0 %v1156
      %v1242 = vpop.f32.mrf.mxu0
      %v1243 = vadd.f32 0.0, %v1242
      %v1244 = vpop.f32.mrf.mxu0
      %v1245 = vpop.f32.mrf.mxu0
      %v1246 = vadd.f32 0.0, %v1245
      %v1247 = vpop.f32.mrf.mxu0
      %1248 = vmatprep.mubr.bf16.mxu0 0
      %1249 = vmatmul.mubr.bf16.gmra.mxu0 %v1159
      %v1250 = vpop.f32.mrf.mxu0
      %v1251 = vadd.f32 0.0, %v1250
      %v1252 = vpop.f32.mrf.mxu0
      %v1253 = vpop.f32.mrf.mxu0
      %v1254 = vadd.f32 0.0, %v1253
      %v1255 = vpop.f32.mrf.mxu0
      %1256 = vmatprep.mubr.bf16.mxu0 0
      %1257 = vmatmul.mubr.bf16.gmra.mxu0 %v1162
      %v1258 = vpop.f32.mrf.mxu0
      %v1259 = vadd.f32 0.0, %v1258
      %v1260 = vpop.f32.mrf.mxu0
      %v1261 = vpop.f32.mrf.mxu0
      %v1262 = vadd.f32 0.0, %v1261
      %v1263 = vpop.f32.mrf.mxu0
      %1264 = vmatprep.mubr.bf16.mxu0 0
      %1265 = vmatmul.mubr.bf16.gmra.mxu0 %v1165
      %v1266 = vpop.f32.mrf.mxu0
      %v1267 = vadd.f32 0.0, %v1266
      %v1268 = vpop.f32.mrf.mxu0
      %v1269 = vpop.f32.mrf.mxu0
      %v1270 = vadd.f32 0.0, %v1269
      %v1271 = vpop.f32.mrf.mxu0
      %1272 = vmatprep.mubr.bf16.mxu0 0
      %1273 = vmatmul.mubr.bf16.gmra.mxu0 %v1168
      %v1274 = vpop.f32.mrf.mxu0
      %v1275 = vadd.f32 0.0, %v1274
      %v1276 = vpop.f32.mrf.mxu0
      %v1277 = vpop.f32.mrf.mxu0
      %v1278 = vadd.f32 0.0, %v1277
      %v1279 = vpop.f32.mrf.mxu0
      %1280 = vmatprep.mubr.bf16.mxu0 0
      %1281 = vmatmul.mubr.bf16.gmra.mxu0 %v1171
      %v1282 = vpop.f32.mrf.mxu0
      %v1283 = vadd.f32 0.0, %v1282
      %v1284 = vpop.f32.mrf.mxu0
      %v1285 = vpop.f32.mrf.mxu0
      %v1286 = vadd.f32 0.0, %v1285
      %v1287 = vpop.f32.mrf.mxu0
      %1288 = vdwg.mxu0
      %v1289 = vadd.f32 %v1121, %v1211
      %v1290 = vadd.f32 %v1122, %v1214
      %v1291 = vadd.f32 %v1123, %v1219
      %v1292 = vadd.f32 %v1124, %v1222
      %v1293 = vadd.f32 %v1125, %v1227
      %v1294 = vadd.f32 %v1126, %v1230
      %v1295 = vadd.f32 %v1127, %v1235
      %v1296 = vadd.f32 %v1128, %v1238
      %v1297 = vadd.f32 %v1129, %v1243
      %v1298 = vadd.f32 %v1130, %v1246
      %v1299 = vadd.f32 %v1131, %v1251
      %v1300 = vadd.f32 %v1132, %v1254
      %v1301 = vadd.f32 %v1133, %v1259
      %v1302 = vadd.f32 %v1134, %v1262
      %v1303 = vadd.f32 %v1135, %v1267
      %v1304 = vadd.f32 %v1136, %v1270
      %v1305 = vadd.f32 %v1137, %v1275
      %v1306 = vadd.f32 %v1138, %v1278
      %v1307 = vadd.f32 %v1139, %v1283
      %v1308 = vadd.f32 %v1140, %v1286
      %1309 = vst [vmem:[#allocation4] sm:$0xff] %v1289
      %1310 = vst [vmem:[#allocation4 + $0x8] sm:$0xff] %v1290
      %1311 = vst [vmem:[#allocation4 + $0x10] sm:$0xff] %v1291
      %1312 = vst [vmem:[#allocation4 + $0x18] sm:$0xff] %v1292
      %1313 = vst [vmem:[#allocation4 + $0x20] sm:$0xff] %v1293
      %1314 = vst [vmem:[#allocation4 + $0x28] sm:$0xff] %v1294
      %1315 = vst [vmem:[#allocation4 + $0x30] sm:$0xff] %v1295
      %1316 = vst [vmem:[#allocation4 + $0x38] sm:$0xff] %v1296
      %1317 = vst [vmem:[#allocation4 + $0x40] sm:$0xff] %v1297
      %1318 = vst [vmem:[#allocation4 + $0x48] sm:$0xff] %v1298
      %1319 = vst [vmem:[#allocation4 + $0x50] sm:$0xff] %v1299
      %1320 = vst [vmem:[#allocation4 + $0x58] sm:$0xff] %v1300
      %1321 = vst [vmem:[#allocation4 + $0x60] sm:$0xff] %v1301
      %1322 = vst [vmem:[#allocation4 + $0x68] sm:$0xff] %v1302
      %1323 = vst [vmem:[#allocation4 + $0x70] sm:$0xff] %v1303
      %1324 = vst [vmem:[#allocation4 + $0x78] sm:$0xff] %v1304
      %1325 = vst [vmem:[#allocation4 + $0x80] sm:$0xff] %v1305
      %1326 = vst [vmem:[#allocation4 + $0x88] sm:$0xff] %v1306
      %1327 = vst [vmem:[#allocation4 + $0x90] sm:$0xff] %v1307
      %1328 = vst [vmem:[#allocation4 + $0x98] sm:$0xff] %v1308
      %s1329 = scalar_lea.vmem [#allocation2], 24
      %v1330 = vld [vmem:[%s1329] sm:$0xff]
      %v1331 = vld [vmem:[%s1329 + $0x8] sm:$0xff]
      %v1332 = vld [vmem:[%s1329 + $0x18] sm:$0xff]
      %v1333 = vld [vmem:[%s1329 + $0x20] sm:$0xff]
      %v1334 = vld [vmem:[%s1329 + $0x30] sm:$0xff]
      %v1335 = vld [vmem:[%s1329 + $0x38] sm:$0xff]
      %v1336 = vld [vmem:[%s1329 + $0x48] sm:$0xff]
      %v1337 = vld [vmem:[%s1329 + $0x50] sm:$0xff]
      %v1338 = vld [vmem:[%s1329 + $0x60] sm:$0xff]
      %v1339 = vld [vmem:[%s1329 + $0x68] sm:$0xff]
      %v1340 = vld [vmem:[%s1329 + $0x78] sm:$0xff]
      %v1341 = vld [vmem:[%s1329 + $0x80] sm:$0xff]
      %v1342 = vld [vmem:[%s1329 + $0x90] sm:$0xff]
      %v1343 = vld [vmem:[%s1329 + $0x98] sm:$0xff]
      %v1344 = vld [vmem:[%s1329 + $0xa8] sm:$0xff]
      %v1345 = vld [vmem:[%s1329 + $0xb0] sm:$0xff]
      %v1346 = vld [vmem:[%s1329 + $0xc0] sm:$0xff]
      %v1347 = vld [vmem:[%s1329 + $0xc8] sm:$0xff]
      %v1348 = vld [vmem:[%s1329 + $0xd8] sm:$0xff]
      %v1349 = vld [vmem:[%s1329 + $0xe0] sm:$0xff]
      %v1350 = vpack.c.bf16 %v1331, %v1330
      %v1351 = vpack.c.bf16 %v1333, %v1332
      %v1352 = vpack.c.bf16 %v1335, %v1334
      %v1353 = vpack.c.bf16 %v1337, %v1336
      %v1354 = vpack.c.bf16 %v1339, %v1338
      %v1355 = vpack.c.bf16 %v1341, %v1340
      %v1356 = vpack.c.bf16 %v1343, %v1342
      %v1357 = vpack.c.bf16 %v1345, %v1344
      %v1358 = vpack.c.bf16 %v1347, %v1346
      %v1359 = vpack.c.bf16 %v1349, %v1348
      %v1360 = vld [vmem:[#allocation4] sm:$0xff]
      %v1361 = vld [vmem:[#allocation4 + $0x8] sm:$0xff]
      %v1362 = vld [vmem:[#allocation4 + $0x10] sm:$0xff]
      %v1363 = vld [vmem:[#allocation4 + $0x18] sm:$0xff]
      %v1364 = vld [vmem:[#allocation4 + $0x20] sm:$0xff]
      %v1365 = vld [vmem:[#allocation4 + $0x28] sm:$0xff]
      %v1366 = vld [vmem:[#allocation4 + $0x30] sm:$0xff]
      %v1367 = vld [vmem:[#allocation4 + $0x38] sm:$0xff]
      %v1368 = vld [vmem:[#allocation4 + $0x40] sm:$0xff]
      %v1369 = vld [vmem:[#allocation4 + $0x48] sm:$0xff]
      %v1370 = vld [vmem:[#allocation4 + $0x50] sm:$0xff]
      %v1371 = vld [vmem:[#allocation4 + $0x58] sm:$0xff]
      %v1372 = vld [vmem:[#allocation4 + $0x60] sm:$0xff]
      %v1373 = vld [vmem:[#allocation4 + $0x68] sm:$0xff]
      %v1374 = vld [vmem:[#allocation4 + $0x70] sm:$0xff]
      %v1375 = vld [vmem:[#allocation4 + $0x78] sm:$0xff]
      %v1376 = vld [vmem:[#allocation4 + $0x80] sm:$0xff]
      %v1377 = vld [vmem:[#allocation4 + $0x88] sm:$0xff]
      %v1378 = vld [vmem:[#allocation4 + $0x90] sm:$0xff]
      %v1379 = vld [vmem:[#allocation4 + $0x98] sm:$0xff]
      %s1380 = scalar_lea.vmem %s3, 6
      %v1381 = vld [vmem:[%s1380] sm:$0x3]
      %v1383 = vsel %vm498, %v1350, 0
      %v1386 = vsel %vm498, %v1351, 0
      %v1389 = vsel %vm498, %v1352, 0
      %v1392 = vsel %vm498, %v1353, 0
      %v1395 = vsel %vm498, %v1354, 0
      %v1398 = vsel %vm498, %v1355, 0
      %v1401 = vsel %vm498, %v1356, 0
      %v1404 = vsel %vm498, %v1357, 0
      %v1407 = vsel %vm498, %v1358, 0
      %v1410 = vsel %vm498, %v1359, 0
      %v1413 = vsel %vm696, %v1381, 0
      %1415 = vmatprep.subr.bf16.mxu0 0
      %1416 = vmatpush1.bf16.msra.mxu0 0
      %1417 = vmatprep.subr.bf16.mxu0 0
      %1418 = vmatpush1.bf16.msra.mxu0 0
      %1419 = vmatprep.subr.bf16.mxu0 0
      %1420 = vmatpush1.bf16.msra.mxu0 0
      %1421 = vmatprep.subr.bf16.mxu0 0
      %1422 = vmatpush1.bf16.msra.mxu0 0
      %1423 = vmatprep.subr.bf16.mxu0 0
      %1424 = vmatpush1.bf16.msra.mxu0 0
      %1425 = vmatprep.subr.bf16.mxu0 0
      %1426 = vmatpush1.bf16.msra.mxu0 0
      %1427 = vmatprep.subr.bf16.mxu0 0
      %1428 = vmatpush1.bf16.msra.mxu0 0
      %1429 = vmatprep.subr.bf16.mxu0 0
      %1430 = vmatpush1.bf16.msra.mxu0 %v1413
      %1431 = vmatprep.subr.bf16.mxu0 0
      %1432 = vmatpush2.bf16.msra.mxu0 0
      %1433 = vmatprep.subr.bf16.mxu0 0
      %1434 = vmatpush2.bf16.msra.mxu0 0
      %1435 = vmatprep.subr.bf16.mxu0 0
      %1436 = vmatpush2.bf16.msra.mxu0 0
      %1437 = vmatprep.subr.bf16.mxu0 0
      %1438 = vmatpush2.bf16.msra.mxu0 0
      %1439 = vmatprep.subr.bf16.mxu0 0
      %1440 = vmatpush2.bf16.msra.mxu0 0
      %1441 = vmatprep.subr.bf16.mxu0 0
      %1442 = vmatpush2.bf16.msra.mxu0 0
      %1443 = vmatprep.subr.bf16.mxu0 0
      %1444 = vmatpush2.bf16.msra.mxu0 0
      %1445 = vmatprep.subr.bf16.mxu0 0
      %1446 = vmatpush2.bf16.msra.mxu0 0
      %1447 = vmatprep.mubr.bf16.mxu0 0
      %1448 = vmatmul.mubr.bf16.gmra.mxu0 %v1383
      %v1449 = vpop.f32.mrf.mxu0
      %v1450 = vadd.f32 0.0, %v1449
      %v1451 = vpop.f32.mrf.mxu0
      %v1452 = vpop.f32.mrf.mxu0
      %v1453 = vadd.f32 0.0, %v1452
      %v1454 = vpop.f32.mrf.mxu0
      %1455 = vmatprep.mubr.bf16.mxu0 0
      %1456 = vmatmul.mubr.bf16.gmra.mxu0 %v1386
      %v1457 = vpop.f32.mrf.mxu0
      %v1458 = vadd.f32 0.0, %v1457
      %v1459 = vpop.f32.mrf.mxu0
      %v1460 = vpop.f32.mrf.mxu0
      %v1461 = vadd.f32 0.0, %v1460
      %v1462 = vpop.f32.mrf.mxu0
      %1463 = vmatprep.mubr.bf16.mxu0 0
      %1464 = vmatmul.mubr.bf16.gmra.mxu0 %v1389
      %v1465 = vpop.f32.mrf.mxu0
      %v1466 = vadd.f32 0.0, %v1465
      %v1467 = vpop.f32.mrf.mxu0
      %v1468 = vpop.f32.mrf.mxu0
      %v1469 = vadd.f32 0.0, %v1468
      %v1470 = vpop.f32.mrf.mxu0
      %1471 = vmatprep.mubr.bf16.mxu0 0
      %1472 = vmatmul.mubr.bf16.gmra.mxu0 %v1392
      %v1473 = vpop.f32.mrf.mxu0
      %v1474 = vadd.f32 0.0, %v1473
      %v1475 = vpop.f32.mrf.mxu0
      %v1476 = vpop.f32.mrf.mxu0
      %v1477 = vadd.f32 0.0, %v1476
      %v1478 = vpop.f32.mrf.mxu0
      %1479 = vmatprep.mubr.bf16.mxu0 0
      %1480 = vmatmul.mubr.bf16.gmra.mxu0 %v1395
      %v1481 = vpop.f32.mrf.mxu0
      %v1482 = vadd.f32 0.0, %v1481
      %v1483 = vpop.f32.mrf.mxu0
      %v1484 = vpop.f32.mrf.mxu0
      %v1485 = vadd.f32 0.0, %v1484
      %v1486 = vpop.f32.mrf.mxu0
      %1487 = vmatprep.mubr.bf16.mxu0 0
      %1488 = vmatmul.mubr.bf16.gmra.mxu0 %v1398
      %v1489 = vpop.f32.mrf.mxu0
      %v1490 = vadd.f32 0.0, %v1489
      %v1491 = vpop.f32.mrf.mxu0
      %v1492 = vpop.f32.mrf.mxu0
      %v1493 = vadd.f32 0.0, %v1492
      %v1494 = vpop.f32.mrf.mxu0
      %1495 = vmatprep.mubr.bf16.mxu0 0
      %1496 = vmatmul.mubr.bf16.gmra.mxu0 %v1401
      %v1497 = vpop.f32.mrf.mxu0
      %v1498 = vadd.f32 0.0, %v1497
      %v1499 = vpop.f32.mrf.mxu0
      %v1500 = vpop.f32.mrf.mxu0
      %v1501 = vadd.f32 0.0, %v1500
      %v1502 = vpop.f32.mrf.mxu0
      %1503 = vmatprep.mubr.bf16.mxu0 0
      %1504 = vmatmul.mubr.bf16.gmra.mxu0 %v1404
      %v1505 = vpop.f32.mrf.mxu0
      %v1506 = vadd.f32 0.0, %v1505
      %v1507 = vpop.f32.mrf.mxu0
      %v1508 = vpop.f32.mrf.mxu0
      %v1509 = vadd.f32 0.0, %v1508
      %v1510 = vpop.f32.mrf.mxu0
      %1511 = vmatprep.mubr.bf16.mxu0 0
      %1512 = vmatmul.mubr.bf16.gmra.mxu0 %v1407
      %v1513 = vpop.f32.mrf.mxu0
      %v1514 = vadd.f32 0.0, %v1513
      %v1515 = vpop.f32.mrf.mxu0
      %v1516 = vpop.f32.mrf.mxu0
      %v1517 = vadd.f32 0.0, %v1516
      %v1518 = vpop.f32.mrf.mxu0
      %1519 = vmatprep.mubr.bf16.mxu0 0
      %1520 = vmatmul.mubr.bf16.gmra.mxu0 %v1410
      %v1521 = vpop.f32.mrf.mxu0
      %v1522 = vadd.f32 0.0, %v1521
      %v1523 = vpop.f32.mrf.mxu0
      %v1524 = vpop.f32.mrf.mxu0
      %v1525 = vadd.f32 0.0, %v1524
      %v1526 = vpop.f32.mrf.mxu0
      %1527 = vdwg.mxu0
      %v1528 = vadd.f32 %v1360, %v1450
      %v1529 = vadd.f32 %v1361, %v1453
      %v1530 = vadd.f32 %v1362, %v1458
      %v1531 = vadd.f32 %v1363, %v1461
      %v1532 = vadd.f32 %v1364, %v1466
      %v1533 = vadd.f32 %v1365, %v1469
      %v1534 = vadd.f32 %v1366, %v1474
      %v1535 = vadd.f32 %v1367, %v1477
      %v1536 = vadd.f32 %v1368, %v1482
      %v1537 = vadd.f32 %v1369, %v1485
      %v1538 = vadd.f32 %v1370, %v1490
      %v1539 = vadd.f32 %v1371, %v1493
      %v1540 = vadd.f32 %v1372, %v1498
      %v1541 = vadd.f32 %v1373, %v1501
      %v1542 = vadd.f32 %v1374, %v1506
      %v1543 = vadd.f32 %v1375, %v1509
      %v1544 = vadd.f32 %v1376, %v1514
      %v1545 = vadd.f32 %v1377, %v1517
      %v1546 = vadd.f32 %v1378, %v1522
      %v1547 = vadd.f32 %v1379, %v1525
      %1548 = vst [vmem:[#allocation4] sm:$0xff] %v1528
      %1549 = vst [vmem:[#allocation4 + $0x8] sm:$0xff] %v1529
      %1550 = vst [vmem:[#allocation4 + $0x10] sm:$0xff] %v1530
      %1551 = vst [vmem:[#allocation4 + $0x18] sm:$0xff] %v1531
      %1552 = vst [vmem:[#allocation4 + $0x20] sm:$0xff] %v1532
      %1553 = vst [vmem:[#allocation4 + $0x28] sm:$0xff] %v1533
      %1554 = vst [vmem:[#allocation4 + $0x30] sm:$0xff] %v1534
      %1555 = vst [vmem:[#allocation4 + $0x38] sm:$0xff] %v1535
      %1556 = vst [vmem:[#allocation4 + $0x40] sm:$0xff] %v1536
      %1557 = vst [vmem:[#allocation4 + $0x48] sm:$0xff] %v1537
      %1558 = vst [vmem:[#allocation4 + $0x50] sm:$0xff] %v1538
      %1559 = vst [vmem:[#allocation4 + $0x58] sm:$0xff] %v1539
      %1560 = vst [vmem:[#allocation4 + $0x60] sm:$0xff] %v1540
      %1561 = vst [vmem:[#allocation4 + $0x68] sm:$0xff] %v1541
      %1562 = vst [vmem:[#allocation4 + $0x70] sm:$0xff] %v1542
      %1563 = vst [vmem:[#allocation4 + $0x78] sm:$0xff] %v1543
      %1564 = vst [vmem:[#allocation4 + $0x80] sm:$0xff] %v1544
      %1565 = vst [vmem:[#allocation4 + $0x88] sm:$0xff] %v1545
      %1566 = vst [vmem:[#allocation4 + $0x90] sm:$0xff] %v1546
      %1567 = vst [vmem:[#allocation4 + $0x98] sm:$0xff] %v1547
      %v1568 = vld [vmem:[%s1329 + $0x1] sm:$0xff]
      %v1569 = vld [vmem:[%s1329 + $0x9] sm:$0xff]
      %v1570 = vld [vmem:[%s1329 + $0x19] sm:$0xff]
      %v1571 = vld [vmem:[%s1329 + $0x21] sm:$0xff]
      %v1572 = vld [vmem:[%s1329 + $0x31] sm:$0xff]
      %v1573 = vld [vmem:[%s1329 + $0x39] sm:$0xff]
      %v1574 = vld [vmem:[%s1329 + $0x49] sm:$0xff]
      %v1575 = vld [vmem:[%s1329 + $0x51] sm:$0xff]
      %v1576 = vld [vmem:[%s1329 + $0x61] sm:$0xff]
      %v1577 = vld [vmem:[%s1329 + $0x69] sm:$0xff]
      %v1578 = vld [vmem:[%s1329 + $0x79] sm:$0xff]
      %v1579 = vld [vmem:[%s1329 + $0x81] sm:$0xff]
      %v1580 = vld [vmem:[%s1329 + $0x91] sm:$0xff]
      %v1581 = vld [vmem:[%s1329 + $0x99] sm:$0xff]
      %v1582 = vld [vmem:[%s1329 + $0xa9] sm:$0xff]
      %v1583 = vld [vmem:[%s1329 + $0xb1] sm:$0xff]
      %v1584 = vld [vmem:[%s1329 + $0xc1] sm:$0xff]
      %v1585 = vld [vmem:[%s1329 + $0xc9] sm:$0xff]
      %v1586 = vld [vmem:[%s1329 + $0xd9] sm:$0xff]
      %v1587 = vld [vmem:[%s1329 + $0xe1] sm:$0xff]
      %v1588 = vpack.c.bf16 %v1569, %v1568
      %v1589 = vpack.c.bf16 %v1571, %v1570
      %v1590 = vpack.c.bf16 %v1573, %v1572
      %v1591 = vpack.c.bf16 %v1575, %v1574
      %v1592 = vpack.c.bf16 %v1577, %v1576
      %v1593 = vpack.c.bf16 %v1579, %v1578
      %v1594 = vpack.c.bf16 %v1581, %v1580
      %v1595 = vpack.c.bf16 %v1583, %v1582
      %v1596 = vpack.c.bf16 %v1585, %v1584
      %v1597 = vpack.c.bf16 %v1587, %v1586
      %v1598 = vld [vmem:[#allocation4] sm:$0xff]
      %v1599 = vld [vmem:[#allocation4 + $0x8] sm:$0xff]
      %v1600 = vld [vmem:[#allocation4 + $0x10] sm:$0xff]
      %v1601 = vld [vmem:[#allocation4 + $0x18] sm:$0xff]
      %v1602 = vld [vmem:[#allocation4 + $0x20] sm:$0xff]
      %v1603 = vld [vmem:[#allocation4 + $0x28] sm:$0xff]
      %v1604 = vld [vmem:[#allocation4 + $0x30] sm:$0xff]
      %v1605 = vld [vmem:[#allocation4 + $0x38] sm:$0xff]
      %v1606 = vld [vmem:[#allocation4 + $0x40] sm:$0xff]
      %v1607 = vld [vmem:[#allocation4 + $0x48] sm:$0xff]
      %v1608 = vld [vmem:[#allocation4 + $0x50] sm:$0xff]
      %v1609 = vld [vmem:[#allocation4 + $0x58] sm:$0xff]
      %v1610 = vld [vmem:[#allocation4 + $0x60] sm:$0xff]
      %v1611 = vld [vmem:[#allocation4 + $0x68] sm:$0xff]
      %v1612 = vld [vmem:[#allocation4 + $0x70] sm:$0xff]
      %v1613 = vld [vmem:[#allocation4 + $0x78] sm:$0xff]
      %v1614 = vld [vmem:[#allocation4 + $0x80] sm:$0xff]
      %v1615 = vld [vmem:[#allocation4 + $0x88] sm:$0xff]
      %v1616 = vld [vmem:[#allocation4 + $0x90] sm:$0xff]
      %v1617 = vld [vmem:[#allocation4 + $0x98] sm:$0xff]
      %s1618 = scalar_lea.vmem %s3, 8
      %v1619 = vld [vmem:[%s1618] sm:$0x3]
      %v1621 = vsel %vm498, %v1588, 0
      %v1624 = vsel %vm498, %v1589, 0
      %v1627 = vsel %vm498, %v1590, 0
      %v1630 = vsel %vm498, %v1591, 0
      %v1633 = vsel %vm498, %v1592, 0
      %v1636 = vsel %vm498, %v1593, 0
      %v1639 = vsel %vm498, %v1594, 0
      %v1642 = vsel %vm498, %v1595, 0
      %v1645 = vsel %vm498, %v1596, 0
      %v1648 = vsel %vm498, %v1597, 0
      %v1651 = vsel %vm696, %v1619, 0
      %1653 = vmatprep.subr.bf16.mxu0 0
      %1654 = vmatpush1.bf16.msra.mxu0 0
      %1655 = vmatprep.subr.bf16.mxu0 0
      %1656 = vmatpush1.bf16.msra.mxu0 0
      %1657 = vmatprep.subr.bf16.mxu0 0
      %1658 = vmatpush1.bf16.msra.mxu0 0
      %1659 = vmatprep.subr.bf16.mxu0 0
      %1660 = vmatpush1.bf16.msra.mxu0 0
      %1661 = vmatprep.subr.bf16.mxu0 0
      %1662 = vmatpush1.bf16.msra.mxu0 0
      %1663 = vmatprep.subr.bf16.mxu0 0
      %1664 = vmatpush1.bf16.msra.mxu0 0
      %1665 = vmatprep.subr.bf16.mxu0 0
      %1666 = vmatpush1.bf16.msra.mxu0 0
      %1667 = vmatprep.subr.bf16.mxu0 0
      %1668 = vmatpush1.bf16.msra.mxu0 %v1651
      %1669 = vmatprep.subr.bf16.mxu0 0
      %1670 = vmatpush2.bf16.msra.mxu0 0
      %1671 = vmatprep.subr.bf16.mxu0 0
      %1672 = vmatpush2.bf16.msra.mxu0 0
      %1673 = vmatprep.subr.bf16.mxu0 0
      %1674 = vmatpush2.bf16.msra.mxu0 0
      %1675 = vmatprep.subr.bf16.mxu0 0
      %1676 = vmatpush2.bf16.msra.mxu0 0
      %1677 = vmatprep.subr.bf16.mxu0 0
      %1678 = vmatpush2.bf16.msra.mxu0 0
      %1679 = vmatprep.subr.bf16.mxu0 0
      %1680 = vmatpush2.bf16.msra.mxu0 0
      %1681 = vmatprep.subr.bf16.mxu0 0
      %1682 = vmatpush2.bf16.msra.mxu0 0
      %1683 = vmatprep.subr.bf16.mxu0 0
      %1684 = vmatpush2.bf16.msra.mxu0 0
      %1685 = vmatprep.mubr.bf16.mxu0 0
      %1686 = vmatmul.mubr.bf16.gmra.mxu0 %v1621
      %v1687 = vpop.f32.mrf.mxu0
      %v1688 = vadd.f32 0.0, %v1687
      %v1689 = vpop.f32.mrf.mxu0
      %v1690 = vpop.f32.mrf.mxu0
      %v1691 = vadd.f32 0.0, %v1690
      %v1692 = vpop.f32.mrf.mxu0
      %1693 = vmatprep.mubr.bf16.mxu0 0
      %1694 = vmatmul.mubr.bf16.gmra.mxu0 %v1624
      %v1695 = vpop.f32.mrf.mxu0
      %v1696 = vadd.f32 0.0, %v1695
      %v1697 = vpop.f32.mrf.mxu0
      %v1698 = vpop.f32.mrf.mxu0
      %v1699 = vadd.f32 0.0, %v1698
      %v1700 = vpop.f32.mrf.mxu0
      %1701 = vmatprep.mubr.bf16.mxu0 0
      %1702 = vmatmul.mubr.bf16.gmra.mxu0 %v1627
      %v1703 = vpop.f32.mrf.mxu0
      %v1704 = vadd.f32 0.0, %v1703
      %v1705 = vpop.f32.mrf.mxu0
      %v1706 = vpop.f32.mrf.mxu0
      %v1707 = vadd.f32 0.0, %v1706
      %v1708 = vpop.f32.mrf.mxu0
      %1709 = vmatprep.mubr.bf16.mxu0 0
      %1710 = vmatmul.mubr.bf16.gmra.mxu0 %v1630
      %v1711 = vpop.f32.mrf.mxu0
      %v1712 = vadd.f32 0.0, %v1711
      %v1713 = vpop.f32.mrf.mxu0
      %v1714 = vpop.f32.mrf.mxu0
      %v1715 = vadd.f32 0.0, %v1714
      %v1716 = vpop.f32.mrf.mxu0
      %1717 = vmatprep.mubr.bf16.mxu0 0
      %1718 = vmatmul.mubr.bf16.gmra.mxu0 %v1633
      %v1719 = vpop.f32.mrf.mxu0
      %v1720 = vadd.f32 0.0, %v1719
      %v1721 = vpop.f32.mrf.mxu0
      %v1722 = vpop.f32.mrf.mxu0
      %v1723 = vadd.f32 0.0, %v1722
      %v1724 = vpop.f32.mrf.mxu0
      %1725 = vmatprep.mubr.bf16.mxu0 0
      %1726 = vmatmul.mubr.bf16.gmra.mxu0 %v1636
      %v1727 = vpop.f32.mrf.mxu0
      %v1728 = vadd.f32 0.0, %v1727
      %v1729 = vpop.f32.mrf.mxu0
      %v1730 = vpop.f32.mrf.mxu0
      %v1731 = vadd.f32 0.0, %v1730
      %v1732 = vpop.f32.mrf.mxu0
      %1733 = vmatprep.mubr.bf16.mxu0 0
      %1734 = vmatmul.mubr.bf16.gmra.mxu0 %v1639
      %v1735 = vpop.f32.mrf.mxu0
      %v1736 = vadd.f32 0.0, %v1735
      %v1737 = vpop.f32.mrf.mxu0
      %v1738 = vpop.f32.mrf.mxu0
      %v1739 = vadd.f32 0.0, %v1738
      %v1740 = vpop.f32.mrf.mxu0
      %1741 = vmatprep.mubr.bf16.mxu0 0
      %1742 = vmatmul.mubr.bf16.gmra.mxu0 %v1642
      %v1743 = vpop.f32.mrf.mxu0
      %v1744 = vadd.f32 0.0, %v1743
      %v1745 = vpop.f32.mrf.mxu0
      %v1746 = vpop.f32.mrf.mxu0
      %v1747 = vadd.f32 0.0, %v1746
      %v1748 = vpop.f32.mrf.mxu0
      %1749 = vmatprep.mubr.bf16.mxu0 0
      %1750 = vmatmul.mubr.bf16.gmra.mxu0 %v1645
      %v1751 = vpop.f32.mrf.mxu0
      %v1752 = vadd.f32 0.0, %v1751
      %v1753 = vpop.f32.mrf.mxu0
      %v1754 = vpop.f32.mrf.mxu0
      %v1755 = vadd.f32 0.0, %v1754
      %v1756 = vpop.f32.mrf.mxu0
      %1757 = vmatprep.mubr.bf16.mxu0 0
      %1758 = vmatmul.mubr.bf16.gmra.mxu0 %v1648
      %v1759 = vpop.f32.mrf.mxu0
      %v1760 = vadd.f32 0.0, %v1759
      %v1761 = vpop.f32.mrf.mxu0
      %v1762 = vpop.f32.mrf.mxu0
      %v1763 = vadd.f32 0.0, %v1762
      %v1764 = vpop.f32.mrf.mxu0
      %1765 = vdwg.mxu0
      %v1766 = vadd.f32 %v1598, %v1688
      %v1767 = vadd.f32 %v1599, %v1691
      %v1768 = vadd.f32 %v1600, %v1696
      %v1769 = vadd.f32 %v1601, %v1699
      %v1770 = vadd.f32 %v1602, %v1704
      %v1771 = vadd.f32 %v1603, %v1707
      %v1772 = vadd.f32 %v1604, %v1712
      %v1773 = vadd.f32 %v1605, %v1715
      %v1774 = vadd.f32 %v1606, %v1720
      %v1775 = vadd.f32 %v1607, %v1723
      %v1776 = vadd.f32 %v1608, %v1728
      %v1777 = vadd.f32 %v1609, %v1731
      %v1778 = vadd.f32 %v1610, %v1736
      %v1779 = vadd.f32 %v1611, %v1739
      %v1780 = vadd.f32 %v1612, %v1744
      %v1781 = vadd.f32 %v1613, %v1747
      %v1782 = vadd.f32 %v1614, %v1752
      %v1783 = vadd.f32 %v1615, %v1755
      %v1784 = vadd.f32 %v1616, %v1760
      %v1785 = vadd.f32 %v1617, %v1763
      %1786 = vst [vmem:[#allocation4] sm:$0xff] %v1766
      %1787 = vst [vmem:[#allocation4 + $0x8] sm:$0xff] %v1767
      %1788 = vst [vmem:[#allocation4 + $0x10] sm:$0xff] %v1768
      %1789 = vst [vmem:[#allocation4 + $0x18] sm:$0xff] %v1769
      %1790 = vst [vmem:[#allocation4 + $0x20] sm:$0xff] %v1770
      %1791 = vst [vmem:[#allocation4 + $0x28] sm:$0xff] %v1771
      %1792 = vst [vmem:[#allocation4 + $0x30] sm:$0xff] %v1772
      %1793 = vst [vmem:[#allocation4 + $0x38] sm:$0xff] %v1773
      %1794 = vst [vmem:[#allocation4 + $0x40] sm:$0xff] %v1774
      %1795 = vst [vmem:[#allocation4 + $0x48] sm:$0xff] %v1775
      %1796 = vst [vmem:[#allocation4 + $0x50] sm:$0xff] %v1776
      %1797 = vst [vmem:[#allocation4 + $0x58] sm:$0xff] %v1777
      %1798 = vst [vmem:[#allocation4 + $0x60] sm:$0xff] %v1778
      %1799 = vst [vmem:[#allocation4 + $0x68] sm:$0xff] %v1779
      %1800 = vst [vmem:[#allocation4 + $0x70] sm:$0xff] %v1780
      %1801 = vst [vmem:[#allocation4 + $0x78] sm:$0xff] %v1781
      %1802 = vst [vmem:[#allocation4 + $0x80] sm:$0xff] %v1782
      %1803 = vst [vmem:[#allocation4 + $0x88] sm:$0xff] %v1783
      %1804 = vst [vmem:[#allocation4 + $0x90] sm:$0xff] %v1784
      %1805 = vst [vmem:[#allocation4 + $0x98] sm:$0xff] %v1785
      %v1806 = vld [vmem:[%s1329 + $0x2] sm:$0xff]
      %v1807 = vld [vmem:[%s1329 + $0xa] sm:$0xff]
      %v1808 = vld [vmem:[%s1329 + $0x1a] sm:$0xff]
      %v1809 = vld [vmem:[%s1329 + $0x22] sm:$0xff]
      %v1810 = vld [vmem:[%s1329 + $0x32] sm:$0xff]
      %v1811 = vld [vmem:[%s1329 + $0x3a] sm:$0xff]
      %v1812 = vld [vmem:[%s1329 + $0x4a] sm:$0xff]
      %v1813 = vld [vmem:[%s1329 + $0x52] sm:$0xff]
      %v1814 = vld [vmem:[%s1329 + $0x62] sm:$0xff]
      %v1815 = vld [vmem:[%s1329 + $0x6a] sm:$0xff]
      %v1816 = vld [vmem:[%s1329 + $0x7a] sm:$0xff]
      %v1817 = vld [vmem:[%s1329 + $0x82] sm:$0xff]
      %v1818 = vld [vmem:[%s1329 + $0x92] sm:$0xff]
      %v1819 = vld [vmem:[%s1329 + $0x9a] sm:$0xff]
      %v1820 = vld [vmem:[%s1329 + $0xaa] sm:$0xff]
      %v1821 = vld [vmem:[%s1329 + $0xb2] sm:$0xff]
      %v1822 = vld [vmem:[%s1329 + $0xc2] sm:$0xff]
      %v1823 = vld [vmem:[%s1329 + $0xca] sm:$0xff]
      %v1824 = vld [vmem:[%s1329 + $0xda] sm:$0xff]
      %v1825 = vld [vmem:[%s1329 + $0xe2] sm:$0xff]
      %v1826 = vpack.c.bf16 %v1807, %v1806
      %v1827 = vpack.c.bf16 %v1809, %v1808
      %v1828 = vpack.c.bf16 %v1811, %v1810
      %v1829 = vpack.c.bf16 %v1813, %v1812
      %v1830 = vpack.c.bf16 %v1815, %v1814
      %v1831 = vpack.c.bf16 %v1817, %v1816
      %v1832 = vpack.c.bf16 %v1819, %v1818
      %v1833 = vpack.c.bf16 %v1821, %v1820
      %v1834 = vpack.c.bf16 %v1823, %v1822
      %v1835 = vpack.c.bf16 %v1825, %v1824
      %v1836 = vld [vmem:[#allocation4] sm:$0xff]
      %v1837 = vld [vmem:[#allocation4 + $0x8] sm:$0xff]
      %v1838 = vld [vmem:[#allocation4 + $0x10] sm:$0xff]
      %v1839 = vld [vmem:[#allocation4 + $0x18] sm:$0xff]
      %v1840 = vld [vmem:[#allocation4 + $0x20] sm:$0xff]
      %v1841 = vld [vmem:[#allocation4 + $0x28] sm:$0xff]
      %v1842 = vld [vmem:[#allocation4 + $0x30] sm:$0xff]
      %v1843 = vld [vmem:[#allocation4 + $0x38] sm:$0xff]
      %v1844 = vld [vmem:[#allocation4 + $0x40] sm:$0xff]
      %v1845 = vld [vmem:[#allocation4 + $0x48] sm:$0xff]
      %v1846 = vld [vmem:[#allocation4 + $0x50] sm:$0xff]
      %v1847 = vld [vmem:[#allocation4 + $0x58] sm:$0xff]
      %v1848 = vld [vmem:[#allocation4 + $0x60] sm:$0xff]
      %v1849 = vld [vmem:[#allocation4 + $0x68] sm:$0xff]
      %v1850 = vld [vmem:[#allocation4 + $0x70] sm:$0xff]
      %v1851 = vld [vmem:[#allocation4 + $0x78] sm:$0xff]
      %v1852 = vld [vmem:[#allocation4 + $0x80] sm:$0xff]
      %v1853 = vld [vmem:[#allocation4 + $0x88] sm:$0xff]
      %v1854 = vld [vmem:[#allocation4 + $0x90] sm:$0xff]
      %v1855 = vld [vmem:[#allocation4 + $0x98] sm:$0xff]
      %s1856 = scalar_lea.vmem %s3, 10
      %v1857 = vld [vmem:[%s1856] sm:$0x3]
      %v1859 = vsel %vm498, %v1826, 0
      %v1862 = vsel %vm498, %v1827, 0
      %v1865 = vsel %vm498, %v1828, 0
      %v1868 = vsel %vm498, %v1829, 0
      %v1871 = vsel %vm498, %v1830, 0
      %v1874 = vsel %vm498, %v1831, 0
      %v1877 = vsel %vm498, %v1832, 0
      %v1880 = vsel %vm498, %v1833, 0
      %v1883 = vsel %vm498, %v1834, 0
      %v1886 = vsel %vm498, %v1835, 0
      %v1889 = vsel %vm696, %v1857, 0
      %1891 = vmatprep.subr.bf16.mxu0 0
      %1892 = vmatpush1.bf16.msra.mxu0 0
      %1893 = vmatprep.subr.bf16.mxu0 0
      %1894 = vmatpush1.bf16.msra.mxu0 0
      %1895 = vmatprep.subr.bf16.mxu0 0
      %1896 = vmatpush1.bf16.msra.mxu0 0
      %1897 = vmatprep.subr.bf16.mxu0 0
      %1898 = vmatpush1.bf16.msra.mxu0 0
      %1899 = vmatprep.subr.bf16.mxu0 0
      %1900 = vmatpush1.bf16.msra.mxu0 0
      %1901 = vmatprep.subr.bf16.mxu0 0
      %1902 = vmatpush1.bf16.msra.mxu0 0
      %1903 = vmatprep.subr.bf16.mxu0 0
      %1904 = vmatpush1.bf16.msra.mxu0 0
      %1905 = vmatprep.subr.bf16.mxu0 0
      %1906 = vmatpush1.bf16.msra.mxu0 %v1889
      %1907 = vmatprep.subr.bf16.mxu0 0
      %1908 = vmatpush2.bf16.msra.mxu0 0
      %1909 = vmatprep.subr.bf16.mxu0 0
      %1910 = vmatpush2.bf16.msra.mxu0 0
      %1911 = vmatprep.subr.bf16.mxu0 0
      %1912 = vmatpush2.bf16.msra.mxu0 0
      %1913 = vmatprep.subr.bf16.mxu0 0
      %1914 = vmatpush2.bf16.msra.mxu0 0
      %1915 = vmatprep.subr.bf16.mxu0 0
      %1916 = vmatpush2.bf16.msra.mxu0 0
      %1917 = vmatprep.subr.bf16.mxu0 0
      %1918 = vmatpush2.bf16.msra.mxu0 0
      %1919 = vmatprep.subr.bf16.mxu0 0
      %1920 = vmatpush2.bf16.msra.mxu0 0
      %1921 = vmatprep.subr.bf16.mxu0 0
      %1922 = vmatpush2.bf16.msra.mxu0 0
      %1923 = vmatprep.mubr.bf16.mxu0 0
      %1924 = vmatmul.mubr.bf16.gmra.mxu0 %v1859
      %v1925 = vpop.f32.mrf.mxu0
      %v1926 = vadd.f32 0.0, %v1925
      %v1927 = vpop.f32.mrf.mxu0
      %v1928 = vpop.f32.mrf.mxu0
      %v1929 = vadd.f32 0.0, %v1928
      %v1930 = vpop.f32.mrf.mxu0
      %1931 = vmatprep.mubr.bf16.mxu0 0
      %1932 = vmatmul.mubr.bf16.gmra.mxu0 %v1862
      %v1933 = vpop.f32.mrf.mxu0
      %v1934 = vadd.f32 0.0, %v1933
      %v1935 = vpop.f32.mrf.mxu0
      %v1936 = vpop.f32.mrf.mxu0
      %v1937 = vadd.f32 0.0, %v1936
      %v1938 = vpop.f32.mrf.mxu0
      %1939 = vmatprep.mubr.bf16.mxu0 0
      %1940 = vmatmul.mubr.bf16.gmra.mxu0 %v1865
      %v1941 = vpop.f32.mrf.mxu0
      %v1942 = vadd.f32 0.0, %v1941
      %v1943 = vpop.f32.mrf.mxu0
      %v1944 = vpop.f32.mrf.mxu0
      %v1945 = vadd.f32 0.0, %v1944
      %v1946 = vpop.f32.mrf.mxu0
      %1947 = vmatprep.mubr.bf16.mxu0 0
      %1948 = vmatmul.mubr.bf16.gmra.mxu0 %v1868
      %v1949 = vpop.f32.mrf.mxu0
      %v1950 = vadd.f32 0.0, %v1949
      %v1951 = vpop.f32.mrf.mxu0
      %v1952 = vpop.f32.mrf.mxu0
      %v1953 = vadd.f32 0.0, %v1952
      %v1954 = vpop.f32.mrf.mxu0
      %1955 = vmatprep.mubr.bf16.mxu0 0
      %1956 = vmatmul.mubr.bf16.gmra.mxu0 %v1871
      %v1957 = vpop.f32.mrf.mxu0
      %v1958 = vadd.f32 0.0, %v1957
      %v1959 = vpop.f32.mrf.mxu0
      %v1960 = vpop.f32.mrf.mxu0
      %v1961 = vadd.f32 0.0, %v1960
      %v1962 = vpop.f32.mrf.mxu0
      %1963 = vmatprep.mubr.bf16.mxu0 0
      %1964 = vmatmul.mubr.bf16.gmra.mxu0 %v1874
      %v1965 = vpop.f32.mrf.mxu0
      %v1966 = vadd.f32 0.0, %v1965
      %v1967 = vpop.f32.mrf.mxu0
      %v1968 = vpop.f32.mrf.mxu0
      %v1969 = vadd.f32 0.0, %v1968
      %v1970 = vpop.f32.mrf.mxu0
      %1971 = vmatprep.mubr.bf16.mxu0 0
      %1972 = vmatmul.mubr.bf16.gmra.mxu0 %v1877
      %v1973 = vpop.f32.mrf.mxu0
      %v1974 = vadd.f32 0.0, %v1973
      %v1975 = vpop.f32.mrf.mxu0
      %v1976 = vpop.f32.mrf.mxu0
      %v1977 = vadd.f32 0.0, %v1976
      %v1978 = vpop.f32.mrf.mxu0
      %1979 = vmatprep.mubr.bf16.mxu0 0
      %1980 = vmatmul.mubr.bf16.gmra.mxu0 %v1880
      %v1981 = vpop.f32.mrf.mxu0
      %v1982 = vadd.f32 0.0, %v1981
      %v1983 = vpop.f32.mrf.mxu0
      %v1984 = vpop.f32.mrf.mxu0
      %v1985 = vadd.f32 0.0, %v1984
      %v1986 = vpop.f32.mrf.mxu0
      %1987 = vmatprep.mubr.bf16.mxu0 0
      %1988 = vmatmul.mubr.bf16.gmra.mxu0 %v1883
      %v1989 = vpop.f32.mrf.mxu0
      %v1990 = vadd.f32 0.0, %v1989
      %v1991 = vpop.f32.mrf.mxu0
      %v1992 = vpop.f32.mrf.mxu0
      %v1993 = vadd.f32 0.0, %v1992
      %v1994 = vpop.f32.mrf.mxu0
      %1995 = vmatprep.mubr.bf16.mxu0 0
      %1996 = vmatmul.mubr.bf16.gmra.mxu0 %v1886
      %v1997 = vpop.f32.mrf.mxu0
      %v1998 = vadd.f32 0.0, %v1997
      %v1999 = vpop.f32.mrf.mxu0
      %v2000 = vpop.f32.mrf.mxu0
      %v2001 = vadd.f32 0.0, %v2000
      %v2002 = vpop.f32.mrf.mxu0
      %2003 = vdwg.mxu0
      %v2004 = vadd.f32 %v1836, %v1926
      %v2005 = vadd.f32 %v1837, %v1929
      %v2006 = vadd.f32 %v1838, %v1934
      %v2007 = vadd.f32 %v1839, %v1937
      %v2008 = vadd.f32 %v1840, %v1942
      %v2009 = vadd.f32 %v1841, %v1945
      %v2010 = vadd.f32 %v1842, %v1950
      %v2011 = vadd.f32 %v1843, %v1953
      %v2012 = vadd.f32 %v1844, %v1958
      %v2013 = vadd.f32 %v1845, %v1961
      %v2014 = vadd.f32 %v1846, %v1966
      %v2015 = vadd.f32 %v1847, %v1969
      %v2016 = vadd.f32 %v1848, %v1974
      %v2017 = vadd.f32 %v1849, %v1977
      %v2018 = vadd.f32 %v1850, %v1982
      %v2019 = vadd.f32 %v1851, %v1985
      %v2020 = vadd.f32 %v1852, %v1990
      %v2021 = vadd.f32 %v1853, %v1993
      %v2022 = vadd.f32 %v1854, %v1998
      %v2023 = vadd.f32 %v1855, %v2001
      %2024 = vst [vmem:[#allocation4] sm:$0xff] %v2004
      %2025 = vst [vmem:[#allocation4 + $0x8] sm:$0xff] %v2005
      %2026 = vst [vmem:[#allocation4 + $0x10] sm:$0xff] %v2006
      %2027 = vst [vmem:[#allocation4 + $0x18] sm:$0xff] %v2007
      %2028 = vst [vmem:[#allocation4 + $0x20] sm:$0xff] %v2008
      %2029 = vst [vmem:[#allocation4 + $0x28] sm:$0xff] %v2009
      %2030 = vst [vmem:[#allocation4 + $0x30] sm:$0xff] %v2010
      %2031 = vst [vmem:[#allocation4 + $0x38] sm:$0xff] %v2011
      %2032 = vst [vmem:[#allocation4 + $0x40] sm:$0xff] %v2012
      %2033 = vst [vmem:[#allocation4 + $0x48] sm:$0xff] %v2013
      %2034 = vst [vmem:[#allocation4 + $0x50] sm:$0xff] %v2014
      %2035 = vst [vmem:[#allocation4 + $0x58] sm:$0xff] %v2015
      %2036 = vst [vmem:[#allocation4 + $0x60] sm:$0xff] %v2016
      %2037 = vst [vmem:[#allocation4 + $0x68] sm:$0xff] %v2017
      %2038 = vst [vmem:[#allocation4 + $0x70] sm:$0xff] %v2018
      %2039 = vst [vmem:[#allocation4 + $0x78] sm:$0xff] %v2019
      %2040 = vst [vmem:[#allocation4 + $0x80] sm:$0xff] %v2020
      %2041 = vst [vmem:[#allocation4 + $0x88] sm:$0xff] %v2021
      %2042 = vst [vmem:[#allocation4 + $0x90] sm:$0xff] %v2022
      %2043 = vst [vmem:[#allocation4 + $0x98] sm:$0xff] %v2023
      %v2044 = vld [vmem:[%s552] sm:$0xff]
      %v2045 = vld [vmem:[%s552 + $0x8] sm:$0xff]
      %v2046 = vld [vmem:[%s552 + $0x18] sm:$0xff]
      %v2047 = vld [vmem:[%s552 + $0x20] sm:$0xff]
      %v2048 = vld [vmem:[%s552 + $0x30] sm:$0xff]
      %v2049 = vld [vmem:[%s552 + $0x38] sm:$0xff]
      %v2050 = vld [vmem:[%s552 + $0x48] sm:$0xff]
      %v2051 = vld [vmem:[%s552 + $0x50] sm:$0xff]
      %v2052 = vld [vmem:[%s552 + $0x60] sm:$0xff]
      %v2053 = vld [vmem:[%s552 + $0x68] sm:$0xff]
      %v2054 = vld [vmem:[%s552 + $0x78] sm:$0xff]
      %v2055 = vld [vmem:[%s552 + $0x80] sm:$0xff]
      %v2056 = vld [vmem:[%s552 + $0x90] sm:$0xff]
      %v2057 = vld [vmem:[%s552 + $0x98] sm:$0xff]
      %v2058 = vld [vmem:[%s552 + $0xa8] sm:$0xff]
      %v2059 = vld [vmem:[%s552 + $0xb0] sm:$0xff]
      %v2060 = vld [vmem:[%s552 + $0xc0] sm:$0xff]
      %v2061 = vld [vmem:[%s552 + $0xc8] sm:$0xff]
      %v2062 = vld [vmem:[%s552 + $0xd8] sm:$0xff]
      %v2063 = vld [vmem:[%s552 + $0xe0] sm:$0xff]
      %v2064 = vpack.c.bf16 %v2045, %v2044
      %v2065 = vpack.c.bf16 %v2047, %v2046
      %v2066 = vpack.c.bf16 %v2049, %v2048
      %v2067 = vpack.c.bf16 %v2051, %v2050
      %v2068 = vpack.c.bf16 %v2053, %v2052
      %v2069 = vpack.c.bf16 %v2055, %v2054
      %v2070 = vpack.c.bf16 %v2057, %v2056
      %v2071 = vpack.c.bf16 %v2059, %v2058
      %v2072 = vpack.c.bf16 %v2061, %v2060
      %v2073 = vpack.c.bf16 %v2063, %v2062
      %v2074 = vld [vmem:[#allocation4] sm:$0xff]
      %v2075 = vld [vmem:[#allocation4 + $0x8] sm:$0xff]
      %v2076 = vld [vmem:[#allocation4 + $0x10] sm:$0xff]
      %v2077 = vld [vmem:[#allocation4 + $0x18] sm:$0xff]
      %v2078 = vld [vmem:[#allocation4 + $0x20] sm:$0xff]
      %v2079 = vld [vmem:[#allocation4 + $0x28] sm:$0xff]
      %v2080 = vld [vmem:[#allocation4 + $0x30] sm:$0xff]
      %v2081 = vld [vmem:[#allocation4 + $0x38] sm:$0xff]
      %v2082 = vld [vmem:[#allocation4 + $0x40] sm:$0xff]
      %v2083 = vld [vmem:[#allocation4 + $0x48] sm:$0xff]
      %v2084 = vld [vmem:[#allocation4 + $0x50] sm:$0xff]
      %v2085 = vld [vmem:[#allocation4 + $0x58] sm:$0xff]
      %v2086 = vld [vmem:[#allocation4 + $0x60] sm:$0xff]
      %v2087 = vld [vmem:[#allocation4 + $0x68] sm:$0xff]
      %v2088 = vld [vmem:[#allocation4 + $0x70] sm:$0xff]
      %v2089 = vld [vmem:[#allocation4 + $0x78] sm:$0xff]
      %v2090 = vld [vmem:[#allocation4 + $0x80] sm:$0xff]
      %v2091 = vld [vmem:[#allocation4 + $0x88] sm:$0xff]
      %v2092 = vld [vmem:[#allocation4 + $0x90] sm:$0xff]
      %v2093 = vld [vmem:[#allocation4 + $0x98] sm:$0xff]
      %s2094 = scalar_lea.vmem %s3, 12
      %v2095 = vld [vmem:[%s2094] sm:$0x3]
      %v2097 = vsel %vm498, %v2064, 0
      %v2100 = vsel %vm498, %v2065, 0
      %v2103 = vsel %vm498, %v2066, 0
      %v2106 = vsel %vm498, %v2067, 0
      %v2109 = vsel %vm498, %v2068, 0
      %v2112 = vsel %vm498, %v2069, 0
      %v2115 = vsel %vm498, %v2070, 0
      %v2118 = vsel %vm498, %v2071, 0
      %v2121 = vsel %vm498, %v2072, 0
      %v2124 = vsel %vm498, %v2073, 0
      %v2127 = vsel %vm696, %v2095, 0
      %2129 = vmatprep.subr.bf16.mxu0 0
      %2130 = vmatpush1.bf16.msra.mxu0 0
      %2131 = vmatprep.subr.bf16.mxu0 0
      %2132 = vmatpush1.bf16.msra.mxu0 0
      %2133 = vmatprep.subr.bf16.mxu0 0
      %2134 = vmatpush1.bf16.msra.mxu0 0
      %2135 = vmatprep.subr.bf16.mxu0 0
      %2136 = vmatpush1.bf16.msra.mxu0 0
      %2137 = vmatprep.subr.bf16.mxu0 0
      %2138 = vmatpush1.bf16.msra.mxu0 0
      %2139 = vmatprep.subr.bf16.mxu0 0
      %2140 = vmatpush1.bf16.msra.mxu0 0
      %2141 = vmatprep.subr.bf16.mxu0 0
      %2142 = vmatpush1.bf16.msra.mxu0 0
      %2143 = vmatprep.subr.bf16.mxu0 0
      %2144 = vmatpush1.bf16.msra.mxu0 %v2127
      %2145 = vmatprep.subr.bf16.mxu0 0
      %2146 = vmatpush2.bf16.msra.mxu0 0
      %2147 = vmatprep.subr.bf16.mxu0 0
      %2148 = vmatpush2.bf16.msra.mxu0 0
      %2149 = vmatprep.subr.bf16.mxu0 0
      %2150 = vmatpush2.bf16.msra.mxu0 0
      %2151 = vmatprep.subr.bf16.mxu0 0
      %2152 = vmatpush2.bf16.msra.mxu0 0
      %2153 = vmatprep.subr.bf16.mxu0 0
      %2154 = vmatpush2.bf16.msra.mxu0 0
      %2155 = vmatprep.subr.bf16.mxu0 0
      %2156 = vmatpush2.bf16.msra.mxu0 0
      %2157 = vmatprep.subr.bf16.mxu0 0
      %2158 = vmatpush2.bf16.msra.mxu0 0
      %2159 = vmatprep.subr.bf16.mxu0 0
      %2160 = vmatpush2.bf16.msra.mxu0 0
      %2161 = vmatprep.mubr.bf16.mxu0 0
      %2162 = vmatmul.mubr.bf16.gmra.mxu0 %v2097
      %v2163 = vpop.f32.mrf.mxu0
      %v2164 = vadd.f32 0.0, %v2163
      %v2165 = vpop.f32.mrf.mxu0
      %v2166 = vpop.f32.mrf.mxu0
      %v2167 = vadd.f32 0.0, %v2166
      %v2168 = vpop.f32.mrf.mxu0
      %2169 = vmatprep.mubr.bf16.mxu0 0
      %2170 = vmatmul.mubr.bf16.gmra.mxu0 %v2100
      %v2171 = vpop.f32.mrf.mxu0
      %v2172 = vadd.f32 0.0, %v2171
      %v2173 = vpop.f32.mrf.mxu0
      %v2174 = vpop.f32.mrf.mxu0
      %v2175 = vadd.f32 0.0, %v2174
      %v2176 = vpop.f32.mrf.mxu0
      %2177 = vmatprep.mubr.bf16.mxu0 0
      %2178 = vmatmul.mubr.bf16.gmra.mxu0 %v2103
      %v2179 = vpop.f32.mrf.mxu0
      %v2180 = vadd.f32 0.0, %v2179
      %v2181 = vpop.f32.mrf.mxu0
      %v2182 = vpop.f32.mrf.mxu0
      %v2183 = vadd.f32 0.0, %v2182
      %v2184 = vpop.f32.mrf.mxu0
      %2185 = vmatprep.mubr.bf16.mxu0 0
      %2186 = vmatmul.mubr.bf16.gmra.mxu0 %v2106
      %v2187 = vpop.f32.mrf.mxu0
      %v2188 = vadd.f32 0.0, %v2187
      %v2189 = vpop.f32.mrf.mxu0
      %v2190 = vpop.f32.mrf.mxu0
      %v2191 = vadd.f32 0.0, %v2190
      %v2192 = vpop.f32.mrf.mxu0
      %2193 = vmatprep.mubr.bf16.mxu0 0
      %2194 = vmatmul.mubr.bf16.gmra.mxu0 %v2109
      %v2195 = vpop.f32.mrf.mxu0
      %v2196 = vadd.f32 0.0, %v2195
      %v2197 = vpop.f32.mrf.mxu0
      %v2198 = vpop.f32.mrf.mxu0
      %v2199 = vadd.f32 0.0, %v2198
      %v2200 = vpop.f32.mrf.mxu0
      %2201 = vmatprep.mubr.bf16.mxu0 0
      %2202 = vmatmul.mubr.bf16.gmra.mxu0 %v2112
      %v2203 = vpop.f32.mrf.mxu0
      %v2204 = vadd.f32 0.0, %v2203
      %v2205 = vpop.f32.mrf.mxu0
      %v2206 = vpop.f32.mrf.mxu0
      %v2207 = vadd.f32 0.0, %v2206
      %v2208 = vpop.f32.mrf.mxu0
      %2209 = vmatprep.mubr.bf16.mxu0 0
      %2210 = vmatmul.mubr.bf16.gmra.mxu0 %v2115
      %v2211 = vpop.f32.mrf.mxu0
      %v2212 = vadd.f32 0.0, %v2211
      %v2213 = vpop.f32.mrf.mxu0
      %v2214 = vpop.f32.mrf.mxu0
      %v2215 = vadd.f32 0.0, %v2214
      %v2216 = vpop.f32.mrf.mxu0
      %2217 = vmatprep.mubr.bf16.mxu0 0
      %2218 = vmatmul.mubr.bf16.gmra.mxu0 %v2118
      %v2219 = vpop.f32.mrf.mxu0
      %v2220 = vadd.f32 0.0, %v2219
      %v2221 = vpop.f32.mrf.mxu0
      %v2222 = vpop.f32.mrf.mxu0
      %v2223 = vadd.f32 0.0, %v2222
      %v2224 = vpop.f32.mrf.mxu0
      %2225 = vmatprep.mubr.bf16.mxu0 0
      %2226 = vmatmul.mubr.bf16.gmra.mxu0 %v2121
      %v2227 = vpop.f32.mrf.mxu0
      %v2228 = vadd.f32 0.0, %v2227
      %v2229 = vpop.f32.mrf.mxu0
      %v2230 = vpop.f32.mrf.mxu0
      %v2231 = vadd.f32 0.0, %v2230
      %v2232 = vpop.f32.mrf.mxu0
      %2233 = vmatprep.mubr.bf16.mxu0 0
      %2234 = vmatmul.mubr.bf16.gmra.mxu0 %v2124
      %v2235 = vpop.f32.mrf.mxu0
      %v2236 = vadd.f32 0.0, %v2235
      %v2237 = vpop.f32.mrf.mxu0
      %v2238 = vpop.f32.mrf.mxu0
      %v2239 = vadd.f32 0.0, %v2238
      %v2240 = vpop.f32.mrf.mxu0
      %2241 = vdwg.mxu0
      %v2242 = vadd.f32 %v2074, %v2164
      %v2243 = vadd.f32 %v2075, %v2167
      %v2244 = vadd.f32 %v2076, %v2172
      %v2245 = vadd.f32 %v2077, %v2175
      %v2246 = vadd.f32 %v2078, %v2180
      %v2247 = vadd.f32 %v2079, %v2183
      %v2248 = vadd.f32 %v2080, %v2188
      %v2249 = vadd.f32 %v2081, %v2191
      %v2250 = vadd.f32 %v2082, %v2196
      %v2251 = vadd.f32 %v2083, %v2199
      %v2252 = vadd.f32 %v2084, %v2204
      %v2253 = vadd.f32 %v2085, %v2207
      %v2254 = vadd.f32 %v2086, %v2212
      %v2255 = vadd.f32 %v2087, %v2215
      %v2256 = vadd.f32 %v2088, %v2220
      %v2257 = vadd.f32 %v2089, %v2223
      %v2258 = vadd.f32 %v2090, %v2228
      %v2259 = vadd.f32 %v2091, %v2231
      %v2260 = vadd.f32 %v2092, %v2236
      %v2261 = vadd.f32 %v2093, %v2239
      %2262 = vst [vmem:[#allocation4] sm:$0xff] %v2242
      %2263 = vst [vmem:[#allocation4 + $0x8] sm:$0xff] %v2243
      %2264 = vst [vmem:[#allocation4 + $0x10] sm:$0xff] %v2244
      %2265 = vst [vmem:[#allocation4 + $0x18] sm:$0xff] %v2245
      %2266 = vst [vmem:[#allocation4 + $0x20] sm:$0xff] %v2246
      %2267 = vst [vmem:[#allocation4 + $0x28] sm:$0xff] %v2247
      %2268 = vst [vmem:[#allocation4 + $0x30] sm:$0xff] %v2248
      %2269 = vst [vmem:[#allocation4 + $0x38] sm:$0xff] %v2249
      %2270 = vst [vmem:[#allocation4 + $0x40] sm:$0xff] %v2250
      %2271 = vst [vmem:[#allocation4 + $0x48] sm:$0xff] %v2251
      %2272 = vst [vmem:[#allocation4 + $0x50] sm:$0xff] %v2252
      %2273 = vst [vmem:[#allocation4 + $0x58] sm:$0xff] %v2253
      %2274 = vst [vmem:[#allocation4 + $0x60] sm:$0xff] %v2254
      %2275 = vst [vmem:[#allocation4 + $0x68] sm:$0xff] %v2255
      %2276 = vst [vmem:[#allocation4 + $0x70] sm:$0xff] %v2256
      %2277 = vst [vmem:[#allocation4 + $0x78] sm:$0xff] %v2257
      %2278 = vst [vmem:[#allocation4 + $0x80] sm:$0xff] %v2258
      %2279 = vst [vmem:[#allocation4 + $0x88] sm:$0xff] %v2259
      %2280 = vst [vmem:[#allocation4 + $0x90] sm:$0xff] %v2260
      %2281 = vst [vmem:[#allocation4 + $0x98] sm:$0xff] %v2261
      %v2282 = vld [vmem:[%s552 + $0x1] sm:$0xff]
      %v2283 = vld [vmem:[%s552 + $0x9] sm:$0xff]
      %v2284 = vld [vmem:[%s552 + $0x19] sm:$0xff]
      %v2285 = vld [vmem:[%s552 + $0x21] sm:$0xff]
      %v2286 = vld [vmem:[%s552 + $0x31] sm:$0xff]
      %v2287 = vld [vmem:[%s552 + $0x39] sm:$0xff]
      %v2288 = vld [vmem:[%s552 + $0x49] sm:$0xff]
      %v2289 = vld [vmem:[%s552 + $0x51] sm:$0xff]
      %v2290 = vld [vmem:[%s552 + $0x61] sm:$0xff]
      %v2291 = vld [vmem:[%s552 + $0x69] sm:$0xff]
      %v2292 = vld [vmem:[%s552 + $0x79] sm:$0xff]
      %v2293 = vld [vmem:[%s552 + $0x81] sm:$0xff]
      %v2294 = vld [vmem:[%s552 + $0x91] sm:$0xff]
      %v2295 = vld [vmem:[%s552 + $0x99] sm:$0xff]
      %v2296 = vld [vmem:[%s552 + $0xa9] sm:$0xff]
      %v2297 = vld [vmem:[%s552 + $0xb1] sm:$0xff]
      %v2298 = vld [vmem:[%s552 + $0xc1] sm:$0xff]
      %v2299 = vld [vmem:[%s552 + $0xc9] sm:$0xff]
      %v2300 = vld [vmem:[%s552 + $0xd9] sm:$0xff]
      %v2301 = vld [vmem:[%s552 + $0xe1] sm:$0xff]
      %v2302 = vpack.c.bf16 %v2283, %v2282
      %v2303 = vpack.c.bf16 %v2285, %v2284
      %v2304 = vpack.c.bf16 %v2287, %v2286
      %v2305 = vpack.c.bf16 %v2289, %v2288
      %v2306 = vpack.c.bf16 %v2291, %v2290
      %v2307 = vpack.c.bf16 %v2293, %v2292
      %v2308 = vpack.c.bf16 %v2295, %v2294
      %v2309 = vpack.c.bf16 %v2297, %v2296
      %v2310 = vpack.c.bf16 %v2299, %v2298
      %v2311 = vpack.c.bf16 %v2301, %v2300
      %v2312 = vld [vmem:[#allocation4] sm:$0xff]
      %v2313 = vld [vmem:[#allocation4 + $0x8] sm:$0xff]
      %v2314 = vld [vmem:[#allocation4 + $0x10] sm:$0xff]
      %v2315 = vld [vmem:[#allocation4 + $0x18] sm:$0xff]
      %v2316 = vld [vmem:[#allocation4 + $0x20] sm:$0xff]
      %v2317 = vld [vmem:[#allocation4 + $0x28] sm:$0xff]
      %v2318 = vld [vmem:[#allocation4 + $0x30] sm:$0xff]
      %v2319 = vld [vmem:[#allocation4 + $0x38] sm:$0xff]
      %v2320 = vld [vmem:[#allocation4 + $0x40] sm:$0xff]
      %v2321 = vld [vmem:[#allocation4 + $0x48] sm:$0xff]
      %v2322 = vld [vmem:[#allocation4 + $0x50] sm:$0xff]
      %v2323 = vld [vmem:[#allocation4 + $0x58] sm:$0xff]
      %v2324 = vld [vmem:[#allocation4 + $0x60] sm:$0xff]
      %v2325 = vld [vmem:[#allocation4 + $0x68] sm:$0xff]
      %v2326 = vld [vmem:[#allocation4 + $0x70] sm:$0xff]
      %v2327 = vld [vmem:[#allocation4 + $0x78] sm:$0xff]
      %v2328 = vld [vmem:[#allocation4 + $0x80] sm:$0xff]
      %v2329 = vld [vmem:[#allocation4 + $0x88] sm:$0xff]
      %v2330 = vld [vmem:[#allocation4 + $0x90] sm:$0xff]
      %v2331 = vld [vmem:[#allocation4 + $0x98] sm:$0xff]
      %s2332 = scalar_lea.vmem %s3, 14
      %v2333 = vld [vmem:[%s2332] sm:$0x3]
      %v2335 = vsel %vm498, %v2302, 0
      %v2338 = vsel %vm498, %v2303, 0
      %v2341 = vsel %vm498, %v2304, 0
      %v2344 = vsel %vm498, %v2305, 0
      %v2347 = vsel %vm498, %v2306, 0
      %v2350 = vsel %vm498, %v2307, 0
      %v2353 = vsel %vm498, %v2308, 0
      %v2356 = vsel %vm498, %v2309, 0
      %v2359 = vsel %vm498, %v2310, 0
      %v2362 = vsel %vm498, %v2311, 0
      %v2365 = vsel %vm696, %v2333, 0
      %2367 = vmatprep.subr.bf16.mxu0 0
      %2368 = vmatpush1.bf16.msra.mxu0 0
      %2369 = vmatprep.subr.bf16.mxu0 0
      %2370 = vmatpush1.bf16.msra.mxu0 0
      %2371 = vmatprep.subr.bf16.mxu0 0
      %2372 = vmatpush1.bf16.msra.mxu0 0
      %2373 = vmatprep.subr.bf16.mxu0 0
      %2374 = vmatpush1.bf16.msra.mxu0 0
      %2375 = vmatprep.subr.bf16.mxu0 0
      %2376 = vmatpush1.bf16.msra.mxu0 0
      %2377 = vmatprep.subr.bf16.mxu0 0
      %2378 = vmatpush1.bf16.msra.mxu0 0
      %2379 = vmatprep.subr.bf16.mxu0 0
      %2380 = vmatpush1.bf16.msra.mxu0 0
      %2381 = vmatprep.subr.bf16.mxu0 0
      %2382 = vmatpush1.bf16.msra.mxu0 %v2365
      %2383 = vmatprep.subr.bf16.mxu0 0
      %2384 = vmatpush2.bf16.msra.mxu0 0
      %2385 = vmatprep.subr.bf16.mxu0 0
      %2386 = vmatpush2.bf16.msra.mxu0 0
      %2387 = vmatprep.subr.bf16.mxu0 0
      %2388 = vmatpush2.bf16.msra.mxu0 0
      %2389 = vmatprep.subr.bf16.mxu0 0
      %2390 = vmatpush2.bf16.msra.mxu0 0
      %2391 = vmatprep.subr.bf16.mxu0 0
      %2392 = vmatpush2.bf16.msra.mxu0 0
      %2393 = vmatprep.subr.bf16.mxu0 0
      %2394 = vmatpush2.bf16.msra.mxu0 0
      %2395 = vmatprep.subr.bf16.mxu0 0
      %2396 = vmatpush2.bf16.msra.mxu0 0
      %2397 = vmatprep.subr.bf16.mxu0 0
      %2398 = vmatpush2.bf16.msra.mxu0 0
      %2399 = vmatprep.mubr.bf16.mxu0 0
      %2400 = vmatmul.mubr.bf16.gmra.mxu0 %v2335
      %v2401 = vpop.f32.mrf.mxu0
      %v2402 = vadd.f32 0.0, %v2401
      %v2403 = vpop.f32.mrf.mxu0
      %v2404 = vpop.f32.mrf.mxu0
      %v2405 = vadd.f32 0.0, %v2404
      %v2406 = vpop.f32.mrf.mxu0
      %2407 = vmatprep.mubr.bf16.mxu0 0
      %2408 = vmatmul.mubr.bf16.gmra.mxu0 %v2338
      %v2409 = vpop.f32.mrf.mxu0
      %v2410 = vadd.f32 0.0, %v2409
      %v2411 = vpop.f32.mrf.mxu0
      %v2412 = vpop.f32.mrf.mxu0
      %v2413 = vadd.f32 0.0, %v2412
      %v2414 = vpop.f32.mrf.mxu0
      %2415 = vmatprep.mubr.bf16.mxu0 0
      %2416 = vmatmul.mubr.bf16.gmra.mxu0 %v2341
      %v2417 = vpop.f32.mrf.mxu0
      %v2418 = vadd.f32 0.0, %v2417
      %v2419 = vpop.f32.mrf.mxu0
      %v2420 = vpop.f32.mrf.mxu0
      %v2421 = vadd.f32 0.0, %v2420
      %v2422 = vpop.f32.mrf.mxu0
      %2423 = vmatprep.mubr.bf16.mxu0 0
      %2424 = vmatmul.mubr.bf16.gmra.mxu0 %v2344
      %v2425 = vpop.f32.mrf.mxu0
      %v2426 = vadd.f32 0.0, %v2425
      %v2427 = vpop.f32.mrf.mxu0
      %v2428 = vpop.f32.mrf.mxu0
      %v2429 = vadd.f32 0.0, %v2428
      %v2430 = vpop.f32.mrf.mxu0
      %2431 = vmatprep.mubr.bf16.mxu0 0
      %2432 = vmatmul.mubr.bf16.gmra.mxu0 %v2347
      %v2433 = vpop.f32.mrf.mxu0
      %v2434 = vadd.f32 0.0, %v2433
      %v2435 = vpop.f32.mrf.mxu0
      %v2436 = vpop.f32.mrf.mxu0
      %v2437 = vadd.f32 0.0, %v2436
      %v2438 = vpop.f32.mrf.mxu0
      %2439 = vmatprep.mubr.bf16.mxu0 0
      %2440 = vmatmul.mubr.bf16.gmra.mxu0 %v2350
      %v2441 = vpop.f32.mrf.mxu0
      %v2442 = vadd.f32 0.0, %v2441
      %v2443 = vpop.f32.mrf.mxu0
      %v2444 = vpop.f32.mrf.mxu0
      %v2445 = vadd.f32 0.0, %v2444
      %v2446 = vpop.f32.mrf.mxu0
      %2447 = vmatprep.mubr.bf16.mxu0 0
      %2448 = vmatmul.mubr.bf16.gmra.mxu0 %v2353
      %v2449 = vpop.f32.mrf.mxu0
      %v2450 = vadd.f32 0.0, %v2449
      %v2451 = vpop.f32.mrf.mxu0
      %v2452 = vpop.f32.mrf.mxu0
      %v2453 = vadd.f32 0.0, %v2452
      %v2454 = vpop.f32.mrf.mxu0
      %2455 = vmatprep.mubr.bf16.mxu0 0
      %2456 = vmatmul.mubr.bf16.gmra.mxu0 %v2356
      %v2457 = vpop.f32.mrf.mxu0
      %v2458 = vadd.f32 0.0, %v2457
      %v2459 = vpop.f32.mrf.mxu0
      %v2460 = vpop.f32.mrf.mxu0
      %v2461 = vadd.f32 0.0, %v2460
      %v2462 = vpop.f32.mrf.mxu0
      %2463 = vmatprep.mubr.bf16.mxu0 0
      %2464 = vmatmul.mubr.bf16.gmra.mxu0 %v2359
      %v2465 = vpop.f32.mrf.mxu0
      %v2466 = vadd.f32 0.0, %v2465
      %v2467 = vpop.f32.mrf.mxu0
      %v2468 = vpop.f32.mrf.mxu0
      %v2469 = vadd.f32 0.0, %v2468
      %v2470 = vpop.f32.mrf.mxu0
      %2471 = vmatprep.mubr.bf16.mxu0 0
      %2472 = vmatmul.mubr.bf16.gmra.mxu0 %v2362
      %v2473 = vpop.f32.mrf.mxu0
      %v2474 = vadd.f32 0.0, %v2473
      %v2475 = vpop.f32.mrf.mxu0
      %v2476 = vpop.f32.mrf.mxu0
      %v2477 = vadd.f32 0.0, %v2476
      %v2478 = vpop.f32.mrf.mxu0
      %2479 = vdwg.mxu0
      %v2480 = vadd.f32 %v2312, %v2402
      %v2481 = vadd.f32 %v2313, %v2405
      %v2482 = vadd.f32 %v2314, %v2410
      %v2483 = vadd.f32 %v2315, %v2413
      %v2484 = vadd.f32 %v2316, %v2418
      %v2485 = vadd.f32 %v2317, %v2421
      %v2486 = vadd.f32 %v2318, %v2426
      %v2487 = vadd.f32 %v2319, %v2429
      %v2488 = vadd.f32 %v2320, %v2434
      %v2489 = vadd.f32 %v2321, %v2437
      %v2490 = vadd.f32 %v2322, %v2442
      %v2491 = vadd.f32 %v2323, %v2445
      %v2492 = vadd.f32 %v2324, %v2450
      %v2493 = vadd.f32 %v2325, %v2453
      %v2494 = vadd.f32 %v2326, %v2458
      %v2495 = vadd.f32 %v2327, %v2461
      %v2496 = vadd.f32 %v2328, %v2466
      %v2497 = vadd.f32 %v2329, %v2469
      %v2498 = vadd.f32 %v2330, %v2474
      %v2499 = vadd.f32 %v2331, %v2477
      %2500 = vst [vmem:[#allocation4] sm:$0xff] %v2480
      %2501 = vst [vmem:[#allocation4 + $0x8] sm:$0xff] %v2481
      %2502 = vst [vmem:[#allocation4 + $0x10] sm:$0xff] %v2482
      %2503 = vst [vmem:[#allocation4 + $0x18] sm:$0xff] %v2483
      %2504 = vst [vmem:[#allocation4 + $0x20] sm:$0xff] %v2484
      %2505 = vst [vmem:[#allocation4 + $0x28] sm:$0xff] %v2485
      %2506 = vst [vmem:[#allocation4 + $0x30] sm:$0xff] %v2486
      %2507 = vst [vmem:[#allocation4 + $0x38] sm:$0xff] %v2487
      %2508 = vst [vmem:[#allocation4 + $0x40] sm:$0xff] %v2488
      %2509 = vst [vmem:[#allocation4 + $0x48] sm:$0xff] %v2489
      %2510 = vst [vmem:[#allocation4 + $0x50] sm:$0xff] %v2490
      %2511 = vst [vmem:[#allocation4 + $0x58] sm:$0xff] %v2491
      %2512 = vst [vmem:[#allocation4 + $0x60] sm:$0xff] %v2492
      %2513 = vst [vmem:[#allocation4 + $0x68] sm:$0xff] %v2493
      %2514 = vst [vmem:[#allocation4 + $0x70] sm:$0xff] %v2494
      %2515 = vst [vmem:[#allocation4 + $0x78] sm:$0xff] %v2495
      %2516 = vst [vmem:[#allocation4 + $0x80] sm:$0xff] %v2496
      %2517 = vst [vmem:[#allocation4 + $0x88] sm:$0xff] %v2497
      %2518 = vst [vmem:[#allocation4 + $0x90] sm:$0xff] %v2498
      %2519 = vst [vmem:[#allocation4 + $0x98] sm:$0xff] %v2499
      %v2520 = vld [vmem:[%s552 + $0x2] sm:$0xff]
      %v2521 = vld [vmem:[%s552 + $0xa] sm:$0xff]
      %v2522 = vld [vmem:[%s552 + $0x1a] sm:$0xff]
      %v2523 = vld [vmem:[%s552 + $0x22] sm:$0xff]
      %v2524 = vld [vmem:[%s552 + $0x32] sm:$0xff]
      %v2525 = vld [vmem:[%s552 + $0x3a] sm:$0xff]
      %v2526 = vld [vmem:[%s552 + $0x4a] sm:$0xff]
      %v2527 = vld [vmem:[%s552 + $0x52] sm:$0xff]
      %v2528 = vld [vmem:[%s552 + $0x62] sm:$0xff]
      %v2529 = vld [vmem:[%s552 + $0x6a] sm:$0xff]
      %v2530 = vld [vmem:[%s552 + $0x7a] sm:$0xff]
      %v2531 = vld [vmem:[%s552 + $0x82] sm:$0xff]
      %v2532 = vld [vmem:[%s552 + $0x92] sm:$0xff]
      %v2533 = vld [vmem:[%s552 + $0x9a] sm:$0xff]
      %v2534 = vld [vmem:[%s552 + $0xaa] sm:$0xff]
      %v2535 = vld [vmem:[%s552 + $0xb2] sm:$0xff]
      %v2536 = vld [vmem:[%s552 + $0xc2] sm:$0xff]
      %v2537 = vld [vmem:[%s552 + $0xca] sm:$0xff]
      %v2538 = vld [vmem:[%s552 + $0xda] sm:$0xff]
      %v2539 = vld [vmem:[%s552 + $0xe2] sm:$0xff]
      %v2540 = vpack.c.bf16 %v2521, %v2520
      %v2541 = vpack.c.bf16 %v2523, %v2522
      %v2542 = vpack.c.bf16 %v2525, %v2524
      %v2543 = vpack.c.bf16 %v2527, %v2526
      %v2544 = vpack.c.bf16 %v2529, %v2528
      %v2545 = vpack.c.bf16 %v2531, %v2530
      %v2546 = vpack.c.bf16 %v2533, %v2532
      %v2547 = vpack.c.bf16 %v2535, %v2534
      %v2548 = vpack.c.bf16 %v2537, %v2536
      %v2549 = vpack.c.bf16 %v2539, %v2538
      %v2550 = vld [vmem:[#allocation4] sm:$0xff]
      %v2551 = vld [vmem:[#allocation4 + $0x8] sm:$0xff]
      %v2552 = vld [vmem:[#allocation4 + $0x10] sm:$0xff]
      %v2553 = vld [vmem:[#allocation4 + $0x18] sm:$0xff]
      %v2554 = vld [vmem:[#allocation4 + $0x20] sm:$0xff]
      %v2555 = vld [vmem:[#allocation4 + $0x28] sm:$0xff]
      %v2556 = vld [vmem:[#allocation4 + $0x30] sm:$0xff]
      %v2557 = vld [vmem:[#allocation4 + $0x38] sm:$0xff]
      %v2558 = vld [vmem:[#allocation4 + $0x40] sm:$0xff]
      %v2559 = vld [vmem:[#allocation4 + $0x48] sm:$0xff]
      %v2560 = vld [vmem:[#allocation4 + $0x50] sm:$0xff]
      %v2561 = vld [vmem:[#allocation4 + $0x58] sm:$0xff]
      %v2562 = vld [vmem:[#allocation4 + $0x60] sm:$0xff]
      %v2563 = vld [vmem:[#allocation4 + $0x68] sm:$0xff]
      %v2564 = vld [vmem:[#allocation4 + $0x70] sm:$0xff]
      %v2565 = vld [vmem:[#allocation4 + $0x78] sm:$0xff]
      %v2566 = vld [vmem:[#allocation4 + $0x80] sm:$0xff]
      %v2567 = vld [vmem:[#allocation4 + $0x88] sm:$0xff]
      %v2568 = vld [vmem:[#allocation4 + $0x90] sm:$0xff]
      %v2569 = vld [vmem:[#allocation4 + $0x98] sm:$0xff]
      %s2570 = scalar_lea.vmem %s3, 16
      %v2571 = vld [vmem:[%s2570] sm:$0x3]
      %v2573 = vsel %vm498, %v2540, 0
      %v2576 = vsel %vm498, %v2541, 0
      %v2579 = vsel %vm498, %v2542, 0
      %v2582 = vsel %vm498, %v2543, 0
      %v2585 = vsel %vm498, %v2544, 0
      %v2588 = vsel %vm498, %v2545, 0
      %v2591 = vsel %vm498, %v2546, 0
      %v2594 = vsel %vm498, %v2547, 0
      %v2597 = vsel %vm498, %v2548, 0
      %v2600 = vsel %vm498, %v2549, 0
      %v2603 = vsel %vm696, %v2571, 0
      %2605 = vmatprep.subr.bf16.mxu0 0
      %2606 = vmatpush1.bf16.msra.mxu0 0
      %2607 = vmatprep.subr.bf16.mxu0 0
      %2608 = vmatpush1.bf16.msra.mxu0 0
      %2609 = vmatprep.subr.bf16.mxu0 0
      %2610 = vmatpush1.bf16.msra.mxu0 0
      %2611 = vmatprep.subr.bf16.mxu0 0
      %2612 = vmatpush1.bf16.msra.mxu0 0
      %2613 = vmatprep.subr.bf16.mxu0 0
      %2614 = vmatpush1.bf16.msra.mxu0 0
      %2615 = vmatprep.subr.bf16.mxu0 0
      %2616 = vmatpush1.bf16.msra.mxu0 0
      %2617 = vmatprep.subr.bf16.mxu0 0
      %2618 = vmatpush1.bf16.msra.mxu0 0
      %2619 = vmatprep.subr.bf16.mxu0 0
      %2620 = vmatpush1.bf16.msra.mxu0 %v2603
      %2621 = vmatprep.subr.bf16.mxu0 0
      %2622 = vmatpush2.bf16.msra.mxu0 0
      %2623 = vmatprep.subr.bf16.mxu0 0
      %2624 = vmatpush2.bf16.msra.mxu0 0
      %2625 = vmatprep.subr.bf16.mxu0 0
      %2626 = vmatpush2.bf16.msra.mxu0 0
      %2627 = vmatprep.subr.bf16.mxu0 0
      %2628 = vmatpush2.bf16.msra.mxu0 0
      %2629 = vmatprep.subr.bf16.mxu0 0
      %2630 = vmatpush2.bf16.msra.mxu0 0
      %2631 = vmatprep.subr.bf16.mxu0 0
      %2632 = vmatpush2.bf16.msra.mxu0 0
      %2633 = vmatprep.subr.bf16.mxu0 0
      %2634 = vmatpush2.bf16.msra.mxu0 0
      %2635 = vmatprep.subr.bf16.mxu0 0
      %2636 = vmatpush2.bf16.msra.mxu0 0
      %2637 = vmatprep.mubr.bf16.mxu0 0
      %2638 = vmatmul.mubr.bf16.gmra.mxu0 %v2573
      %v2639 = vpop.f32.mrf.mxu0
      %v2640 = vadd.f32 0.0, %v2639
      %v2641 = vpop.f32.mrf.mxu0
      %v2642 = vpop.f32.mrf.mxu0
      %v2643 = vadd.f32 0.0, %v2642
      %v2644 = vpop.f32.mrf.mxu0
      %2645 = vmatprep.mubr.bf16.mxu0 0
      %2646 = vmatmul.mubr.bf16.gmra.mxu0 %v2576
      %v2647 = vpop.f32.mrf.mxu0
      %v2648 = vadd.f32 0.0, %v2647
      %v2649 = vpop.f32.mrf.mxu0
      %v2650 = vpop.f32.mrf.mxu0
      %v2651 = vadd.f32 0.0, %v2650
      %v2652 = vpop.f32.mrf.mxu0
      %2653 = vmatprep.mubr.bf16.mxu0 0
      %2654 = vmatmul.mubr.bf16.gmra.mxu0 %v2579
      %v2655 = vpop.f32.mrf.mxu0
      %v2656 = vadd.f32 0.0, %v2655
      %v2657 = vpop.f32.mrf.mxu0
      %v2658 = vpop.f32.mrf.mxu0
      %v2659 = vadd.f32 0.0, %v2658
      %v2660 = vpop.f32.mrf.mxu0
      %2661 = vmatprep.mubr.bf16.mxu0 0
      %2662 = vmatmul.mubr.bf16.gmra.mxu0 %v2582
      %v2663 = vpop.f32.mrf.mxu0
      %v2664 = vadd.f32 0.0, %v2663
      %v2665 = vpop.f32.mrf.mxu0
      %v2666 = vpop.f32.mrf.mxu0
      %v2667 = vadd.f32 0.0, %v2666
      %v2668 = vpop.f32.mrf.mxu0
      %2669 = vmatprep.mubr.bf16.mxu0 0
      %2670 = vmatmul.mubr.bf16.gmra.mxu0 %v2585
      %v2671 = vpop.f32.mrf.mxu0
      %v2672 = vadd.f32 0.0, %v2671
      %v2673 = vpop.f32.mrf.mxu0
      %v2674 = vpop.f32.mrf.mxu0
      %v2675 = vadd.f32 0.0, %v2674
      %v2676 = vpop.f32.mrf.mxu0
      %2677 = vmatprep.mubr.bf16.mxu0 0
      %2678 = vmatmul.mubr.bf16.gmra.mxu0 %v2588
      %v2679 = vpop.f32.mrf.mxu0
      %v2680 = vadd.f32 0.0, %v2679
      %v2681 = vpop.f32.mrf.mxu0
      %v2682 = vpop.f32.mrf.mxu0
      %v2683 = vadd.f32 0.0, %v2682
      %v2684 = vpop.f32.mrf.mxu0
      %2685 = vmatprep.mubr.bf16.mxu0 0
      %2686 = vmatmul.mubr.bf16.gmra.mxu0 %v2591
      %v2687 = vpop.f32.mrf.mxu0
      %v2688 = vadd.f32 0.0, %v2687
      %v2689 = vpop.f32.mrf.mxu0
      %v2690 = vpop.f32.mrf.mxu0
      %v2691 = vadd.f32 0.0, %v2690
      %v2692 = vpop.f32.mrf.mxu0
      %2693 = vmatprep.mubr.bf16.mxu0 0
      %2694 = vmatmul.mubr.bf16.gmra.mxu0 %v2594
      %v2695 = vpop.f32.mrf.mxu0
      %v2696 = vadd.f32 0.0, %v2695
      %v2697 = vpop.f32.mrf.mxu0
      %v2698 = vpop.f32.mrf.mxu0
      %v2699 = vadd.f32 0.0, %v2698
      %v2700 = vpop.f32.mrf.mxu0
      %2701 = vmatprep.mubr.bf16.mxu0 0
      %2702 = vmatmul.mubr.bf16.gmra.mxu0 %v2597
      %v2703 = vpop.f32.mrf.mxu0
      %v2704 = vadd.f32 0.0, %v2703
      %v2705 = vpop.f32.mrf.mxu0
      %v2706 = vpop.f32.mrf.mxu0
      %v2707 = vadd.f32 0.0, %v2706
      %v2708 = vpop.f32.mrf.mxu0
      %2709 = vmatprep.mubr.bf16.mxu0 0
      %2710 = vmatmul.mubr.bf16.gmra.mxu0 %v2600
      %v2711 = vpop.f32.mrf.mxu0
      %v2712 = vadd.f32 0.0, %v2711
      %v2713 = vpop.f32.mrf.mxu0
      %v2714 = vpop.f32.mrf.mxu0
      %v2715 = vadd.f32 0.0, %v2714
      %v2716 = vpop.f32.mrf.mxu0
      %2717 = vdwg.mxu0
      %v2718 = vadd.f32 %v2550, %v2640
      %v2719 = vadd.f32 %v2551, %v2643
      %v2720 = vadd.f32 %v2552, %v2648
      %v2721 = vadd.f32 %v2553, %v2651
      %v2722 = vadd.f32 %v2554, %v2656
      %v2723 = vadd.f32 %v2555, %v2659
      %v2724 = vadd.f32 %v2556, %v2664
      %v2725 = vadd.f32 %v2557, %v2667
      %v2726 = vadd.f32 %v2558, %v2672
      %v2727 = vadd.f32 %v2559, %v2675
      %v2728 = vadd.f32 %v2560, %v2680
      %v2729 = vadd.f32 %v2561, %v2683
      %v2730 = vadd.f32 %v2562, %v2688
      %v2731 = vadd.f32 %v2563, %v2691
      %v2732 = vadd.f32 %v2564, %v2696
      %v2733 = vadd.f32 %v2565, %v2699
      %v2734 = vadd.f32 %v2566, %v2704
      %v2735 = vadd.f32 %v2567, %v2707
      %v2736 = vadd.f32 %v2568, %v2712
      %v2737 = vadd.f32 %v2569, %v2715
      %2738 = vst [vmem:[#allocation4] sm:$0xff] %v2718
      %2739 = vst [vmem:[#allocation4 + $0x8] sm:$0xff] %v2719
      %2740 = vst [vmem:[#allocation4 + $0x10] sm:$0xff] %v2720
      %2741 = vst [vmem:[#allocation4 + $0x18] sm:$0xff] %v2721
      %2742 = vst [vmem:[#allocation4 + $0x20] sm:$0xff] %v2722
      %2743 = vst [vmem:[#allocation4 + $0x28] sm:$0xff] %v2723
      %2744 = vst [vmem:[#allocation4 + $0x30] sm:$0xff] %v2724
      %2745 = vst [vmem:[#allocation4 + $0x38] sm:$0xff] %v2725
      %2746 = vst [vmem:[#allocation4 + $0x40] sm:$0xff] %v2726
      %2747 = vst [vmem:[#allocation4 + $0x48] sm:$0xff] %v2727
      %2748 = vst [vmem:[#allocation4 + $0x50] sm:$0xff] %v2728
      %2749 = vst [vmem:[#allocation4 + $0x58] sm:$0xff] %v2729
      %2750 = vst [vmem:[#allocation4 + $0x60] sm:$0xff] %v2730
      %2751 = vst [vmem:[#allocation4 + $0x68] sm:$0xff] %v2731
      %2752 = vst [vmem:[#allocation4 + $0x70] sm:$0xff] %v2732
      %2753 = vst [vmem:[#allocation4 + $0x78] sm:$0xff] %v2733
      %2754 = vst [vmem:[#allocation4 + $0x80] sm:$0xff] %v2734
      %2755 = vst [vmem:[#allocation4 + $0x88] sm:$0xff] %v2735
      %2756 = vst [vmem:[#allocation4 + $0x90] sm:$0xff] %v2736
      %2757 = vst [vmem:[#allocation4 + $0x98] sm:$0xff] %v2737
      %v2758 = vld [vmem:[#allocation4] sm:$0xff]
      %v2759 = vld [vmem:[#allocation4 + $0x8] sm:$0xff]
      %v2760 = vld [vmem:[#allocation4 + $0x10] sm:$0xff]
      %v2761 = vld [vmem:[#allocation4 + $0x18] sm:$0xff]
      %v2762 = vld [vmem:[#allocation4 + $0x20] sm:$0xff]
      %v2763 = vld [vmem:[#allocation4 + $0x28] sm:$0xff]
      %v2764 = vld [vmem:[#allocation4 + $0x30] sm:$0xff]
      %v2765 = vld [vmem:[#allocation4 + $0x38] sm:$0xff]
      %v2766 = vld [vmem:[#allocation4 + $0x40] sm:$0xff]
      %v2767 = vld [vmem:[#allocation4 + $0x48] sm:$0xff]
      %v2768 = vld [vmem:[#allocation4 + $0x50] sm:$0xff]
      %v2769 = vld [vmem:[#allocation4 + $0x58] sm:$0xff]
      %v2770 = vld [vmem:[#allocation4 + $0x60] sm:$0xff]
      %v2771 = vld [vmem:[#allocation4 + $0x68] sm:$0xff]
      %v2772 = vld [vmem:[#allocation4 + $0x70] sm:$0xff]
      %v2773 = vld [vmem:[#allocation4 + $0x78] sm:$0xff]
      %v2774 = vld [vmem:[#allocation4 + $0x80] sm:$0xff]
      %v2775 = vld [vmem:[#allocation4 + $0x88] sm:$0xff]
      %v2776 = vld [vmem:[#allocation4 + $0x90] sm:$0xff]
      %v2777 = vld [vmem:[#allocation4 + $0x98] sm:$0xff]
      %v2778 = vld [vmem:[%s4] sm:$0x1]
      %v2780 = vlaneseq
      %v2781 = vshrl.u32 %v2780, 7
      %v2782 = vsub.s32 0, %v2781
      %v2783 = vrot.slane %v2778, %v2782
      %v2785 = vmul.f32 %v2758, %v2783
      %v2786 = vmul.f32 %v2759, %v2783
      %v2787 = vmul.f32 %v2760, %v2783
      %v2788 = vmul.f32 %v2761, %v2783
      %v2789 = vmul.f32 %v2762, %v2783
      %v2790 = vmul.f32 %v2763, %v2783
      %v2791 = vmul.f32 %v2764, %v2783
      %v2792 = vmul.f32 %v2765, %v2783
      %v2793 = vmul.f32 %v2766, %v2783
      %v2794 = vmul.f32 %v2767, %v2783
      %v2795 = vmul.f32 %v2768, %v2783
      %v2796 = vmul.f32 %v2769, %v2783
      %v2797 = vmul.f32 %v2770, %v2783
      %v2798 = vmul.f32 %v2771, %v2783
      %v2799 = vmul.f32 %v2772, %v2783
      %v2800 = vmul.f32 %v2773, %v2783
      %v2801 = vmul.f32 %v2774, %v2783
      %v2802 = vmul.f32 %v2775, %v2783
      %v2803 = vmul.f32 %v2776, %v2783
      %v2804 = vmul.f32 %v2777, %v2783
      %v2805 = vld [vmem:[%s5] sm:$0x1]
      %v2807 = vlaneseq
      %v2808 = vshrl.u32 %v2807, 7
      %v2809 = vsub.s32 0, %v2808
      %v2810 = vrot.slane %v2805, %v2809
      %v2812 = vadd.f32 %v2785, %v2810
      %v2813 = vadd.f32 %v2786, %v2810
      %v2814 = vadd.f32 %v2787, %v2810
      %v2815 = vadd.f32 %v2788, %v2810
      %v2816 = vadd.f32 %v2789, %v2810
      %v2817 = vadd.f32 %v2790, %v2810
      %v2818 = vadd.f32 %v2791, %v2810
      %v2819 = vadd.f32 %v2792, %v2810
      %v2820 = vadd.f32 %v2793, %v2810
      %v2821 = vadd.f32 %v2794, %v2810
      %v2822 = vadd.f32 %v2795, %v2810
      %v2823 = vadd.f32 %v2796, %v2810
      %v2824 = vadd.f32 %v2797, %v2810
      %v2825 = vadd.f32 %v2798, %v2810
      %v2826 = vadd.f32 %v2799, %v2810
      %v2827 = vadd.f32 %v2800, %v2810
      %v2828 = vadd.f32 %v2801, %v2810
      %v2829 = vadd.f32 %v2802, %v2810
      %v2830 = vadd.f32 %v2803, %v2810
      %v2831 = vadd.f32 %v2804, %v2810
      %v2832 = vmax.f32 %v2812, 0.0
      %v2833 = vmax.f32 %v2813, 0.0
      %v2834 = vmax.f32 %v2814, 0.0
      %v2835 = vmax.f32 %v2815, 0.0
      %v2836 = vmax.f32 %v2816, 0.0
      %v2837 = vmax.f32 %v2817, 0.0
      %v2838 = vmax.f32 %v2818, 0.0
      %v2839 = vmax.f32 %v2819, 0.0
      %v2840 = vmax.f32 %v2820, 0.0
      %v2841 = vmax.f32 %v2821, 0.0
      %v2842 = vmax.f32 %v2822, 0.0
      %v2843 = vmax.f32 %v2823, 0.0
      %v2844 = vmax.f32 %v2824, 0.0
      %v2845 = vmax.f32 %v2825, 0.0
      %v2846 = vmax.f32 %v2826, 0.0
      %v2847 = vmax.f32 %v2827, 0.0
      %v2848 = vmax.f32 %v2828, 0.0
      %v2849 = vmax.f32 %v2829, 0.0
      %v2850 = vmax.f32 %v2830, 0.0
      %v2851 = vmax.f32 %v2831, 0.0
      %2852 = vst [vmem:[#allocation3] sm:$0xff] 0.0
      %2853 = vst [vmem:[#allocation3 + $0x8] sm:$0xff] 0.0
      %2854 = vst [vmem:[#allocation3 + $0x10] sm:$0x3] 0.0
      %2855 = vst [vmem:[#allocation3 + $0x18] sm:$0xff] 0.0
      %2856 = vst [vmem:[#allocation3 + $0x20] sm:$0xff] 0.0
      %2857 = vst [vmem:[#allocation3 + $0x28] sm:$0x3] 0.0
      %2858 = vst [vmem:[#allocation3 + $0x30] sm:$0xff] 0.0
      %2859 = vst [vmem:[#allocation3 + $0x38] sm:$0xff] 0.0
      %2860 = vst [vmem:[#allocation3 + $0x40] sm:$0x3] 0.0
      %2861 = vst [vmem:[#allocation3 + $0x48] sm:$0xff] 0.0
      %2862 = vst [vmem:[#allocation3 + $0x50] sm:$0xff] 0.0
      %2863 = vst [vmem:[#allocation3 + $0x58] sm:$0x3] 0.0
      %2864 = vst [vmem:[#allocation3 + $0x60] sm:$0xff] 0.0
      %2865 = vst [vmem:[#allocation3 + $0x68] sm:$0xff] 0.0
      %2866 = vst [vmem:[#allocation3 + $0x70] sm:$0x3] 0.0
      %2867 = vst [vmem:[#allocation3 + $0x78] sm:$0xff] 0.0
      %2868 = vst [vmem:[#allocation3 + $0x80] sm:$0xff] 0.0
      %2869 = vst [vmem:[#allocation3 + $0x88] sm:$0x3] 0.0
      %2870 = vst [vmem:[#allocation3 + $0x90] sm:$0xff] 0.0
      %2871 = vst [vmem:[#allocation3 + $0x98] sm:$0xff] 0.0
      %2872 = vst [vmem:[#allocation3 + $0xa0] sm:$0x3] 0.0
      %2873 = vst [vmem:[#allocation3 + $0xa8] sm:$0xff] 0.0
      %2874 = vst [vmem:[#allocation3 + $0xb0] sm:$0xff] 0.0
      %2875 = vst [vmem:[#allocation3 + $0xb8] sm:$0x3] 0.0
      %2876 = vst [vmem:[#allocation3 + $0xc0] sm:$0xff] 0.0
      %2877 = vst [vmem:[#allocation3 + $0xc8] sm:$0xff] 0.0
      %2878 = vst [vmem:[#allocation3 + $0xd0] sm:$0x3] 0.0
      %2879 = vst [vmem:[#allocation3 + $0xd8] sm:$0xff] 0.0
      %2880 = vst [vmem:[#allocation3 + $0xe0] sm:$0xff] 0.0
      %2881 = vst [vmem:[#allocation3 + $0xe8] sm:$0x3] 0.0
      %2882 = vst [vmem:[#allocation3 + $0x1] sm:$0xff] %v2832
      %2883 = vst [vmem:[#allocation3 + $0x9] sm:$0xff] %v2833
      %2884 = vst [vmem:[#allocation3 + $0x19] sm:$0xff] %v2834
      %2885 = vst [vmem:[#allocation3 + $0x21] sm:$0xff] %v2835
      %2886 = vst [vmem:[#allocation3 + $0x31] sm:$0xff] %v2836
      %2887 = vst [vmem:[#allocation3 + $0x39] sm:$0xff] %v2837
      %2888 = vst [vmem:[#allocation3 + $0x49] sm:$0xff] %v2838
      %2889 = vst [vmem:[#allocation3 + $0x51] sm:$0xff] %v2839
      %2890 = vst [vmem:[#allocation3 + $0x61] sm:$0xff] %v2840
      %2891 = vst [vmem:[#allocation3 + $0x69] sm:$0xff] %v2841
      %2892 = vst [vmem:[#allocation3 + $0x79] sm:$0xff] %v2842
      %2893 = vst [vmem:[#allocation3 + $0x81] sm:$0xff] %v2843
      %2894 = vst [vmem:[#allocation3 + $0x91] sm:$0xff] %v2844
      %2895 = vst [vmem:[#allocation3 + $0x99] sm:$0xff] %v2845
      %2896 = vst [vmem:[#allocation3 + $0xa9] sm:$0xff] %v2846
      %2897 = vst [vmem:[#allocation3 + $0xb1] sm:$0xff] %v2847
      %2898 = vst [vmem:[#allocation3 + $0xc1] sm:$0xff] %v2848
      %2899 = vst [vmem:[#allocation3 + $0xc9] sm:$0xff] %v2849
      %2900 = vst [vmem:[#allocation3 + $0xd9] sm:$0xff] %v2850
      %2901 = vst [vmem:[#allocation3 + $0xe1] sm:$0xff] %v2851
      %p2902 = scmp.eq.s32.totalorder %s25, 0
      // Predicated region
      $region65: #{double_conv_forward.1} parent=55 // pred_check
        %p2903 = pneg %p2902
      $region66: #{double_conv_forward.1} parent=55 // pred_check_branch
        %2905 = sbr.rel (%p2903) target = $region68
      $region67: #{double_conv_forward.1} parent=55 // pred_region
        %2906 = vst [vmem:[#allocation3] sm:$0xff] 0.0
        %2907 = vst [vmem:[#allocation3 + $0x8] sm:$0xff] 0.0
        %2908 = vst [vmem:[#allocation3 + $0x10] sm:$0x3] 0.0
      $region68: #{double_conv_forward.1} parent=55 // pred_fallthru
        _
      %p2909 = scmp.eq.s32.totalorder %s25, 1
      // Predicated region
      $region69: #{double_conv_forward.1} parent=55 // pred_check
        %p2910 = pneg %p2909
      $region70: #{double_conv_forward.1} parent=55 // pred_check_branch
        %2912 = sbr.rel (%p2910) target = $region72
      $region71: #{double_conv_forward.1} parent=55 // pred_region
        %s2913 = scalar_lea.vmem [#allocation3], 216
        %2914 = vst [vmem:[%s2913] sm:$0xff] 0.0
        %2915 = vst [vmem:[%s2913 + $0x8] sm:$0xff] 0.0
        %2916 = vst [vmem:[%s2913 + $0x10] sm:$0x3] 0.0
      $region72: #{double_conv_forward.1} parent=55 // pred_fallthru
        _
      %2917 = vst [vmem:[#allocation5] sm:$0xff] 0.0
      %2918 = vst [vmem:[#allocation5 + $0x8] sm:$0xff] 0.0
      %2919 = vst [vmem:[#allocation5 + $0x10] sm:$0xff] 0.0
      %2920 = vst [vmem:[#allocation5 + $0x18] sm:$0xff] 0.0
      %2921 = vst [vmem:[#allocation5 + $0x20] sm:$0xff] 0.0
      %2922 = vst [vmem:[#allocation5 + $0x28] sm:$0xff] 0.0
      %2923 = vst [vmem:[#allocation5 + $0x30] sm:$0xff] 0.0
      %2924 = vst [vmem:[#allocation5 + $0x38] sm:$0xff] 0.0
      %2925 = vst [vmem:[#allocation5 + $0x40] sm:$0xff] 0.0
      %2926 = vst [vmem:[#allocation5 + $0x48] sm:$0xff] 0.0
      %2927 = vst [vmem:[#allocation5 + $0x50] sm:$0xff] 0.0
      %2928 = vst [vmem:[#allocation5 + $0x58] sm:$0xff] 0.0
      %2929 = vst [vmem:[#allocation5 + $0x60] sm:$0xff] 0.0
      %2930 = vst [vmem:[#allocation5 + $0x68] sm:$0xff] 0.0
      %2931 = vst [vmem:[#allocation5 + $0x70] sm:$0xff] 0.0
      %2932 = vst [vmem:[#allocation5 + $0x78] sm:$0xff] 0.0
      %v2933 = vld [vmem:[#allocation3] sm:$0xff]
      %v2934 = vld [vmem:[#allocation3 + $0x8] sm:$0xff]
      %v2935 = vld [vmem:[#allocation3 + $0x18] sm:$0xff]
      %v2936 = vld [vmem:[#allocation3 + $0x20] sm:$0xff]
      %v2937 = vld [vmem:[#allocation3 + $0x30] sm:$0xff]
      %v2938 = vld [vmem:[#allocation3 + $0x38] sm:$0xff]
      %v2939 = vld [vmem:[#allocation3 + $0x48] sm:$0xff]
      %v2940 = vld [vmem:[#allocation3 + $0x50] sm:$0xff]
      %v2941 = vld [vmem:[#allocation3 + $0x60] sm:$0xff]
      %v2942 = vld [vmem:[#allocation3 + $0x68] sm:$0xff]
      %v2943 = vld [vmem:[#allocation3 + $0x78] sm:$0xff]
      %v2944 = vld [vmem:[#allocation3 + $0x80] sm:$0xff]
      %v2945 = vld [vmem:[#allocation3 + $0x90] sm:$0xff]
      %v2946 = vld [vmem:[#allocation3 + $0x98] sm:$0xff]
      %v2947 = vld [vmem:[#allocation3 + $0xa8] sm:$0xff]
      %v2948 = vld [vmem:[#allocation3 + $0xb0] sm:$0xff]
      %v2949 = vpack.c.bf16 %v2934, %v2933
      %v2950 = vpack.c.bf16 %v2936, %v2935
      %v2951 = vpack.c.bf16 %v2938, %v2937
      %v2952 = vpack.c.bf16 %v2940, %v2939
      %v2953 = vpack.c.bf16 %v2942, %v2941
      %v2954 = vpack.c.bf16 %v2944, %v2943
      %v2955 = vpack.c.bf16 %v2946, %v2945
      %v2956 = vpack.c.bf16 %v2948, %v2947
      %v2957 = vld [vmem:[#allocation5] sm:$0xff]
      %v2958 = vld [vmem:[#allocation5 + $0x8] sm:$0xff]
      %v2959 = vld [vmem:[#allocation5 + $0x10] sm:$0xff]
      %v2960 = vld [vmem:[#allocation5 + $0x18] sm:$0xff]
      %v2961 = vld [vmem:[#allocation5 + $0x20] sm:$0xff]
      %v2962 = vld [vmem:[#allocation5 + $0x28] sm:$0xff]
      %v2963 = vld [vmem:[#allocation5 + $0x30] sm:$0xff]
      %v2964 = vld [vmem:[#allocation5 + $0x38] sm:$0xff]
      %v2965 = vld [vmem:[#allocation5 + $0x40] sm:$0xff]
      %v2966 = vld [vmem:[#allocation5 + $0x48] sm:$0xff]
      %v2967 = vld [vmem:[#allocation5 + $0x50] sm:$0xff]
      %v2968 = vld [vmem:[#allocation5 + $0x58] sm:$0xff]
      %v2969 = vld [vmem:[#allocation5 + $0x60] sm:$0xff]
      %v2970 = vld [vmem:[#allocation5 + $0x68] sm:$0xff]
      %v2971 = vld [vmem:[#allocation5 + $0x70] sm:$0xff]
      %v2972 = vld [vmem:[#allocation5 + $0x78] sm:$0xff]
      %v2973 = vld [vmem:[%s6] sm:$0xf]
      %v2974 = vld [vmem:[%s6 + $0x4] sm:$0xf]
      %v2975 = vld [vmem:[%s6 + $0x8] sm:$0xf]
      %v2976 = vld [vmem:[%s6 + $0xc] sm:$0xf]
      %v2977 = vld [vmem:[%s6 + $0x10] sm:$0xf]
      %v2978 = vld [vmem:[%s6 + $0x14] sm:$0xf]
      %v2979 = vld [vmem:[%s6 + $0x18] sm:$0xf]
      %v2980 = vld [vmem:[%s6 + $0x1c] sm:$0xf]
      %v2981 = vld [vmem:[%s6 + $0x20] sm:$0xf]
      %v2982 = vld [vmem:[%s6 + $0x24] sm:$0xf]
      %v2983 = vld [vmem:[%s6 + $0x28] sm:$0xf]
      %v2984 = vld [vmem:[%s6 + $0x2c] sm:$0xf]
      %v2985 = vld [vmem:[%s6 + $0x30] sm:$0xf]
      %v2986 = vld [vmem:[%s6 + $0x34] sm:$0xf]
      %v2987 = vld [vmem:[%s6 + $0x38] sm:$0xf]
      %v2988 = vld [vmem:[%s6 + $0x3c] sm:$0xf]
      %v3005 = vunpack.c.l.b16 %v2973
      %v3006 = vunpack.c.l.b16 %v2974
      %v3007 = vunpack.c.l.b16 %v2975
      %v3008 = vunpack.c.l.b16 %v2976
      %v3009 = vunpack.c.l.b16 %v2977
      %v3010 = vunpack.c.l.b16 %v2978
      %v3011 = vunpack.c.l.b16 %v2979
      %v3012 = vunpack.c.l.b16 %v2980
      %v3013 = vunpack.c.l.b16 %v2981
      %v3014 = vunpack.c.l.b16 %v2982
      %v3015 = vunpack.c.l.b16 %v2983
      %v3016 = vunpack.c.l.b16 %v2984
      %v3017 = vunpack.c.l.b16 %v2985
      %v3018 = vunpack.c.l.b16 %v2986
      %v3019 = vunpack.c.l.b16 %v2987
      %v3020 = vunpack.c.l.b16 %v2988
      %v3021 = vpack.c.b16 %v3006, %v3005
      %v3022 = vpack.c.b16 %v3008, %v3007
      %v3023 = vpack.c.b16 %v3010, %v3009
      %v3024 = vpack.c.b16 %v3012, %v3011
      %v3025 = vpack.c.b16 %v3014, %v3013
      %v3026 = vpack.c.b16 %v3016, %v3015
      %v3027 = vpack.c.b16 %v3018, %v3017
      %v3028 = vpack.c.b16 %v3020, %v3019
      %3037 = vmatprep.subr.bf16.mxu0 0
      %3038 = vmatpush1.bf16.msra.mxu0 %v3028
      %3039 = vmatprep.subr.bf16.mxu0 0
      %3040 = vmatpush1.bf16.msra.mxu0 %v3027
      %3041 = vmatprep.subr.bf16.mxu0 0
      %3042 = vmatpush1.bf16.msra.mxu0 %v3026
      %3043 = vmatprep.subr.bf16.mxu0 0
      %3044 = vmatpush1.bf16.msra.mxu0 %v3025
      %3045 = vmatprep.subr.bf16.mxu0 0
      %3046 = vmatpush1.bf16.msra.mxu0 %v3024
      %3047 = vmatprep.subr.bf16.mxu0 0
      %3048 = vmatpush1.bf16.msra.mxu0 %v3023
      %3049 = vmatprep.subr.bf16.mxu0 0
      %3050 = vmatpush1.bf16.msra.mxu0 %v3022
      %3051 = vmatprep.subr.bf16.mxu0 0
      %3052 = vmatpush1.bf16.msra.mxu0 %v3021
      %3053 = vmatprep.subr.bf16.mxu0 0
      %3054 = vmatpush2.bf16.msra.mxu0 0
      %3055 = vmatprep.subr.bf16.mxu0 0
      %3056 = vmatpush2.bf16.msra.mxu0 0
      %3057 = vmatprep.subr.bf16.mxu0 0
      %3058 = vmatpush2.bf16.msra.mxu0 0
      %3059 = vmatprep.subr.bf16.mxu0 0
      %3060 = vmatpush2.bf16.msra.mxu0 0
      %3061 = vmatprep.subr.bf16.mxu0 0
      %3062 = vmatpush2.bf16.msra.mxu0 0
      %3063 = vmatprep.subr.bf16.mxu0 0
      %3064 = vmatpush2.bf16.msra.mxu0 0
      %3065 = vmatprep.subr.bf16.mxu0 0
      %3066 = vmatpush2.bf16.msra.mxu0 0
      %3067 = vmatprep.subr.bf16.mxu0 0
      %3068 = vmatpush2.bf16.msra.mxu0 0
      %3069 = vmatprep.mubr.bf16.mxu0 0
      %3070 = vmatmul.mubr.bf16.gmra.mxu0 %v2949
      %v3071 = vpop.f32.mrf.mxu0
      %v3072 = vadd.f32 0.0, %v3071
      %v3073 = vpop.f32.mrf.mxu0
      %v3074 = vpop.f32.mrf.mxu0
      %v3075 = vadd.f32 0.0, %v3074
      %v3076 = vpop.f32.mrf.mxu0
      %3077 = vmatprep.mubr.bf16.mxu0 0
      %3078 = vmatmul.mubr.bf16.gmra.mxu0 %v2950
      %v3079 = vpop.f32.mrf.mxu0
      %v3080 = vadd.f32 0.0, %v3079
      %v3081 = vpop.f32.mrf.mxu0
      %v3082 = vpop.f32.mrf.mxu0
      %v3083 = vadd.f32 0.0, %v3082
      %v3084 = vpop.f32.mrf.mxu0
      %3085 = vmatprep.mubr.bf16.mxu0 0
      %3086 = vmatmul.mubr.bf16.gmra.mxu0 %v2951
      %v3087 = vpop.f32.mrf.mxu0
      %v3088 = vadd.f32 0.0, %v3087
      %v3089 = vpop.f32.mrf.mxu0
      %v3090 = vpop.f32.mrf.mxu0
      %v3091 = vadd.f32 0.0, %v3090
      %v3092 = vpop.f32.mrf.mxu0
      %3093 = vmatprep.mubr.bf16.mxu0 0
      %3094 = vmatmul.mubr.bf16.gmra.mxu0 %v2952
      %v3095 = vpop.f32.mrf.mxu0
      %v3096 = vadd.f32 0.0, %v3095
      %v3097 = vpop.f32.mrf.mxu0
      %v3098 = vpop.f32.mrf.mxu0
      %v3099 = vadd.f32 0.0, %v3098
      %v3100 = vpop.f32.mrf.mxu0
      %3101 = vmatprep.mubr.bf16.mxu0 0
      %3102 = vmatmul.mubr.bf16.gmra.mxu0 %v2953
      %v3103 = vpop.f32.mrf.mxu0
      %v3104 = vadd.f32 0.0, %v3103
      %v3105 = vpop.f32.mrf.mxu0
      %v3106 = vpop.f32.mrf.mxu0
      %v3107 = vadd.f32 0.0, %v3106
      %v3108 = vpop.f32.mrf.mxu0
      %3109 = vmatprep.mubr.bf16.mxu0 0
      %3110 = vmatmul.mubr.bf16.gmra.mxu0 %v2954
      %v3111 = vpop.f32.mrf.mxu0
      %v3112 = vadd.f32 0.0, %v3111
      %v3113 = vpop.f32.mrf.mxu0
      %v3114 = vpop.f32.mrf.mxu0
      %v3115 = vadd.f32 0.0, %v3114
      %v3116 = vpop.f32.mrf.mxu0
      %3117 = vmatprep.mubr.bf16.mxu0 0
      %3118 = vmatmul.mubr.bf16.gmra.mxu0 %v2955
      %v3119 = vpop.f32.mrf.mxu0
      %v3120 = vadd.f32 0.0, %v3119
      %v3121 = vpop.f32.mrf.mxu0
      %v3122 = vpop.f32.mrf.mxu0
      %v3123 = vadd.f32 0.0, %v3122
      %v3124 = vpop.f32.mrf.mxu0
      %3125 = vmatprep.mubr.bf16.mxu0 0
      %3126 = vmatmul.mubr.bf16.gmra.mxu0 %v2956
      %v3127 = vpop.f32.mrf.mxu0
      %v3128 = vadd.f32 0.0, %v3127
      %v3129 = vpop.f32.mrf.mxu0
      %v3130 = vpop.f32.mrf.mxu0
      %v3131 = vadd.f32 0.0, %v3130
      %v3132 = vpop.f32.mrf.mxu0
      %3133 = vdwg.mxu0
      %v3134 = vadd.f32 %v2957, %v3072
      %v3135 = vadd.f32 %v2958, %v3075
      %v3136 = vadd.f32 %v2959, %v3080
      %v3137 = vadd.f32 %v2960, %v3083
      %v3138 = vadd.f32 %v2961, %v3088
      %v3139 = vadd.f32 %v2962, %v3091
      %v3140 = vadd.f32 %v2963, %v3096
      %v3141 = vadd.f32 %v2964, %v3099
      %v3142 = vadd.f32 %v2965, %v3104
      %v3143 = vadd.f32 %v2966, %v3107
      %v3144 = vadd.f32 %v2967, %v3112
      %v3145 = vadd.f32 %v2968, %v3115
      %v3146 = vadd.f32 %v2969, %v3120
      %v3147 = vadd.f32 %v2970, %v3123
      %v3148 = vadd.f32 %v2971, %v3128
      %v3149 = vadd.f32 %v2972, %v3131
      %3150 = vst [vmem:[#allocation5] sm:$0xff] %v3134
      %3151 = vst [vmem:[#allocation5 + $0x8] sm:$0xff] %v3135
      %3152 = vst [vmem:[#allocation5 + $0x10] sm:$0xff] %v3136
      %3153 = vst [vmem:[#allocation5 + $0x18] sm:$0xff] %v3137
      %3154 = vst [vmem:[#allocation5 + $0x20] sm:$0xff] %v3138
      %3155 = vst [vmem:[#allocation5 + $0x28] sm:$0xff] %v3139
      %3156 = vst [vmem:[#allocation5 + $0x30] sm:$0xff] %v3140
      %3157 = vst [vmem:[#allocation5 + $0x38] sm:$0xff] %v3141
      %3158 = vst [vmem:[#allocation5 + $0x40] sm:$0xff] %v3142
      %3159 = vst [vmem:[#allocation5 + $0x48] sm:$0xff] %v3143
      %3160 = vst [vmem:[#allocation5 + $0x50] sm:$0xff] %v3144
      %3161 = vst [vmem:[#allocation5 + $0x58] sm:$0xff] %v3145
      %3162 = vst [vmem:[#allocation5 + $0x60] sm:$0xff] %v3146
      %3163 = vst [vmem:[#allocation5 + $0x68] sm:$0xff] %v3147
      %3164 = vst [vmem:[#allocation5 + $0x70] sm:$0xff] %v3148
      %3165 = vst [vmem:[#allocation5 + $0x78] sm:$0xff] %v3149
      %v3166 = vld [vmem:[#allocation3 + $0x1] sm:$0xff]
      %v3167 = vld [vmem:[#allocation3 + $0x9] sm:$0xff]
      %v3168 = vld [vmem:[#allocation3 + $0x19] sm:$0xff]
      %v3169 = vld [vmem:[#allocation3 + $0x21] sm:$0xff]
      %v3170 = vld [vmem:[#allocation3 + $0x31] sm:$0xff]
      %v3171 = vld [vmem:[#allocation3 + $0x39] sm:$0xff]
      %v3172 = vld [vmem:[#allocation3 + $0x49] sm:$0xff]
      %v3173 = vld [vmem:[#allocation3 + $0x51] sm:$0xff]
      %v3174 = vld [vmem:[#allocation3 + $0x61] sm:$0xff]
      %v3175 = vld [vmem:[#allocation3 + $0x69] sm:$0xff]
      %v3176 = vld [vmem:[#allocation3 + $0x79] sm:$0xff]
      %v3177 = vld [vmem:[#allocation3 + $0x81] sm:$0xff]
      %v3178 = vld [vmem:[#allocation3 + $0x91] sm:$0xff]
      %v3179 = vld [vmem:[#allocation3 + $0x99] sm:$0xff]
      %v3180 = vld [vmem:[#allocation3 + $0xa9] sm:$0xff]
      %v3181 = vld [vmem:[#allocation3 + $0xb1] sm:$0xff]
      %v3182 = vpack.c.bf16 %v3167, %v3166
      %v3183 = vpack.c.bf16 %v3169, %v3168
      %v3184 = vpack.c.bf16 %v3171, %v3170
      %v3185 = vpack.c.bf16 %v3173, %v3172
      %v3186 = vpack.c.bf16 %v3175, %v3174
      %v3187 = vpack.c.bf16 %v3177, %v3176
      %v3188 = vpack.c.bf16 %v3179, %v3178
      %v3189 = vpack.c.bf16 %v3181, %v3180
      %v3190 = vld [vmem:[#allocation5] sm:$0xff]
      %v3191 = vld [vmem:[#allocation5 + $0x8] sm:$0xff]
      %v3192 = vld [vmem:[#allocation5 + $0x10] sm:$0xff]
      %v3193 = vld [vmem:[#allocation5 + $0x18] sm:$0xff]
      %v3194 = vld [vmem:[#allocation5 + $0x20] sm:$0xff]
      %v3195 = vld [vmem:[#allocation5 + $0x28] sm:$0xff]
      %v3196 = vld [vmem:[#allocation5 + $0x30] sm:$0xff]
      %v3197 = vld [vmem:[#allocation5 + $0x38] sm:$0xff]
      %v3198 = vld [vmem:[#allocation5 + $0x40] sm:$0xff]
      %v3199 = vld [vmem:[#allocation5 + $0x48] sm:$0xff]
      %v3200 = vld [vmem:[#allocation5 + $0x50] sm:$0xff]
      %v3201 = vld [vmem:[#allocation5 + $0x58] sm:$0xff]
      %v3202 = vld [vmem:[#allocation5 + $0x60] sm:$0xff]
      %v3203 = vld [vmem:[#allocation5 + $0x68] sm:$0xff]
      %v3204 = vld [vmem:[#allocation5 + $0x70] sm:$0xff]
      %v3205 = vld [vmem:[#allocation5 + $0x78] sm:$0xff]
      %s3206 = scalar_lea.vmem %s6, 64
      %v3207 = vld [vmem:[%s3206] sm:$0xf]
      %v3208 = vld [vmem:[%s3206 + $0x4] sm:$0xf]
      %v3209 = vld [vmem:[%s3206 + $0x8] sm:$0xf]
      %v3210 = vld [vmem:[%s3206 + $0xc] sm:$0xf]
      %v3211 = vld [vmem:[%s3206 + $0x10] sm:$0xf]
      %v3212 = vld [vmem:[%s3206 + $0x14] sm:$0xf]
      %v3213 = vld [vmem:[%s3206 + $0x18] sm:$0xf]
      %v3214 = vld [vmem:[%s3206 + $0x1c] sm:$0xf]
      %v3215 = vld [vmem:[%s3206 + $0x20] sm:$0xf]
      %v3216 = vld [vmem:[%s3206 + $0x24] sm:$0xf]
      %v3217 = vld [vmem:[%s3206 + $0x28] sm:$0xf]
      %v3218 = vld [vmem:[%s3206 + $0x2c] sm:$0xf]
      %v3219 = vld [vmem:[%s3206 + $0x30] sm:$0xf]
      %v3220 = vld [vmem:[%s3206 + $0x34] sm:$0xf]
      %v3221 = vld [vmem:[%s3206 + $0x38] sm:$0xf]
      %v3222 = vld [vmem:[%s3206 + $0x3c] sm:$0xf]
      %v3239 = vunpack.c.l.b16 %v3207
      %v3240 = vunpack.c.l.b16 %v3208
      %v3241 = vunpack.c.l.b16 %v3209
      %v3242 = vunpack.c.l.b16 %v3210
      %v3243 = vunpack.c.l.b16 %v3211
      %v3244 = vunpack.c.l.b16 %v3212
      %v3245 = vunpack.c.l.b16 %v3213
      %v3246 = vunpack.c.l.b16 %v3214
      %v3247 = vunpack.c.l.b16 %v3215
      %v3248 = vunpack.c.l.b16 %v3216
      %v3249 = vunpack.c.l.b16 %v3217
      %v3250 = vunpack.c.l.b16 %v3218
      %v3251 = vunpack.c.l.b16 %v3219
      %v3252 = vunpack.c.l.b16 %v3220
      %v3253 = vunpack.c.l.b16 %v3221
      %v3254 = vunpack.c.l.b16 %v3222
      %v3255 = vpack.c.b16 %v3240, %v3239
      %v3256 = vpack.c.b16 %v3242, %v3241
      %v3257 = vpack.c.b16 %v3244, %v3243
      %v3258 = vpack.c.b16 %v3246, %v3245
      %v3259 = vpack.c.b16 %v3248, %v3247
      %v3260 = vpack.c.b16 %v3250, %v3249
      %v3261 = vpack.c.b16 %v3252, %v3251
      %v3262 = vpack.c.b16 %v3254, %v3253
      %3271 = vmatprep.subr.bf16.mxu0 0
      %3272 = vmatpush1.bf16.msra.mxu0 %v3262
      %3273 = vmatprep.subr.bf16.mxu0 0
      %3274 = vmatpush1.bf16.msra.mxu0 %v3261
      %3275 = vmatprep.subr.bf16.mxu0 0
      %3276 = vmatpush1.bf16.msra.mxu0 %v3260
      %3277 = vmatprep.subr.bf16.mxu0 0
      %3278 = vmatpush1.bf16.msra.mxu0 %v3259
      %3279 = vmatprep.subr.bf16.mxu0 0
      %3280 = vmatpush1.bf16.msra.mxu0 %v3258
      %3281 = vmatprep.subr.bf16.mxu0 0
      %3282 = vmatpush1.bf16.msra.mxu0 %v3257
      %3283 = vmatprep.subr.bf16.mxu0 0
      %3284 = vmatpush1.bf16.msra.mxu0 %v3256
      %3285 = vmatprep.subr.bf16.mxu0 0
      %3286 = vmatpush1.bf16.msra.mxu0 %v3255
      %3287 = vmatprep.subr.bf16.mxu0 0
      %3288 = vmatpush2.bf16.msra.mxu0 0
      %3289 = vmatprep.subr.bf16.mxu0 0
      %3290 = vmatpush2.bf16.msra.mxu0 0
      %3291 = vmatprep.subr.bf16.mxu0 0
      %3292 = vmatpush2.bf16.msra.mxu0 0
      %3293 = vmatprep.subr.bf16.mxu0 0
      %3294 = vmatpush2.bf16.msra.mxu0 0
      %3295 = vmatprep.subr.bf16.mxu0 0
      %3296 = vmatpush2.bf16.msra.mxu0 0
      %3297 = vmatprep.subr.bf16.mxu0 0
      %3298 = vmatpush2.bf16.msra.mxu0 0
      %3299 = vmatprep.subr.bf16.mxu0 0
      %3300 = vmatpush2.bf16.msra.mxu0 0
      %3301 = vmatprep.subr.bf16.mxu0 0
      %3302 = vmatpush2.bf16.msra.mxu0 0
      %3303 = vmatprep.mubr.bf16.mxu0 0
      %3304 = vmatmul.mubr.bf16.gmra.mxu0 %v3182
      %v3305 = vpop.f32.mrf.mxu0
      %v3306 = vadd.f32 0.0, %v3305
      %v3307 = vpop.f32.mrf.mxu0
      %v3308 = vpop.f32.mrf.mxu0
      %v3309 = vadd.f32 0.0, %v3308
      %v3310 = vpop.f32.mrf.mxu0
      %3311 = vmatprep.mubr.bf16.mxu0 0
      %3312 = vmatmul.mubr.bf16.gmra.mxu0 %v3183
      %v3313 = vpop.f32.mrf.mxu0
      %v3314 = vadd.f32 0.0, %v3313
      %v3315 = vpop.f32.mrf.mxu0
      %v3316 = vpop.f32.mrf.mxu0
      %v3317 = vadd.f32 0.0, %v3316
      %v3318 = vpop.f32.mrf.mxu0
      %3319 = vmatprep.mubr.bf16.mxu0 0
      %3320 = vmatmul.mubr.bf16.gmra.mxu0 %v3184
      %v3321 = vpop.f32.mrf.mxu0
      %v3322 = vadd.f32 0.0, %v3321
      %v3323 = vpop.f32.mrf.mxu0
      %v3324 = vpop.f32.mrf.mxu0
      %v3325 = vadd.f32 0.0, %v3324
      %v3326 = vpop.f32.mrf.mxu0
      %3327 = vmatprep.mubr.bf16.mxu0 0
      %3328 = vmatmul.mubr.bf16.gmra.mxu0 %v3185
      %v3329 = vpop.f32.mrf.mxu0
      %v3330 = vadd.f32 0.0, %v3329
      %v3331 = vpop.f32.mrf.mxu0
      %v3332 = vpop.f32.mrf.mxu0
      %v3333 = vadd.f32 0.0, %v3332
      %v3334 = vpop.f32.mrf.mxu0
      %3335 = vmatprep.mubr.bf16.mxu0 0
      %3336 = vmatmul.mubr.bf16.gmra.mxu0 %v3186
      %v3337 = vpop.f32.mrf.mxu0
      %v3338 = vadd.f32 0.0, %v3337
      %v3339 = vpop.f32.mrf.mxu0
      %v3340 = vpop.f32.mrf.mxu0
      %v3341 = vadd.f32 0.0, %v3340
      %v3342 = vpop.f32.mrf.mxu0
      %3343 = vmatprep.mubr.bf16.mxu0 0
      %3344 = vmatmul.mubr.bf16.gmra.mxu0 %v3187
      %v3345 = vpop.f32.mrf.mxu0
      %v3346 = vadd.f32 0.0, %v3345
      %v3347 = vpop.f32.mrf.mxu0
      %v3348 = vpop.f32.mrf.mxu0
      %v3349 = vadd.f32 0.0, %v3348
      %v3350 = vpop.f32.mrf.mxu0
      %3351 = vmatprep.mubr.bf16.mxu0 0
      %3352 = vmatmul.mubr.bf16.gmra.mxu0 %v3188
      %v3353 = vpop.f32.mrf.mxu0
      %v3354 = vadd.f32 0.0, %v3353
      %v3355 = vpop.f32.mrf.mxu0
      %v3356 = vpop.f32.mrf.mxu0
      %v3357 = vadd.f32 0.0, %v3356
      %v3358 = vpop.f32.mrf.mxu0
      %3359 = vmatprep.mubr.bf16.mxu0 0
      %3360 = vmatmul.mubr.bf16.gmra.mxu0 %v3189
      %v3361 = vpop.f32.mrf.mxu0
      %v3362 = vadd.f32 0.0, %v3361
      %v3363 = vpop.f32.mrf.mxu0
      %v3364 = vpop.f32.mrf.mxu0
      %v3365 = vadd.f32 0.0, %v3364
      %v3366 = vpop.f32.mrf.mxu0
      %3367 = vdwg.mxu0
      %v3368 = vadd.f32 %v3190, %v3306
      %v3369 = vadd.f32 %v3191, %v3309
      %v3370 = vadd.f32 %v3192, %v3314
      %v3371 = vadd.f32 %v3193, %v3317
      %v3372 = vadd.f32 %v3194, %v3322
      %v3373 = vadd.f32 %v3195, %v3325
      %v3374 = vadd.f32 %v3196, %v3330
      %v3375 = vadd.f32 %v3197, %v3333
      %v3376 = vadd.f32 %v3198, %v3338
      %v3377 = vadd.f32 %v3199, %v3341
      %v3378 = vadd.f32 %v3200, %v3346
      %v3379 = vadd.f32 %v3201, %v3349
      %v3380 = vadd.f32 %v3202, %v3354
      %v3381 = vadd.f32 %v3203, %v3357
      %v3382 = vadd.f32 %v3204, %v3362
      %v3383 = vadd.f32 %v3205, %v3365
      %3384 = vst [vmem:[#allocation5] sm:$0xff] %v3368
      %3385 = vst [vmem:[#allocation5 + $0x8] sm:$0xff] %v3369
      %3386 = vst [vmem:[#allocation5 + $0x10] sm:$0xff] %v3370
      %3387 = vst [vmem:[#allocation5 + $0x18] sm:$0xff] %v3371
      %3388 = vst [vmem:[#allocation5 + $0x20] sm:$0xff] %v3372
      %3389 = vst [vmem:[#allocation5 + $0x28] sm:$0xff] %v3373
      %3390 = vst [vmem:[#allocation5 + $0x30] sm:$0xff] %v3374
      %3391 = vst [vmem:[#allocation5 + $0x38] sm:$0xff] %v3375
      %3392 = vst [vmem:[#allocation5 + $0x40] sm:$0xff] %v3376
      %3393 = vst [vmem:[#allocation5 + $0x48] sm:$0xff] %v3377
      %3394 = vst [vmem:[#allocation5 + $0x50] sm:$0xff] %v3378
      %3395 = vst [vmem:[#allocation5 + $0x58] sm:$0xff] %v3379
      %3396 = vst [vmem:[#allocation5 + $0x60] sm:$0xff] %v3380
      %3397 = vst [vmem:[#allocation5 + $0x68] sm:$0xff] %v3381
      %3398 = vst [vmem:[#allocation5 + $0x70] sm:$0xff] %v3382
      %3399 = vst [vmem:[#allocation5 + $0x78] sm:$0xff] %v3383
      %v3400 = vld [vmem:[#allocation3 + $0x2] sm:$0xff]
      %v3401 = vld [vmem:[#allocation3 + $0xa] sm:$0xff]
      %v3402 = vld [vmem:[#allocation3 + $0x1a] sm:$0xff]
      %v3403 = vld [vmem:[#allocation3 + $0x22] sm:$0xff]
      %v3404 = vld [vmem:[#allocation3 + $0x32] sm:$0xff]
      %v3405 = vld [vmem:[#allocation3 + $0x3a] sm:$0xff]
      %v3406 = vld [vmem:[#allocation3 + $0x4a] sm:$0xff]
      %v3407 = vld [vmem:[#allocation3 + $0x52] sm:$0xff]
      %v3408 = vld [vmem:[#allocation3 + $0x62] sm:$0xff]
      %v3409 = vld [vmem:[#allocation3 + $0x6a] sm:$0xff]
      %v3410 = vld [vmem:[#allocation3 + $0x7a] sm:$0xff]
      %v3411 = vld [vmem:[#allocation3 + $0x82] sm:$0xff]
      %v3412 = vld [vmem:[#allocation3 + $0x92] sm:$0xff]
      %v3413 = vld [vmem:[#allocation3 + $0x9a] sm:$0xff]
      %v3414 = vld [vmem:[#allocation3 + $0xaa] sm:$0xff]
      %v3415 = vld [vmem:[#allocation3 + $0xb2] sm:$0xff]
      %v3416 = vpack.c.bf16 %v3401, %v3400
      %v3417 = vpack.c.bf16 %v3403, %v3402
      %v3418 = vpack.c.bf16 %v3405, %v3404
      %v3419 = vpack.c.bf16 %v3407, %v3406
      %v3420 = vpack.c.bf16 %v3409, %v3408
      %v3421 = vpack.c.bf16 %v3411, %v3410
      %v3422 = vpack.c.bf16 %v3413, %v3412
      %v3423 = vpack.c.bf16 %v3415, %v3414
      %v3424 = vld [vmem:[#allocation5] sm:$0xff]
      %v3425 = vld [vmem:[#allocation5 + $0x8] sm:$0xff]
      %v3426 = vld [vmem:[#allocation5 + $0x10] sm:$0xff]
      %v3427 = vld [vmem:[#allocation5 + $0x18] sm:$0xff]
      %v3428 = vld [vmem:[#allocation5 + $0x20] sm:$0xff]
      %v3429 = vld [vmem:[#allocation5 + $0x28] sm:$0xff]
      %v3430 = vld [vmem:[#allocation5 + $0x30] sm:$0xff]
      %v3431 = vld [vmem:[#allocation5 + $0x38] sm:$0xff]
      %v3432 = vld [vmem:[#allocation5 + $0x40] sm:$0xff]
      %v3433 = vld [vmem:[#allocation5 + $0x48] sm:$0xff]
      %v3434 = vld [vmem:[#allocation5 + $0x50] sm:$0xff]
      %v3435 = vld [vmem:[#allocation5 + $0x58] sm:$0xff]
      %v3436 = vld [vmem:[#allocation5 + $0x60] sm:$0xff]
      %v3437 = vld [vmem:[#allocation5 + $0x68] sm:$0xff]
      %v3438 = vld [vmem:[#allocation5 + $0x70] sm:$0xff]
      %v3439 = vld [vmem:[#allocation5 + $0x78] sm:$0xff]
      %s3440 = scalar_lea.vmem %s6, 128
      %v3441 = vld [vmem:[%s3440] sm:$0xf]
      %v3442 = vld [vmem:[%s3440 + $0x4] sm:$0xf]
      %v3443 = vld [vmem:[%s3440 + $0x8] sm:$0xf]
      %v3444 = vld [vmem:[%s3440 + $0xc] sm:$0xf]
      %v3445 = vld [vmem:[%s3440 + $0x10] sm:$0xf]
      %v3446 = vld [vmem:[%s3440 + $0x14] sm:$0xf]
      %v3447 = vld [vmem:[%s3440 + $0x18] sm:$0xf]
      %v3448 = vld [vmem:[%s3440 + $0x1c] sm:$0xf]
      %v3449 = vld [vmem:[%s3440 + $0x20] sm:$0xf]
      %v3450 = vld [vmem:[%s3440 + $0x24] sm:$0xf]
      %v3451 = vld [vmem:[%s3440 + $0x28] sm:$0xf]
      %v3452 = vld [vmem:[%s3440 + $0x2c] sm:$0xf]
      %v3453 = vld [vmem:[%s3440 + $0x30] sm:$0xf]
      %v3454 = vld [vmem:[%s3440 + $0x34] sm:$0xf]
      %v3455 = vld [vmem:[%s3440 + $0x38] sm:$0xf]
      %v3456 = vld [vmem:[%s3440 + $0x3c] sm:$0xf]
      %v3473 = vunpack.c.l.b16 %v3441
      %v3474 = vunpack.c.l.b16 %v3442
      %v3475 = vunpack.c.l.b16 %v3443
      %v3476 = vunpack.c.l.b16 %v3444
      %v3477 = vunpack.c.l.b16 %v3445
      %v3478 = vunpack.c.l.b16 %v3446
      %v3479 = vunpack.c.l.b16 %v3447
      %v3480 = vunpack.c.l.b16 %v3448
      %v3481 = vunpack.c.l.b16 %v3449
      %v3482 = vunpack.c.l.b16 %v3450
      %v3483 = vunpack.c.l.b16 %v3451
      %v3484 = vunpack.c.l.b16 %v3452
      %v3485 = vunpack.c.l.b16 %v3453
      %v3486 = vunpack.c.l.b16 %v3454
      %v3487 = vunpack.c.l.b16 %v3455
      %v3488 = vunpack.c.l.b16 %v3456
      %v3489 = vpack.c.b16 %v3474, %v3473
      %v3490 = vpack.c.b16 %v3476, %v3475
      %v3491 = vpack.c.b16 %v3478, %v3477
      %v3492 = vpack.c.b16 %v3480, %v3479
      %v3493 = vpack.c.b16 %v3482, %v3481
      %v3494 = vpack.c.b16 %v3484, %v3483
      %v3495 = vpack.c.b16 %v3486, %v3485
      %v3496 = vpack.c.b16 %v3488, %v3487
      %3505 = vmatprep.subr.bf16.mxu0 0
      %3506 = vmatpush1.bf16.msra.mxu0 %v3496
      %3507 = vmatprep.subr.bf16.mxu0 0
      %3508 = vmatpush1.bf16.msra.mxu0 %v3495
      %3509 = vmatprep.subr.bf16.mxu0 0
      %3510 = vmatpush1.bf16.msra.mxu0 %v3494
      %3511 = vmatprep.subr.bf16.mxu0 0
      %3512 = vmatpush1.bf16.msra.mxu0 %v3493
      %3513 = vmatprep.subr.bf16.mxu0 0
      %3514 = vmatpush1.bf16.msra.mxu0 %v3492
      %3515 = vmatprep.subr.bf16.mxu0 0
      %3516 = vmatpush1.bf16.msra.mxu0 %v3491
      %3517 = vmatprep.subr.bf16.mxu0 0
      %3518 = vmatpush1.bf16.msra.mxu0 %v3490
      %3519 = vmatprep.subr.bf16.mxu0 0
      %3520 = vmatpush1.bf16.msra.mxu0 %v3489
      %3521 = vmatprep.subr.bf16.mxu0 0
      %3522 = vmatpush2.bf16.msra.mxu0 0
      %3523 = vmatprep.subr.bf16.mxu0 0
      %3524 = vmatpush2.bf16.msra.mxu0 0
      %3525 = vmatprep.subr.bf16.mxu0 0
      %3526 = vmatpush2.bf16.msra.mxu0 0
      %3527 = vmatprep.subr.bf16.mxu0 0
      %3528 = vmatpush2.bf16.msra.mxu0 0
      %3529 = vmatprep.subr.bf16.mxu0 0
      %3530 = vmatpush2.bf16.msra.mxu0 0
      %3531 = vmatprep.subr.bf16.mxu0 0
      %3532 = vmatpush2.bf16.msra.mxu0 0
      %3533 = vmatprep.subr.bf16.mxu0 0
      %3534 = vmatpush2.bf16.msra.mxu0 0
      %3535 = vmatprep.subr.bf16.mxu0 0
      %3536 = vmatpush2.bf16.msra.mxu0 0
      %3537 = vmatprep.mubr.bf16.mxu0 0
      %3538 = vmatmul.mubr.bf16.gmra.mxu0 %v3416
      %v3539 = vpop.f32.mrf.mxu0
      %v3540 = vadd.f32 0.0, %v3539
      %v3541 = vpop.f32.mrf.mxu0
      %v3542 = vpop.f32.mrf.mxu0
      %v3543 = vadd.f32 0.0, %v3542
      %v3544 = vpop.f32.mrf.mxu0
      %3545 = vmatprep.mubr.bf16.mxu0 0
      %3546 = vmatmul.mubr.bf16.gmra.mxu0 %v3417
      %v3547 = vpop.f32.mrf.mxu0
      %v3548 = vadd.f32 0.0, %v3547
      %v3549 = vpop.f32.mrf.mxu0
      %v3550 = vpop.f32.mrf.mxu0
      %v3551 = vadd.f32 0.0, %v3550
      %v3552 = vpop.f32.mrf.mxu0
      %3553 = vmatprep.mubr.bf16.mxu0 0
      %3554 = vmatmul.mubr.bf16.gmra.mxu0 %v3418
      %v3555 = vpop.f32.mrf.mxu0
      %v3556 = vadd.f32 0.0, %v3555
      %v3557 = vpop.f32.mrf.mxu0
      %v3558 = vpop.f32.mrf.mxu0
      %v3559 = vadd.f32 0.0, %v3558
      %v3560 = vpop.f32.mrf.mxu0
      %3561 = vmatprep.mubr.bf16.mxu0 0
      %3562 = vmatmul.mubr.bf16.gmra.mxu0 %v3419
      %v3563 = vpop.f32.mrf.mxu0
      %v3564 = vadd.f32 0.0, %v3563
      %v3565 = vpop.f32.mrf.mxu0
      %v3566 = vpop.f32.mrf.mxu0
      %v3567 = vadd.f32 0.0, %v3566
      %v3568 = vpop.f32.mrf.mxu0
      %3569 = vmatprep.mubr.bf16.mxu0 0
      %3570 = vmatmul.mubr.bf16.gmra.mxu0 %v3420
      %v3571 = vpop.f32.mrf.mxu0
      %v3572 = vadd.f32 0.0, %v3571
      %v3573 = vpop.f32.mrf.mxu0
      %v3574 = vpop.f32.mrf.mxu0
      %v3575 = vadd.f32 0.0, %v3574
      %v3576 = vpop.f32.mrf.mxu0
      %3577 = vmatprep.mubr.bf16.mxu0 0
      %3578 = vmatmul.mubr.bf16.gmra.mxu0 %v3421
      %v3579 = vpop.f32.mrf.mxu0
      %v3580 = vadd.f32 0.0, %v3579
      %v3581 = vpop.f32.mrf.mxu0
      %v3582 = vpop.f32.mrf.mxu0
      %v3583 = vadd.f32 0.0, %v3582
      %v3584 = vpop.f32.mrf.mxu0
      %3585 = vmatprep.mubr.bf16.mxu0 0
      %3586 = vmatmul.mubr.bf16.gmra.mxu0 %v3422
      %v3587 = vpop.f32.mrf.mxu0
      %v3588 = vadd.f32 0.0, %v3587
      %v3589 = vpop.f32.mrf.mxu0
      %v3590 = vpop.f32.mrf.mxu0
      %v3591 = vadd.f32 0.0, %v3590
      %v3592 = vpop.f32.mrf.mxu0
      %3593 = vmatprep.mubr.bf16.mxu0 0
      %3594 = vmatmul.mubr.bf16.gmra.mxu0 %v3423
      %v3595 = vpop.f32.mrf.mxu0
      %v3596 = vadd.f32 0.0, %v3595
      %v3597 = vpop.f32.mrf.mxu0
      %v3598 = vpop.f32.mrf.mxu0
      %v3599 = vadd.f32 0.0, %v3598
      %v3600 = vpop.f32.mrf.mxu0
      %3601 = vdwg.mxu0
      %v3602 = vadd.f32 %v3424, %v3540
      %v3603 = vadd.f32 %v3425, %v3543
      %v3604 = vadd.f32 %v3426, %v3548
      %v3605 = vadd.f32 %v3427, %v3551
      %v3606 = vadd.f32 %v3428, %v3556
      %v3607 = vadd.f32 %v3429, %v3559
      %v3608 = vadd.f32 %v3430, %v3564
      %v3609 = vadd.f32 %v3431, %v3567
      %v3610 = vadd.f32 %v3432, %v3572
      %v3611 = vadd.f32 %v3433, %v3575
      %v3612 = vadd.f32 %v3434, %v3580
      %v3613 = vadd.f32 %v3435, %v3583
      %v3614 = vadd.f32 %v3436, %v3588
      %v3615 = vadd.f32 %v3437, %v3591
      %v3616 = vadd.f32 %v3438, %v3596
      %v3617 = vadd.f32 %v3439, %v3599
      %3618 = vst [vmem:[#allocation5] sm:$0xff] %v3602
      %3619 = vst [vmem:[#allocation5 + $0x8] sm:$0xff] %v3603
      %3620 = vst [vmem:[#allocation5 + $0x10] sm:$0xff] %v3604
      %3621 = vst [vmem:[#allocation5 + $0x18] sm:$0xff] %v3605
      %3622 = vst [vmem:[#allocation5 + $0x20] sm:$0xff] %v3606
      %3623 = vst [vmem:[#allocation5 + $0x28] sm:$0xff] %v3607
      %3624 = vst [vmem:[#allocation5 + $0x30] sm:$0xff] %v3608
      %3625 = vst [vmem:[#allocation5 + $0x38] sm:$0xff] %v3609
      %3626 = vst [vmem:[#allocation5 + $0x40] sm:$0xff] %v3610
      %3627 = vst [vmem:[#allocation5 + $0x48] sm:$0xff] %v3611
      %3628 = vst [vmem:[#allocation5 + $0x50] sm:$0xff] %v3612
      %3629 = vst [vmem:[#allocation5 + $0x58] sm:$0xff] %v3613
      %3630 = vst [vmem:[#allocation5 + $0x60] sm:$0xff] %v3614
      %3631 = vst [vmem:[#allocation5 + $0x68] sm:$0xff] %v3615
      %3632 = vst [vmem:[#allocation5 + $0x70] sm:$0xff] %v3616
      %3633 = vst [vmem:[#allocation5 + $0x78] sm:$0xff] %v3617
      %s3634 = scalar_lea.vmem [#allocation3], 24
      %v3635 = vld [vmem:[%s3634] sm:$0xff]
      %v3636 = vld [vmem:[%s3634 + $0x8] sm:$0xff]
      %v3637 = vld [vmem:[%s3634 + $0x18] sm:$0xff]
      %v3638 = vld [vmem:[%s3634 + $0x20] sm:$0xff]
      %v3639 = vld [vmem:[%s3634 + $0x30] sm:$0xff]
      %v3640 = vld [vmem:[%s3634 + $0x38] sm:$0xff]
      %v3641 = vld [vmem:[%s3634 + $0x48] sm:$0xff]
      %v3642 = vld [vmem:[%s3634 + $0x50] sm:$0xff]
      %v3643 = vld [vmem:[%s3634 + $0x60] sm:$0xff]
      %v3644 = vld [vmem:[%s3634 + $0x68] sm:$0xff]
      %v3645 = vld [vmem:[%s3634 + $0x78] sm:$0xff]
      %v3646 = vld [vmem:[%s3634 + $0x80] sm:$0xff]
      %v3647 = vld [vmem:[%s3634 + $0x90] sm:$0xff]
      %v3648 = vld [vmem:[%s3634 + $0x98] sm:$0xff]
      %v3649 = vld [vmem:[%s3634 + $0xa8] sm:$0xff]
      %v3650 = vld [vmem:[%s3634 + $0xb0] sm:$0xff]
      %v3651 = vpack.c.bf16 %v3636, %v3635
      %v3652 = vpack.c.bf16 %v3638, %v3637
      %v3653 = vpack.c.bf16 %v3640, %v3639
      %v3654 = vpack.c.bf16 %v3642, %v3641
      %v3655 = vpack.c.bf16 %v3644, %v3643
      %v3656 = vpack.c.bf16 %v3646, %v3645
      %v3657 = vpack.c.bf16 %v3648, %v3647
      %v3658 = vpack.c.bf16 %v3650, %v3649
      %v3659 = vld [vmem:[#allocation5] sm:$0xff]
      %v3660 = vld [vmem:[#allocation5 + $0x8] sm:$0xff]
      %v3661 = vld [vmem:[#allocation5 + $0x10] sm:$0xff]
      %v3662 = vld [vmem:[#allocation5 + $0x18] sm:$0xff]
      %v3663 = vld [vmem:[#allocation5 + $0x20] sm:$0xff]
      %v3664 = vld [vmem:[#allocation5 + $0x28] sm:$0xff]
      %v3665 = vld [vmem:[#allocation5 + $0x30] sm:$0xff]
      %v3666 = vld [vmem:[#allocation5 + $0x38] sm:$0xff]
      %v3667 = vld [vmem:[#allocation5 + $0x40] sm:$0xff]
      %v3668 = vld [vmem:[#allocation5 + $0x48] sm:$0xff]
      %v3669 = vld [vmem:[#allocation5 + $0x50] sm:$0xff]
      %v3670 = vld [vmem:[#allocation5 + $0x58] sm:$0xff]
      %v3671 = vld [vmem:[#allocation5 + $0x60] sm:$0xff]
      %v3672 = vld [vmem:[#allocation5 + $0x68] sm:$0xff]
      %v3673 = vld [vmem:[#allocation5 + $0x70] sm:$0xff]
      %v3674 = vld [vmem:[#allocation5 + $0x78] sm:$0xff]
      %s3675 = scalar_lea.vmem %s6, 192
      %v3676 = vld [vmem:[%s3675] sm:$0xf]
      %v3677 = vld [vmem:[%s3675 + $0x4] sm:$0xf]
      %v3678 = vld [vmem:[%s3675 + $0x8] sm:$0xf]
      %v3679 = vld [vmem:[%s3675 + $0xc] sm:$0xf]
      %v3680 = vld [vmem:[%s3675 + $0x10] sm:$0xf]
      %v3681 = vld [vmem:[%s3675 + $0x14] sm:$0xf]
      %v3682 = vld [vmem:[%s3675 + $0x18] sm:$0xf]
      %v3683 = vld [vmem:[%s3675 + $0x1c] sm:$0xf]
      %v3684 = vld [vmem:[%s3675 + $0x20] sm:$0xf]
      %v3685 = vld [vmem:[%s3675 + $0x24] sm:$0xf]
      %v3686 = vld [vmem:[%s3675 + $0x28] sm:$0xf]
      %v3687 = vld [vmem:[%s3675 + $0x2c] sm:$0xf]
      %v3688 = vld [vmem:[%s3675 + $0x30] sm:$0xf]
      %v3689 = vld [vmem:[%s3675 + $0x34] sm:$0xf]
      %v3690 = vld [vmem:[%s3675 + $0x38] sm:$0xf]
      %v3691 = vld [vmem:[%s3675 + $0x3c] sm:$0xf]
      %v3708 = vunpack.c.l.b16 %v3676
      %v3709 = vunpack.c.l.b16 %v3677
      %v3710 = vunpack.c.l.b16 %v3678
      %v3711 = vunpack.c.l.b16 %v3679
      %v3712 = vunpack.c.l.b16 %v3680
      %v3713 = vunpack.c.l.b16 %v3681
      %v3714 = vunpack.c.l.b16 %v3682
      %v3715 = vunpack.c.l.b16 %v3683
      %v3716 = vunpack.c.l.b16 %v3684
      %v3717 = vunpack.c.l.b16 %v3685
      %v3718 = vunpack.c.l.b16 %v3686
      %v3719 = vunpack.c.l.b16 %v3687
      %v3720 = vunpack.c.l.b16 %v3688
      %v3721 = vunpack.c.l.b16 %v3689
      %v3722 = vunpack.c.l.b16 %v3690
      %v3723 = vunpack.c.l.b16 %v3691
      %v3724 = vpack.c.b16 %v3709, %v3708
      %v3725 = vpack.c.b16 %v3711, %v3710
      %v3726 = vpack.c.b16 %v3713, %v3712
      %v3727 = vpack.c.b16 %v3715, %v3714
      %v3728 = vpack.c.b16 %v3717, %v3716
      %v3729 = vpack.c.b16 %v3719, %v3718
      %v3730 = vpack.c.b16 %v3721, %v3720
      %v3731 = vpack.c.b16 %v3723, %v3722
      %3740 = vmatprep.subr.bf16.mxu0 0
      %3741 = vmatpush1.bf16.msra.mxu0 %v3731
      %3742 = vmatprep.subr.bf16.mxu0 0
      %3743 = vmatpush1.bf16.msra.mxu0 %v3730
      %3744 = vmatprep.subr.bf16.mxu0 0
      %3745 = vmatpush1.bf16.msra.mxu0 %v3729
      %3746 = vmatprep.subr.bf16.mxu0 0
      %3747 = vmatpush1.bf16.msra.mxu0 %v3728
      %3748 = vmatprep.subr.bf16.mxu0 0
      %3749 = vmatpush1.bf16.msra.mxu0 %v3727
      %3750 = vmatprep.subr.bf16.mxu0 0
      %3751 = vmatpush1.bf16.msra.mxu0 %v3726
      %3752 = vmatprep.subr.bf16.mxu0 0
      %3753 = vmatpush1.bf16.msra.mxu0 %v3725
      %3754 = vmatprep.subr.bf16.mxu0 0
      %3755 = vmatpush1.bf16.msra.mxu0 %v3724
      %3756 = vmatprep.subr.bf16.mxu0 0
      %3757 = vmatpush2.bf16.msra.mxu0 0
      %3758 = vmatprep.subr.bf16.mxu0 0
      %3759 = vmatpush2.bf16.msra.mxu0 0
      %3760 = vmatprep.subr.bf16.mxu0 0
      %3761 = vmatpush2.bf16.msra.mxu0 0
      %3762 = vmatprep.subr.bf16.mxu0 0
      %3763 = vmatpush2.bf16.msra.mxu0 0
      %3764 = vmatprep.subr.bf16.mxu0 0
      %3765 = vmatpush2.bf16.msra.mxu0 0
      %3766 = vmatprep.subr.bf16.mxu0 0
      %3767 = vmatpush2.bf16.msra.mxu0 0
      %3768 = vmatprep.subr.bf16.mxu0 0
      %3769 = vmatpush2.bf16.msra.mxu0 0
      %3770 = vmatprep.subr.bf16.mxu0 0
      %3771 = vmatpush2.bf16.msra.mxu0 0
      %3772 = vmatprep.mubr.bf16.mxu0 0
      %3773 = vmatmul.mubr.bf16.gmra.mxu0 %v3651
      %v3774 = vpop.f32.mrf.mxu0
      %v3775 = vadd.f32 0.0, %v3774
      %v3776 = vpop.f32.mrf.mxu0
      %v3777 = vpop.f32.mrf.mxu0
      %v3778 = vadd.f32 0.0, %v3777
      %v3779 = vpop.f32.mrf.mxu0
      %3780 = vmatprep.mubr.bf16.mxu0 0
      %3781 = vmatmul.mubr.bf16.gmra.mxu0 %v3652
      %v3782 = vpop.f32.mrf.mxu0
      %v3783 = vadd.f32 0.0, %v3782
      %v3784 = vpop.f32.mrf.mxu0
      %v3785 = vpop.f32.mrf.mxu0
      %v3786 = vadd.f32 0.0, %v3785
      %v3787 = vpop.f32.mrf.mxu0
      %3788 = vmatprep.mubr.bf16.mxu0 0
      %3789 = vmatmul.mubr.bf16.gmra.mxu0 %v3653
      %v3790 = vpop.f32.mrf.mxu0
      %v3791 = vadd.f32 0.0, %v3790
      %v3792 = vpop.f32.mrf.mxu0
      %v3793 = vpop.f32.mrf.mxu0
      %v3794 = vadd.f32 0.0, %v3793
      %v3795 = vpop.f32.mrf.mxu0
      %3796 = vmatprep.mubr.bf16.mxu0 0
      %3797 = vmatmul.mubr.bf16.gmra.mxu0 %v3654
      %v3798 = vpop.f32.mrf.mxu0
      %v3799 = vadd.f32 0.0, %v3798
      %v3800 = vpop.f32.mrf.mxu0
      %v3801 = vpop.f32.mrf.mxu0
      %v3802 = vadd.f32 0.0, %v3801
      %v3803 = vpop.f32.mrf.mxu0
      %3804 = vmatprep.mubr.bf16.mxu0 0
      %3805 = vmatmul.mubr.bf16.gmra.mxu0 %v3655
      %v3806 = vpop.f32.mrf.mxu0
      %v3807 = vadd.f32 0.0, %v3806
      %v3808 = vpop.f32.mrf.mxu0
      %v3809 = vpop.f32.mrf.mxu0
      %v3810 = vadd.f32 0.0, %v3809
      %v3811 = vpop.f32.mrf.mxu0
      %3812 = vmatprep.mubr.bf16.mxu0 0
      %3813 = vmatmul.mubr.bf16.gmra.mxu0 %v3656
      %v3814 = vpop.f32.mrf.mxu0
      %v3815 = vadd.f32 0.0, %v3814
      %v3816 = vpop.f32.mrf.mxu0
      %v3817 = vpop.f32.mrf.mxu0
      %v3818 = vadd.f32 0.0, %v3817
      %v3819 = vpop.f32.mrf.mxu0
      %3820 = vmatprep.mubr.bf16.mxu0 0
      %3821 = vmatmul.mubr.bf16.gmra.mxu0 %v3657
      %v3822 = vpop.f32.mrf.mxu0
      %v3823 = vadd.f32 0.0, %v3822
      %v3824 = vpop.f32.mrf.mxu0
      %v3825 = vpop.f32.mrf.mxu0
      %v3826 = vadd.f32 0.0, %v3825
      %v3827 = vpop.f32.mrf.mxu0
      %3828 = vmatprep.mubr.bf16.mxu0 0
      %3829 = vmatmul.mubr.bf16.gmra.mxu0 %v3658
      %v3830 = vpop.f32.mrf.mxu0
      %v3831 = vadd.f32 0.0, %v3830
      %v3832 = vpop.f32.mrf.mxu0
      %v3833 = vpop.f32.mrf.mxu0
      %v3834 = vadd.f32 0.0, %v3833
      %v3835 = vpop.f32.mrf.mxu0
      %3836 = vdwg.mxu0
      %v3837 = vadd.f32 %v3659, %v3775
      %v3838 = vadd.f32 %v3660, %v3778
      %v3839 = vadd.f32 %v3661, %v3783
      %v3840 = vadd.f32 %v3662, %v3786
      %v3841 = vadd.f32 %v3663, %v3791
      %v3842 = vadd.f32 %v3664, %v3794
      %v3843 = vadd.f32 %v3665, %v3799
      %v3844 = vadd.f32 %v3666, %v3802
      %v3845 = vadd.f32 %v3667, %v3807
      %v3846 = vadd.f32 %v3668, %v3810
      %v3847 = vadd.f32 %v3669, %v3815
      %v3848 = vadd.f32 %v3670, %v3818
      %v3849 = vadd.f32 %v3671, %v3823
      %v3850 = vadd.f32 %v3672, %v3826
      %v3851 = vadd.f32 %v3673, %v3831
      %v3852 = vadd.f32 %v3674, %v3834
      %3853 = vst [vmem:[#allocation5] sm:$0xff] %v3837
      %3854 = vst [vmem:[#allocation5 + $0x8] sm:$0xff] %v3838
      %3855 = vst [vmem:[#allocation5 + $0x10] sm:$0xff] %v3839
      %3856 = vst [vmem:[#allocation5 + $0x18] sm:$0xff] %v3840
      %3857 = vst [vmem:[#allocation5 + $0x20] sm:$0xff] %v3841
      %3858 = vst [vmem:[#allocation5 + $0x28] sm:$0xff] %v3842
      %3859 = vst [vmem:[#allocation5 + $0x30] sm:$0xff] %v3843
      %3860 = vst [vmem:[#allocation5 + $0x38] sm:$0xff] %v3844
      %3861 = vst [vmem:[#allocation5 + $0x40] sm:$0xff] %v3845
      %3862 = vst [vmem:[#allocation5 + $0x48] sm:$0xff] %v3846
      %3863 = vst [vmem:[#allocation5 + $0x50] sm:$0xff] %v3847
      %3864 = vst [vmem:[#allocation5 + $0x58] sm:$0xff] %v3848
      %3865 = vst [vmem:[#allocation5 + $0x60] sm:$0xff] %v3849
      %3866 = vst [vmem:[#allocation5 + $0x68] sm:$0xff] %v3850
      %3867 = vst [vmem:[#allocation5 + $0x70] sm:$0xff] %v3851
      %3868 = vst [vmem:[#allocation5 + $0x78] sm:$0xff] %v3852
      %v3869 = vld [vmem:[%s3634 + $0x1] sm:$0xff]
      %v3870 = vld [vmem:[%s3634 + $0x9] sm:$0xff]
      %v3871 = vld [vmem:[%s3634 + $0x19] sm:$0xff]
      %v3872 = vld [vmem:[%s3634 + $0x21] sm:$0xff]
      %v3873 = vld [vmem:[%s3634 + $0x31] sm:$0xff]
      %v3874 = vld [vmem:[%s3634 + $0x39] sm:$0xff]
      %v3875 = vld [vmem:[%s3634 + $0x49] sm:$0xff]
      %v3876 = vld [vmem:[%s3634 + $0x51] sm:$0xff]
      %v3877 = vld [vmem:[%s3634 + $0x61] sm:$0xff]
      %v3878 = vld [vmem:[%s3634 + $0x69] sm:$0xff]
      %v3879 = vld [vmem:[%s3634 + $0x79] sm:$0xff]
      %v3880 = vld [vmem:[%s3634 + $0x81] sm:$0xff]
      %v3881 = vld [vmem:[%s3634 + $0x91] sm:$0xff]
      %v3882 = vld [vmem:[%s3634 + $0x99] sm:$0xff]
      %v3883 = vld [vmem:[%s3634 + $0xa9] sm:$0xff]
      %v3884 = vld [vmem:[%s3634 + $0xb1] sm:$0xff]
      %v3885 = vpack.c.bf16 %v3870, %v3869
      %v3886 = vpack.c.bf16 %v3872, %v3871
      %v3887 = vpack.c.bf16 %v3874, %v3873
      %v3888 = vpack.c.bf16 %v3876, %v3875
      %v3889 = vpack.c.bf16 %v3878, %v3877
      %v3890 = vpack.c.bf16 %v3880, %v3879
      %v3891 = vpack.c.bf16 %v3882, %v3881
      %v3892 = vpack.c.bf16 %v3884, %v3883
      %v3893 = vld [vmem:[#allocation5] sm:$0xff]
      %v3894 = vld [vmem:[#allocation5 + $0x8] sm:$0xff]
      %v3895 = vld [vmem:[#allocation5 + $0x10] sm:$0xff]
      %v3896 = vld [vmem:[#allocation5 + $0x18] sm:$0xff]
      %v3897 = vld [vmem:[#allocation5 + $0x20] sm:$0xff]
      %v3898 = vld [vmem:[#allocation5 + $0x28] sm:$0xff]
      %v3899 = vld [vmem:[#allocation5 + $0x30] sm:$0xff]
      %v3900 = vld [vmem:[#allocation5 + $0x38] sm:$0xff]
      %v3901 = vld [vmem:[#allocation5 + $0x40] sm:$0xff]
      %v3902 = vld [vmem:[#allocation5 + $0x48] sm:$0xff]
      %v3903 = vld [vmem:[#allocation5 + $0x50] sm:$0xff]
      %v3904 = vld [vmem:[#allocation5 + $0x58] sm:$0xff]
      %v3905 = vld [vmem:[#allocation5 + $0x60] sm:$0xff]
      %v3906 = vld [vmem:[#allocation5 + $0x68] sm:$0xff]
      %v3907 = vld [vmem:[#allocation5 + $0x70] sm:$0xff]
      %v3908 = vld [vmem:[#allocation5 + $0x78] sm:$0xff]
      %s3909 = scalar_lea.vmem %s6, 256
      %v3910 = vld [vmem:[%s3909] sm:$0xf]
      %v3911 = vld [vmem:[%s3909 + $0x4] sm:$0xf]
      %v3912 = vld [vmem:[%s3909 + $0x8] sm:$0xf]
      %v3913 = vld [vmem:[%s3909 + $0xc] sm:$0xf]
      %v3914 = vld [vmem:[%s3909 + $0x10] sm:$0xf]
      %v3915 = vld [vmem:[%s3909 + $0x14] sm:$0xf]
      %v3916 = vld [vmem:[%s3909 + $0x18] sm:$0xf]
      %v3917 = vld [vmem:[%s3909 + $0x1c] sm:$0xf]
      %v3918 = vld [vmem:[%s3909 + $0x20] sm:$0xf]
      %v3919 = vld [vmem:[%s3909 + $0x24] sm:$0xf]
      %v3920 = vld [vmem:[%s3909 + $0x28] sm:$0xf]
      %v3921 = vld [vmem:[%s3909 + $0x2c] sm:$0xf]
      %v3922 = vld [vmem:[%s3909 + $0x30] sm:$0xf]
      %v3923 = vld [vmem:[%s3909 + $0x34] sm:$0xf]
      %v3924 = vld [vmem:[%s3909 + $0x38] sm:$0xf]
      %v3925 = vld [vmem:[%s3909 + $0x3c] sm:$0xf]
      %v3942 = vunpack.c.l.b16 %v3910
      %v3943 = vunpack.c.l.b16 %v3911
      %v3944 = vunpack.c.l.b16 %v3912
      %v3945 = vunpack.c.l.b16 %v3913
      %v3946 = vunpack.c.l.b16 %v3914
      %v3947 = vunpack.c.l.b16 %v3915
      %v3948 = vunpack.c.l.b16 %v3916
      %v3949 = vunpack.c.l.b16 %v3917
      %v3950 = vunpack.c.l.b16 %v3918
      %v3951 = vunpack.c.l.b16 %v3919
      %v3952 = vunpack.c.l.b16 %v3920
      %v3953 = vunpack.c.l.b16 %v3921
      %v3954 = vunpack.c.l.b16 %v3922
      %v3955 = vunpack.c.l.b16 %v3923
      %v3956 = vunpack.c.l.b16 %v3924
      %v3957 = vunpack.c.l.b16 %v3925
      %v3958 = vpack.c.b16 %v3943, %v3942
      %v3959 = vpack.c.b16 %v3945, %v3944
      %v3960 = vpack.c.b16 %v3947, %v3946
      %v3961 = vpack.c.b16 %v3949, %v3948
      %v3962 = vpack.c.b16 %v3951, %v3950
      %v3963 = vpack.c.b16 %v3953, %v3952
      %v3964 = vpack.c.b16 %v3955, %v3954
      %v3965 = vpack.c.b16 %v3957, %v3956
      %3974 = vmatprep.subr.bf16.mxu0 0
      %3975 = vmatpush1.bf16.msra.mxu0 %v3965
      %3976 = vmatprep.subr.bf16.mxu0 0
      %3977 = vmatpush1.bf16.msra.mxu0 %v3964
      %3978 = vmatprep.subr.bf16.mxu0 0
      %3979 = vmatpush1.bf16.msra.mxu0 %v3963
      %3980 = vmatprep.subr.bf16.mxu0 0
      %3981 = vmatpush1.bf16.msra.mxu0 %v3962
      %3982 = vmatprep.subr.bf16.mxu0 0
      %3983 = vmatpush1.bf16.msra.mxu0 %v3961
      %3984 = vmatprep.subr.bf16.mxu0 0
      %3985 = vmatpush1.bf16.msra.mxu0 %v3960
      %3986 = vmatprep.subr.bf16.mxu0 0
      %3987 = vmatpush1.bf16.msra.mxu0 %v3959
      %3988 = vmatprep.subr.bf16.mxu0 0
      %3989 = vmatpush1.bf16.msra.mxu0 %v3958
      %3990 = vmatprep.subr.bf16.mxu0 0
      %3991 = vmatpush2.bf16.msra.mxu0 0
      %3992 = vmatprep.subr.bf16.mxu0 0
      %3993 = vmatpush2.bf16.msra.mxu0 0
      %3994 = vmatprep.subr.bf16.mxu0 0
      %3995 = vmatpush2.bf16.msra.mxu0 0
      %3996 = vmatprep.subr.bf16.mxu0 0
      %3997 = vmatpush2.bf16.msra.mxu0 0
      %3998 = vmatprep.subr.bf16.mxu0 0
      %3999 = vmatpush2.bf16.msra.mxu0 0
      %4000 = vmatprep.subr.bf16.mxu0 0
      %4001 = vmatpush2.bf16.msra.mxu0 0
      %4002 = vmatprep.subr.bf16.mxu0 0
      %4003 = vmatpush2.bf16.msra.mxu0 0
      %4004 = vmatprep.subr.bf16.mxu0 0
      %4005 = vmatpush2.bf16.msra.mxu0 0
      %4006 = vmatprep.mubr.bf16.mxu0 0
      %4007 = vmatmul.mubr.bf16.gmra.mxu0 %v3885
      %v4008 = vpop.f32.mrf.mxu0
      %v4009 = vadd.f32 0.0, %v4008
      %v4010 = vpop.f32.mrf.mxu0
      %v4011 = vpop.f32.mrf.mxu0
      %v4012 = vadd.f32 0.0, %v4011
      %v4013 = vpop.f32.mrf.mxu0
      %4014 = vmatprep.mubr.bf16.mxu0 0
      %4015 = vmatmul.mubr.bf16.gmra.mxu0 %v3886
      %v4016 = vpop.f32.mrf.mxu0
      %v4017 = vadd.f32 0.0, %v4016
      %v4018 = vpop.f32.mrf.mxu0
      %v4019 = vpop.f32.mrf.mxu0
      %v4020 = vadd.f32 0.0, %v4019
      %v4021 = vpop.f32.mrf.mxu0
      %4022 = vmatprep.mubr.bf16.mxu0 0
      %4023 = vmatmul.mubr.bf16.gmra.mxu0 %v3887
      %v4024 = vpop.f32.mrf.mxu0
      %v4025 = vadd.f32 0.0, %v4024
      %v4026 = vpop.f32.mrf.mxu0
      %v4027 = vpop.f32.mrf.mxu0
      %v4028 = vadd.f32 0.0, %v4027
      %v4029 = vpop.f32.mrf.mxu0
      %4030 = vmatprep.mubr.bf16.mxu0 0
      %4031 = vmatmul.mubr.bf16.gmra.mxu0 %v3888
      %v4032 = vpop.f32.mrf.mxu0
      %v4033 = vadd.f32 0.0, %v4032
      %v4034 = vpop.f32.mrf.mxu0
      %v4035 = vpop.f32.mrf.mxu0
      %v4036 = vadd.f32 0.0, %v4035
      %v4037 = vpop.f32.mrf.mxu0
      %4038 = vmatprep.mubr.bf16.mxu0 0
      %4039 = vmatmul.mubr.bf16.gmra.mxu0 %v3889
      %v4040 = vpop.f32.mrf.mxu0
      %v4041 = vadd.f32 0.0, %v4040
      %v4042 = vpop.f32.mrf.mxu0
      %v4043 = vpop.f32.mrf.mxu0
      %v4044 = vadd.f32 0.0, %v4043
      %v4045 = vpop.f32.mrf.mxu0
      %4046 = vmatprep.mubr.bf16.mxu0 0
      %4047 = vmatmul.mubr.bf16.gmra.mxu0 %v3890
      %v4048 = vpop.f32.mrf.mxu0
      %v4049 = vadd.f32 0.0, %v4048
      %v4050 = vpop.f32.mrf.mxu0
      %v4051 = vpop.f32.mrf.mxu0
      %v4052 = vadd.f32 0.0, %v4051
      %v4053 = vpop.f32.mrf.mxu0
      %4054 = vmatprep.mubr.bf16.mxu0 0
      %4055 = vmatmul.mubr.bf16.gmra.mxu0 %v3891
      %v4056 = vpop.f32.mrf.mxu0
      %v4057 = vadd.f32 0.0, %v4056
      %v4058 = vpop.f32.mrf.mxu0
      %v4059 = vpop.f32.mrf.mxu0
      %v4060 = vadd.f32 0.0, %v4059
      %v4061 = vpop.f32.mrf.mxu0
      %4062 = vmatprep.mubr.bf16.mxu0 0
      %4063 = vmatmul.mubr.bf16.gmra.mxu0 %v3892
      %v4064 = vpop.f32.mrf.mxu0
      %v4065 = vadd.f32 0.0, %v4064
      %v4066 = vpop.f32.mrf.mxu0
      %v4067 = vpop.f32.mrf.mxu0
      %v4068 = vadd.f32 0.0, %v4067
      %v4069 = vpop.f32.mrf.mxu0
      %4070 = vdwg.mxu0
      %v4071 = vadd.f32 %v3893, %v4009
      %v4072 = vadd.f32 %v3894, %v4012
      %v4073 = vadd.f32 %v3895, %v4017
      %v4074 = vadd.f32 %v3896, %v4020
      %v4075 = vadd.f32 %v3897, %v4025
      %v4076 = vadd.f32 %v3898, %v4028
      %v4077 = vadd.f32 %v3899, %v4033
      %v4078 = vadd.f32 %v3900, %v4036
      %v4079 = vadd.f32 %v3901, %v4041
      %v4080 = vadd.f32 %v3902, %v4044
      %v4081 = vadd.f32 %v3903, %v4049
      %v4082 = vadd.f32 %v3904, %v4052
      %v4083 = vadd.f32 %v3905, %v4057
      %v4084 = vadd.f32 %v3906, %v4060
      %v4085 = vadd.f32 %v3907, %v4065
      %v4086 = vadd.f32 %v3908, %v4068
      %4087 = vst [vmem:[#allocation5] sm:$0xff] %v4071
      %4088 = vst [vmem:[#allocation5 + $0x8] sm:$0xff] %v4072
      %4089 = vst [vmem:[#allocation5 + $0x10] sm:$0xff] %v4073
      %4090 = vst [vmem:[#allocation5 + $0x18] sm:$0xff] %v4074
      %4091 = vst [vmem:[#allocation5 + $0x20] sm:$0xff] %v4075
      %4092 = vst [vmem:[#allocation5 + $0x28] sm:$0xff] %v4076
      %4093 = vst [vmem:[#allocation5 + $0x30] sm:$0xff] %v4077
      %4094 = vst [vmem:[#allocation5 + $0x38] sm:$0xff] %v4078
      %4095 = vst [vmem:[#allocation5 + $0x40] sm:$0xff] %v4079
      %4096 = vst [vmem:[#allocation5 + $0x48] sm:$0xff] %v4080
      %4097 = vst [vmem:[#allocation5 + $0x50] sm:$0xff] %v4081
      %4098 = vst [vmem:[#allocation5 + $0x58] sm:$0xff] %v4082
      %4099 = vst [vmem:[#allocation5 + $0x60] sm:$0xff] %v4083
      %4100 = vst [vmem:[#allocation5 + $0x68] sm:$0xff] %v4084
      %4101 = vst [vmem:[#allocation5 + $0x70] sm:$0xff] %v4085
      %4102 = vst [vmem:[#allocation5 + $0x78] sm:$0xff] %v4086
      %v4103 = vld [vmem:[%s3634 + $0x2] sm:$0xff]
      %v4104 = vld [vmem:[%s3634 + $0xa] sm:$0xff]
      %v4105 = vld [vmem:[%s3634 + $0x1a] sm:$0xff]
      %v4106 = vld [vmem:[%s3634 + $0x22] sm:$0xff]
      %v4107 = vld [vmem:[%s3634 + $0x32] sm:$0xff]
      %v4108 = vld [vmem:[%s3634 + $0x3a] sm:$0xff]
      %v4109 = vld [vmem:[%s3634 + $0x4a] sm:$0xff]
      %v4110 = vld [vmem:[%s3634 + $0x52] sm:$0xff]
      %v4111 = vld [vmem:[%s3634 + $0x62] sm:$0xff]
      %v4112 = vld [vmem:[%s3634 + $0x6a] sm:$0xff]
      %v4113 = vld [vmem:[%s3634 + $0x7a] sm:$0xff]
      %v4114 = vld [vmem:[%s3634 + $0x82] sm:$0xff]
      %v4115 = vld [vmem:[%s3634 + $0x92] sm:$0xff]
      %v4116 = vld [vmem:[%s3634 + $0x9a] sm:$0xff]
      %v4117 = vld [vmem:[%s3634 + $0xaa] sm:$0xff]
      %v4118 = vld [vmem:[%s3634 + $0xb2] sm:$0xff]
      %v4119 = vpack.c.bf16 %v4104, %v4103
      %v4120 = vpack.c.bf16 %v4106, %v4105
      %v4121 = vpack.c.bf16 %v4108, %v4107
      %v4122 = vpack.c.bf16 %v4110, %v4109
      %v4123 = vpack.c.bf16 %v4112, %v4111
      %v4124 = vpack.c.bf16 %v4114, %v4113
      %v4125 = vpack.c.bf16 %v4116, %v4115
      %v4126 = vpack.c.bf16 %v4118, %v4117
      %v4127 = vld [vmem:[#allocation5] sm:$0xff]
      %v4128 = vld [vmem:[#allocation5 + $0x8] sm:$0xff]
      %v4129 = vld [vmem:[#allocation5 + $0x10] sm:$0xff]
      %v4130 = vld [vmem:[#allocation5 + $0x18] sm:$0xff]
      %v4131 = vld [vmem:[#allocation5 + $0x20] sm:$0xff]
      %v4132 = vld [vmem:[#allocation5 + $0x28] sm:$0xff]
      %v4133 = vld [vmem:[#allocation5 + $0x30] sm:$0xff]
      %v4134 = vld [vmem:[#allocation5 + $0x38] sm:$0xff]
      %v4135 = vld [vmem:[#allocation5 + $0x40] sm:$0xff]
      %v4136 = vld [vmem:[#allocation5 + $0x48] sm:$0xff]
      %v4137 = vld [vmem:[#allocation5 + $0x50] sm:$0xff]
      %v4138 = vld [vmem:[#allocation5 + $0x58] sm:$0xff]
      %v4139 = vld [vmem:[#allocation5 + $0x60] sm:$0xff]
      %v4140 = vld [vmem:[#allocation5 + $0x68] sm:$0xff]
      %v4141 = vld [vmem:[#allocation5 + $0x70] sm:$0xff]
      %v4142 = vld [vmem:[#allocation5 + $0x78] sm:$0xff]
      %s4143 = scalar_lea.vmem %s6, 320
      %v4144 = vld [vmem:[%s4143] sm:$0xf]
      %v4145 = vld [vmem:[%s4143 + $0x4] sm:$0xf]
      %v4146 = vld [vmem:[%s4143 + $0x8] sm:$0xf]
      %v4147 = vld [vmem:[%s4143 + $0xc] sm:$0xf]
      %v4148 = vld [vmem:[%s4143 + $0x10] sm:$0xf]
      %v4149 = vld [vmem:[%s4143 + $0x14] sm:$0xf]
      %v4150 = vld [vmem:[%s4143 + $0x18] sm:$0xf]
      %v4151 = vld [vmem:[%s4143 + $0x1c] sm:$0xf]
      %v4152 = vld [vmem:[%s4143 + $0x20] sm:$0xf]
      %v4153 = vld [vmem:[%s4143 + $0x24] sm:$0xf]
      %v4154 = vld [vmem:[%s4143 + $0x28] sm:$0xf]
      %v4155 = vld [vmem:[%s4143 + $0x2c] sm:$0xf]
      %v4156 = vld [vmem:[%s4143 + $0x30] sm:$0xf]
      %v4157 = vld [vmem:[%s4143 + $0x34] sm:$0xf]
      %v4158 = vld [vmem:[%s4143 + $0x38] sm:$0xf]
      %v4159 = vld [vmem:[%s4143 + $0x3c] sm:$0xf]
      %v4176 = vunpack.c.l.b16 %v4144
      %v4177 = vunpack.c.l.b16 %v4145
      %v4178 = vunpack.c.l.b16 %v4146
      %v4179 = vunpack.c.l.b16 %v4147
      %v4180 = vunpack.c.l.b16 %v4148
      %v4181 = vunpack.c.l.b16 %v4149
      %v4182 = vunpack.c.l.b16 %v4150
      %v4183 = vunpack.c.l.b16 %v4151
      %v4184 = vunpack.c.l.b16 %v4152
      %v4185 = vunpack.c.l.b16 %v4153
      %v4186 = vunpack.c.l.b16 %v4154
      %v4187 = vunpack.c.l.b16 %v4155
      %v4188 = vunpack.c.l.b16 %v4156
      %v4189 = vunpack.c.l.b16 %v4157
      %v4190 = vunpack.c.l.b16 %v4158
      %v4191 = vunpack.c.l.b16 %v4159
      %v4192 = vpack.c.b16 %v4177, %v4176
      %v4193 = vpack.c.b16 %v4179, %v4178
      %v4194 = vpack.c.b16 %v4181, %v4180
      %v4195 = vpack.c.b16 %v4183, %v4182
      %v4196 = vpack.c.b16 %v4185, %v4184
      %v4197 = vpack.c.b16 %v4187, %v4186
      %v4198 = vpack.c.b16 %v4189, %v4188
      %v4199 = vpack.c.b16 %v4191, %v4190
      %4208 = vmatprep.subr.bf16.mxu0 0
      %4209 = vmatpush1.bf16.msra.mxu0 %v4199
      %4210 = vmatprep.subr.bf16.mxu0 0
      %4211 = vmatpush1.bf16.msra.mxu0 %v4198
      %4212 = vmatprep.subr.bf16.mxu0 0
      %4213 = vmatpush1.bf16.msra.mxu0 %v4197
      %4214 = vmatprep.subr.bf16.mxu0 0
      %4215 = vmatpush1.bf16.msra.mxu0 %v4196
      %4216 = vmatprep.subr.bf16.mxu0 0
      %4217 = vmatpush1.bf16.msra.mxu0 %v4195
      %4218 = vmatprep.subr.bf16.mxu0 0
      %4219 = vmatpush1.bf16.msra.mxu0 %v4194
      %4220 = vmatprep.subr.bf16.mxu0 0
      %4221 = vmatpush1.bf16.msra.mxu0 %v4193
      %4222 = vmatprep.subr.bf16.mxu0 0
      %4223 = vmatpush1.bf16.msra.mxu0 %v4192
      %4224 = vmatprep.subr.bf16.mxu0 0
      %4225 = vmatpush2.bf16.msra.mxu0 0
      %4226 = vmatprep.subr.bf16.mxu0 0
      %4227 = vmatpush2.bf16.msra.mxu0 0
      %4228 = vmatprep.subr.bf16.mxu0 0
      %4229 = vmatpush2.bf16.msra.mxu0 0
      %4230 = vmatprep.subr.bf16.mxu0 0
      %4231 = vmatpush2.bf16.msra.mxu0 0
      %4232 = vmatprep.subr.bf16.mxu0 0
      %4233 = vmatpush2.bf16.msra.mxu0 0
      %4234 = vmatprep.subr.bf16.mxu0 0
      %4235 = vmatpush2.bf16.msra.mxu0 0
      %4236 = vmatprep.subr.bf16.mxu0 0
      %4237 = vmatpush2.bf16.msra.mxu0 0
      %4238 = vmatprep.subr.bf16.mxu0 0
      %4239 = vmatpush2.bf16.msra.mxu0 0
      %4240 = vmatprep.mubr.bf16.mxu0 0
      %4241 = vmatmul.mubr.bf16.gmra.mxu0 %v4119
      %v4242 = vpop.f32.mrf.mxu0
      %v4243 = vadd.f32 0.0, %v4242
      %v4244 = vpop.f32.mrf.mxu0
      %v4245 = vpop.f32.mrf.mxu0
      %v4246 = vadd.f32 0.0, %v4245
      %v4247 = vpop.f32.mrf.mxu0
      %4248 = vmatprep.mubr.bf16.mxu0 0
      %4249 = vmatmul.mubr.bf16.gmra.mxu0 %v4120
      %v4250 = vpop.f32.mrf.mxu0
      %v4251 = vadd.f32 0.0, %v4250
      %v4252 = vpop.f32.mrf.mxu0
      %v4253 = vpop.f32.mrf.mxu0
      %v4254 = vadd.f32 0.0, %v4253
      %v4255 = vpop.f32.mrf.mxu0
      %4256 = vmatprep.mubr.bf16.mxu0 0
      %4257 = vmatmul.mubr.bf16.gmra.mxu0 %v4121
      %v4258 = vpop.f32.mrf.mxu0
      %v4259 = vadd.f32 0.0, %v4258
      %v4260 = vpop.f32.mrf.mxu0
      %v4261 = vpop.f32.mrf.mxu0
      %v4262 = vadd.f32 0.0, %v4261
      %v4263 = vpop.f32.mrf.mxu0
      %4264 = vmatprep.mubr.bf16.mxu0 0
      %4265 = vmatmul.mubr.bf16.gmra.mxu0 %v4122
      %v4266 = vpop.f32.mrf.mxu0
      %v4267 = vadd.f32 0.0, %v4266
      %v4268 = vpop.f32.mrf.mxu0
      %v4269 = vpop.f32.mrf.mxu0
      %v4270 = vadd.f32 0.0, %v4269
      %v4271 = vpop.f32.mrf.mxu0
      %4272 = vmatprep.mubr.bf16.mxu0 0
      %4273 = vmatmul.mubr.bf16.gmra.mxu0 %v4123
      %v4274 = vpop.f32.mrf.mxu0
      %v4275 = vadd.f32 0.0, %v4274
      %v4276 = vpop.f32.mrf.mxu0
      %v4277 = vpop.f32.mrf.mxu0
      %v4278 = vadd.f32 0.0, %v4277
      %v4279 = vpop.f32.mrf.mxu0
      %4280 = vmatprep.mubr.bf16.mxu0 0
      %4281 = vmatmul.mubr.bf16.gmra.mxu0 %v4124
      %v4282 = vpop.f32.mrf.mxu0
      %v4283 = vadd.f32 0.0, %v4282
      %v4284 = vpop.f32.mrf.mxu0
      %v4285 = vpop.f32.mrf.mxu0
      %v4286 = vadd.f32 0.0, %v4285
      %v4287 = vpop.f32.mrf.mxu0
      %4288 = vmatprep.mubr.bf16.mxu0 0
      %4289 = vmatmul.mubr.bf16.gmra.mxu0 %v4125
      %v4290 = vpop.f32.mrf.mxu0
      %v4291 = vadd.f32 0.0, %v4290
      %v4292 = vpop.f32.mrf.mxu0
      %v4293 = vpop.f32.mrf.mxu0
      %v4294 = vadd.f32 0.0, %v4293
      %v4295 = vpop.f32.mrf.mxu0
      %4296 = vmatprep.mubr.bf16.mxu0 0
      %4297 = vmatmul.mubr.bf16.gmra.mxu0 %v4126
      %v4298 = vpop.f32.mrf.mxu0
      %v4299 = vadd.f32 0.0, %v4298
      %v4300 = vpop.f32.mrf.mxu0
      %v4301 = vpop.f32.mrf.mxu0
      %v4302 = vadd.f32 0.0, %v4301
      %v4303 = vpop.f32.mrf.mxu0
      %4304 = vdwg.mxu0
      %v4305 = vadd.f32 %v4127, %v4243
      %v4306 = vadd.f32 %v4128, %v4246
      %v4307 = vadd.f32 %v4129, %v4251
      %v4308 = vadd.f32 %v4130, %v4254
      %v4309 = vadd.f32 %v4131, %v4259
      %v4310 = vadd.f32 %v4132, %v4262
      %v4311 = vadd.f32 %v4133, %v4267
      %v4312 = vadd.f32 %v4134, %v4270
      %v4313 = vadd.f32 %v4135, %v4275
      %v4314 = vadd.f32 %v4136, %v4278
      %v4315 = vadd.f32 %v4137, %v4283
      %v4316 = vadd.f32 %v4138, %v4286
      %v4317 = vadd.f32 %v4139, %v4291
      %v4318 = vadd.f32 %v4140, %v4294
      %v4319 = vadd.f32 %v4141, %v4299
      %v4320 = vadd.f32 %v4142, %v4302
      %4321 = vst [vmem:[#allocation5] sm:$0xff] %v4305
      %4322 = vst [vmem:[#allocation5 + $0x8] sm:$0xff] %v4306
      %4323 = vst [vmem:[#allocation5 + $0x10] sm:$0xff] %v4307
      %4324 = vst [vmem:[#allocation5 + $0x18] sm:$0xff] %v4308
      %4325 = vst [vmem:[#allocation5 + $0x20] sm:$0xff] %v4309
      %4326 = vst [vmem:[#allocation5 + $0x28] sm:$0xff] %v4310
      %4327 = vst [vmem:[#allocation5 + $0x30] sm:$0xff] %v4311
      %4328 = vst [vmem:[#allocation5 + $0x38] sm:$0xff] %v4312
      %4329 = vst [vmem:[#allocation5 + $0x40] sm:$0xff] %v4313
      %4330 = vst [vmem:[#allocation5 + $0x48] sm:$0xff] %v4314
      %4331 = vst [vmem:[#allocation5 + $0x50] sm:$0xff] %v4315
      %4332 = vst [vmem:[#allocation5 + $0x58] sm:$0xff] %v4316
      %4333 = vst [vmem:[#allocation5 + $0x60] sm:$0xff] %v4317
      %4334 = vst [vmem:[#allocation5 + $0x68] sm:$0xff] %v4318
      %4335 = vst [vmem:[#allocation5 + $0x70] sm:$0xff] %v4319
      %4336 = vst [vmem:[#allocation5 + $0x78] sm:$0xff] %v4320
      %s4337 = scalar_lea.vmem [#allocation3], 48
      %v4338 = vld [vmem:[%s4337] sm:$0xff]
      %v4339 = vld [vmem:[%s4337 + $0x8] sm:$0xff]
      %v4340 = vld [vmem:[%s4337 + $0x18] sm:$0xff]
      %v4341 = vld [vmem:[%s4337 + $0x20] sm:$0xff]
      %v4342 = vld [vmem:[%s4337 + $0x30] sm:$0xff]
      %v4343 = vld [vmem:[%s4337 + $0x38] sm:$0xff]
      %v4344 = vld [vmem:[%s4337 + $0x48] sm:$0xff]
      %v4345 = vld [vmem:[%s4337 + $0x50] sm:$0xff]
      %v4346 = vld [vmem:[%s4337 + $0x60] sm:$0xff]
      %v4347 = vld [vmem:[%s4337 + $0x68] sm:$0xff]
      %v4348 = vld [vmem:[%s4337 + $0x78] sm:$0xff]
      %v4349 = vld [vmem:[%s4337 + $0x80] sm:$0xff]
      %v4350 = vld [vmem:[%s4337 + $0x90] sm:$0xff]
      %v4351 = vld [vmem:[%s4337 + $0x98] sm:$0xff]
      %v4352 = vld [vmem:[%s4337 + $0xa8] sm:$0xff]
      %v4353 = vld [vmem:[%s4337 + $0xb0] sm:$0xff]
      %v4354 = vpack.c.bf16 %v4339, %v4338
      %v4355 = vpack.c.bf16 %v4341, %v4340
      %v4356 = vpack.c.bf16 %v4343, %v4342
      %v4357 = vpack.c.bf16 %v4345, %v4344
      %v4358 = vpack.c.bf16 %v4347, %v4346
      %v4359 = vpack.c.bf16 %v4349, %v4348
      %v4360 = vpack.c.bf16 %v4351, %v4350
      %v4361 = vpack.c.bf16 %v4353, %v4352
      %v4362 = vld [vmem:[#allocation5] sm:$0xff]
      %v4363 = vld [vmem:[#allocation5 + $0x8] sm:$0xff]
      %v4364 = vld [vmem:[#allocation5 + $0x10] sm:$0xff]
      %v4365 = vld [vmem:[#allocation5 + $0x18] sm:$0xff]
      %v4366 = vld [vmem:[#allocation5 + $0x20] sm:$0xff]
      %v4367 = vld [vmem:[#allocation5 + $0x28] sm:$0xff]
      %v4368 = vld [vmem:[#allocation5 + $0x30] sm:$0xff]
      %v4369 = vld [vmem:[#allocation5 + $0x38] sm:$0xff]
      %v4370 = vld [vmem:[#allocation5 + $0x40] sm:$0xff]
      %v4371 = vld [vmem:[#allocation5 + $0x48] sm:$0xff]
      %v4372 = vld [vmem:[#allocation5 + $0x50] sm:$0xff]
      %v4373 = vld [vmem:[#allocation5 + $0x58] sm:$0xff]
      %v4374 = vld [vmem:[#allocation5 + $0x60] sm:$0xff]
      %v4375 = vld [vmem:[#allocation5 + $0x68] sm:$0xff]
      %v4376 = vld [vmem:[#allocation5 + $0x70] sm:$0xff]
      %v4377 = vld [vmem:[#allocation5 + $0x78] sm:$0xff]
      %s4378 = scalar_lea.vmem %s6, 384
      %v4379 = vld [vmem:[%s4378] sm:$0xf]
      %v4380 = vld [vmem:[%s4378 + $0x4] sm:$0xf]
      %v4381 = vld [vmem:[%s4378 + $0x8] sm:$0xf]
      %v4382 = vld [vmem:[%s4378 + $0xc] sm:$0xf]
      %v4383 = vld [vmem:[%s4378 + $0x10] sm:$0xf]
      %v4384 = vld [vmem:[%s4378 + $0x14] sm:$0xf]
      %v4385 = vld [vmem:[%s4378 + $0x18] sm:$0xf]
      %v4386 = vld [vmem:[%s4378 + $0x1c] sm:$0xf]
      %v4387 = vld [vmem:[%s4378 + $0x20] sm:$0xf]
      %v4388 = vld [vmem:[%s4378 + $0x24] sm:$0xf]
      %v4389 = vld [vmem:[%s4378 + $0x28] sm:$0xf]
      %v4390 = vld [vmem:[%s4378 + $0x2c] sm:$0xf]
      %v4391 = vld [vmem:[%s4378 + $0x30] sm:$0xf]
      %v4392 = vld [vmem:[%s4378 + $0x34] sm:$0xf]
      %v4393 = vld [vmem:[%s4378 + $0x38] sm:$0xf]
      %v4394 = vld [vmem:[%s4378 + $0x3c] sm:$0xf]
      %v4411 = vunpack.c.l.b16 %v4379
      %v4412 = vunpack.c.l.b16 %v4380
      %v4413 = vunpack.c.l.b16 %v4381
      %v4414 = vunpack.c.l.b16 %v4382
      %v4415 = vunpack.c.l.b16 %v4383
      %v4416 = vunpack.c.l.b16 %v4384
      %v4417 = vunpack.c.l.b16 %v4385
      %v4418 = vunpack.c.l.b16 %v4386
      %v4419 = vunpack.c.l.b16 %v4387
      %v4420 = vunpack.c.l.b16 %v4388
      %v4421 = vunpack.c.l.b16 %v4389
      %v4422 = vunpack.c.l.b16 %v4390
      %v4423 = vunpack.c.l.b16 %v4391
      %v4424 = vunpack.c.l.b16 %v4392
      %v4425 = vunpack.c.l.b16 %v4393
      %v4426 = vunpack.c.l.b16 %v4394
      %v4427 = vpack.c.b16 %v4412, %v4411
      %v4428 = vpack.c.b16 %v4414, %v4413
      %v4429 = vpack.c.b16 %v4416, %v4415
      %v4430 = vpack.c.b16 %v4418, %v4417
      %v4431 = vpack.c.b16 %v4420, %v4419
      %v4432 = vpack.c.b16 %v4422, %v4421
      %v4433 = vpack.c.b16 %v4424, %v4423
      %v4434 = vpack.c.b16 %v4426, %v4425
      %4443 = vmatprep.subr.bf16.mxu0 0
      %4444 = vmatpush1.bf16.msra.mxu0 %v4434
      %4445 = vmatprep.subr.bf16.mxu0 0
      %4446 = vmatpush1.bf16.msra.mxu0 %v4433
      %4447 = vmatprep.subr.bf16.mxu0 0
      %4448 = vmatpush1.bf16.msra.mxu0 %v4432
      %4449 = vmatprep.subr.bf16.mxu0 0
      %4450 = vmatpush1.bf16.msra.mxu0 %v4431
      %4451 = vmatprep.subr.bf16.mxu0 0
      %4452 = vmatpush1.bf16.msra.mxu0 %v4430
      %4453 = vmatprep.subr.bf16.mxu0 0
      %4454 = vmatpush1.bf16.msra.mxu0 %v4429
      %4455 = vmatprep.subr.bf16.mxu0 0
      %4456 = vmatpush1.bf16.msra.mxu0 %v4428
      %4457 = vmatprep.subr.bf16.mxu0 0
      %4458 = vmatpush1.bf16.msra.mxu0 %v4427
      %4459 = vmatprep.subr.bf16.mxu0 0
      %4460 = vmatpush2.bf16.msra.mxu0 0
      %4461 = vmatprep.subr.bf16.mxu0 0
      %4462 = vmatpush2.bf16.msra.mxu0 0
      %4463 = vmatprep.subr.bf16.mxu0 0
      %4464 = vmatpush2.bf16.msra.mxu0 0
      %4465 = vmatprep.subr.bf16.mxu0 0
      %4466 = vmatpush2.bf16.msra.mxu0 0
      %4467 = vmatprep.subr.bf16.mxu0 0
      %4468 = vmatpush2.bf16.msra.mxu0 0
      %4469 = vmatprep.subr.bf16.mxu0 0
      %4470 = vmatpush2.bf16.msra.mxu0 0
      %4471 = vmatprep.subr.bf16.mxu0 0
      %4472 = vmatpush2.bf16.msra.mxu0 0
      %4473 = vmatprep.subr.bf16.mxu0 0
      %4474 = vmatpush2.bf16.msra.mxu0 0
      %4475 = vmatprep.mubr.bf16.mxu0 0
      %4476 = vmatmul.mubr.bf16.gmra.mxu0 %v4354
      %v4477 = vpop.f32.mrf.mxu0
      %v4478 = vadd.f32 0.0, %v4477
      %v4479 = vpop.f32.mrf.mxu0
      %v4480 = vpop.f32.mrf.mxu0
      %v4481 = vadd.f32 0.0, %v4480
      %v4482 = vpop.f32.mrf.mxu0
      %4483 = vmatprep.mubr.bf16.mxu0 0
      %4484 = vmatmul.mubr.bf16.gmra.mxu0 %v4355
      %v4485 = vpop.f32.mrf.mxu0
      %v4486 = vadd.f32 0.0, %v4485
      %v4487 = vpop.f32.mrf.mxu0
      %v4488 = vpop.f32.mrf.mxu0
      %v4489 = vadd.f32 0.0, %v4488
      %v4490 = vpop.f32.mrf.mxu0
      %4491 = vmatprep.mubr.bf16.mxu0 0
      %4492 = vmatmul.mubr.bf16.gmra.mxu0 %v4356
      %v4493 = vpop.f32.mrf.mxu0
      %v4494 = vadd.f32 0.0, %v4493
      %v4495 = vpop.f32.mrf.mxu0
      %v4496 = vpop.f32.mrf.mxu0
      %v4497 = vadd.f32 0.0, %v4496
      %v4498 = vpop.f32.mrf.mxu0
      %4499 = vmatprep.mubr.bf16.mxu0 0
      %4500 = vmatmul.mubr.bf16.gmra.mxu0 %v4357
      %v4501 = vpop.f32.mrf.mxu0
      %v4502 = vadd.f32 0.0, %v4501
      %v4503 = vpop.f32.mrf.mxu0
      %v4504 = vpop.f32.mrf.mxu0
      %v4505 = vadd.f32 0.0, %v4504
      %v4506 = vpop.f32.mrf.mxu0
      %4507 = vmatprep.mubr.bf16.mxu0 0
      %4508 = vmatmul.mubr.bf16.gmra.mxu0 %v4358
      %v4509 = vpop.f32.mrf.mxu0
      %v4510 = vadd.f32 0.0, %v4509
      %v4511 = vpop.f32.mrf.mxu0
      %v4512 = vpop.f32.mrf.mxu0
      %v4513 = vadd.f32 0.0, %v4512
      %v4514 = vpop.f32.mrf.mxu0
      %4515 = vmatprep.mubr.bf16.mxu0 0
      %4516 = vmatmul.mubr.bf16.gmra.mxu0 %v4359
      %v4517 = vpop.f32.mrf.mxu0
      %v4518 = vadd.f32 0.0, %v4517
      %v4519 = vpop.f32.mrf.mxu0
      %v4520 = vpop.f32.mrf.mxu0
      %v4521 = vadd.f32 0.0, %v4520
      %v4522 = vpop.f32.mrf.mxu0
      %4523 = vmatprep.mubr.bf16.mxu0 0
      %4524 = vmatmul.mubr.bf16.gmra.mxu0 %v4360
      %v4525 = vpop.f32.mrf.mxu0
      %v4526 = vadd.f32 0.0, %v4525
      %v4527 = vpop.f32.mrf.mxu0
      %v4528 = vpop.f32.mrf.mxu0
      %v4529 = vadd.f32 0.0, %v4528
      %v4530 = vpop.f32.mrf.mxu0
      %4531 = vmatprep.mubr.bf16.mxu0 0
      %4532 = vmatmul.mubr.bf16.gmra.mxu0 %v4361
      %v4533 = vpop.f32.mrf.mxu0
      %v4534 = vadd.f32 0.0, %v4533
      %v4535 = vpop.f32.mrf.mxu0
      %v4536 = vpop.f32.mrf.mxu0
      %v4537 = vadd.f32 0.0, %v4536
      %v4538 = vpop.f32.mrf.mxu0
      %4539 = vdwg.mxu0
      %v4540 = vadd.f32 %v4362, %v4478
      %v4541 = vadd.f32 %v4363, %v4481
      %v4542 = vadd.f32 %v4364, %v4486
      %v4543 = vadd.f32 %v4365, %v4489
      %v4544 = vadd.f32 %v4366, %v4494
      %v4545 = vadd.f32 %v4367, %v4497
      %v4546 = vadd.f32 %v4368, %v4502
      %v4547 = vadd.f32 %v4369, %v4505
      %v4548 = vadd.f32 %v4370, %v4510
      %v4549 = vadd.f32 %v4371, %v4513
      %v4550 = vadd.f32 %v4372, %v4518
      %v4551 = vadd.f32 %v4373, %v4521
      %v4552 = vadd.f32 %v4374, %v4526
      %v4553 = vadd.f32 %v4375, %v4529
      %v4554 = vadd.f32 %v4376, %v4534
      %v4555 = vadd.f32 %v4377, %v4537
      %4556 = vst [vmem:[#allocation5] sm:$0xff] %v4540
      %4557 = vst [vmem:[#allocation5 + $0x8] sm:$0xff] %v4541
      %4558 = vst [vmem:[#allocation5 + $0x10] sm:$0xff] %v4542
      %4559 = vst [vmem:[#allocation5 + $0x18] sm:$0xff] %v4543
      %4560 = vst [vmem:[#allocation5 + $0x20] sm:$0xff] %v4544
      %4561 = vst [vmem:[#allocation5 + $0x28] sm:$0xff] %v4545
      %4562 = vst [vmem:[#allocation5 + $0x30] sm:$0xff] %v4546
      %4563 = vst [vmem:[#allocation5 + $0x38] sm:$0xff] %v4547
      %4564 = vst [vmem:[#allocation5 + $0x40] sm:$0xff] %v4548
      %4565 = vst [vmem:[#allocation5 + $0x48] sm:$0xff] %v4549
      %4566 = vst [vmem:[#allocation5 + $0x50] sm:$0xff] %v4550
      %4567 = vst [vmem:[#allocation5 + $0x58] sm:$0xff] %v4551
      %4568 = vst [vmem:[#allocation5 + $0x60] sm:$0xff] %v4552
      %4569 = vst [vmem:[#allocation5 + $0x68] sm:$0xff] %v4553
      %4570 = vst [vmem:[#allocation5 + $0x70] sm:$0xff] %v4554
      %4571 = vst [vmem:[#allocation5 + $0x78] sm:$0xff] %v4555
      %v4572 = vld [vmem:[%s4337 + $0x1] sm:$0xff]
      %v4573 = vld [vmem:[%s4337 + $0x9] sm:$0xff]
      %v4574 = vld [vmem:[%s4337 + $0x19] sm:$0xff]
      %v4575 = vld [vmem:[%s4337 + $0x21] sm:$0xff]
      %v4576 = vld [vmem:[%s4337 + $0x31] sm:$0xff]
      %v4577 = vld [vmem:[%s4337 + $0x39] sm:$0xff]
      %v4578 = vld [vmem:[%s4337 + $0x49] sm:$0xff]
      %v4579 = vld [vmem:[%s4337 + $0x51] sm:$0xff]
      %v4580 = vld [vmem:[%s4337 + $0x61] sm:$0xff]
      %v4581 = vld [vmem:[%s4337 + $0x69] sm:$0xff]
      %v4582 = vld [vmem:[%s4337 + $0x79] sm:$0xff]
      %v4583 = vld [vmem:[%s4337 + $0x81] sm:$0xff]
      %v4584 = vld [vmem:[%s4337 + $0x91] sm:$0xff]
      %v4585 = vld [vmem:[%s4337 + $0x99] sm:$0xff]
      %v4586 = vld [vmem:[%s4337 + $0xa9] sm:$0xff]
      %v4587 = vld [vmem:[%s4337 + $0xb1] sm:$0xff]
      %v4588 = vpack.c.bf16 %v4573, %v4572
      %v4589 = vpack.c.bf16 %v4575, %v4574
      %v4590 = vpack.c.bf16 %v4577, %v4576
      %v4591 = vpack.c.bf16 %v4579, %v4578
      %v4592 = vpack.c.bf16 %v4581, %v4580
      %v4593 = vpack.c.bf16 %v4583, %v4582
      %v4594 = vpack.c.bf16 %v4585, %v4584
      %v4595 = vpack.c.bf16 %v4587, %v4586
      %v4596 = vld [vmem:[#allocation5] sm:$0xff]
      %v4597 = vld [vmem:[#allocation5 + $0x8] sm:$0xff]
      %v4598 = vld [vmem:[#allocation5 + $0x10] sm:$0xff]
      %v4599 = vld [vmem:[#allocation5 + $0x18] sm:$0xff]
      %v4600 = vld [vmem:[#allocation5 + $0x20] sm:$0xff]
      %v4601 = vld [vmem:[#allocation5 + $0x28] sm:$0xff]
      %v4602 = vld [vmem:[#allocation5 + $0x30] sm:$0xff]
      %v4603 = vld [vmem:[#allocation5 + $0x38] sm:$0xff]
      %v4604 = vld [vmem:[#allocation5 + $0x40] sm:$0xff]
      %v4605 = vld [vmem:[#allocation5 + $0x48] sm:$0xff]
      %v4606 = vld [vmem:[#allocation5 + $0x50] sm:$0xff]
      %v4607 = vld [vmem:[#allocation5 + $0x58] sm:$0xff]
      %v4608 = vld [vmem:[#allocation5 + $0x60] sm:$0xff]
      %v4609 = vld [vmem:[#allocation5 + $0x68] sm:$0xff]
      %v4610 = vld [vmem:[#allocation5 + $0x70] sm:$0xff]
      %v4611 = vld [vmem:[#allocation5 + $0x78] sm:$0xff]
      %s4612 = scalar_lea.vmem %s6, 448
      %v4613 = vld [vmem:[%s4612] sm:$0xf]
      %v4614 = vld [vmem:[%s4612 + $0x4] sm:$0xf]
      %v4615 = vld [vmem:[%s4612 + $0x8] sm:$0xf]
      %v4616 = vld [vmem:[%s4612 + $0xc] sm:$0xf]
      %v4617 = vld [vmem:[%s4612 + $0x10] sm:$0xf]
      %v4618 = vld [vmem:[%s4612 + $0x14] sm:$0xf]
      %v4619 = vld [vmem:[%s4612 + $0x18] sm:$0xf]
      %v4620 = vld [vmem:[%s4612 + $0x1c] sm:$0xf]
      %v4621 = vld [vmem:[%s4612 + $0x20] sm:$0xf]
      %v4622 = vld [vmem:[%s4612 + $0x24] sm:$0xf]
      %v4623 = vld [vmem:[%s4612 + $0x28] sm:$0xf]
      %v4624 = vld [vmem:[%s4612 + $0x2c] sm:$0xf]
      %v4625 = vld [vmem:[%s4612 + $0x30] sm:$0xf]
      %v4626 = vld [vmem:[%s4612 + $0x34] sm:$0xf]
      %v4627 = vld [vmem:[%s4612 + $0x38] sm:$0xf]
      %v4628 = vld [vmem:[%s4612 + $0x3c] sm:$0xf]
      %v4645 = vunpack.c.l.b16 %v4613
      %v4646 = vunpack.c.l.b16 %v4614
      %v4647 = vunpack.c.l.b16 %v4615
      %v4648 = vunpack.c.l.b16 %v4616
      %v4649 = vunpack.c.l.b16 %v4617
      %v4650 = vunpack.c.l.b16 %v4618
      %v4651 = vunpack.c.l.b16 %v4619
      %v4652 = vunpack.c.l.b16 %v4620
      %v4653 = vunpack.c.l.b16 %v4621
      %v4654 = vunpack.c.l.b16 %v4622
      %v4655 = vunpack.c.l.b16 %v4623
      %v4656 = vunpack.c.l.b16 %v4624
      %v4657 = vunpack.c.l.b16 %v4625
      %v4658 = vunpack.c.l.b16 %v4626
      %v4659 = vunpack.c.l.b16 %v4627
      %v4660 = vunpack.c.l.b16 %v4628
      %v4661 = vpack.c.b16 %v4646, %v4645
      %v4662 = vpack.c.b16 %v4648, %v4647
      %v4663 = vpack.c.b16 %v4650, %v4649
      %v4664 = vpack.c.b16 %v4652, %v4651
      %v4665 = vpack.c.b16 %v4654, %v4653
      %v4666 = vpack.c.b16 %v4656, %v4655
      %v4667 = vpack.c.b16 %v4658, %v4657
      %v4668 = vpack.c.b16 %v4660, %v4659
      %4677 = vmatprep.subr.bf16.mxu0 0
      %4678 = vmatpush1.bf16.msra.mxu0 %v4668
      %4679 = vmatprep.subr.bf16.mxu0 0
      %4680 = vmatpush1.bf16.msra.mxu0 %v4667
      %4681 = vmatprep.subr.bf16.mxu0 0
      %4682 = vmatpush1.bf16.msra.mxu0 %v4666
      %4683 = vmatprep.subr.bf16.mxu0 0
      %4684 = vmatpush1.bf16.msra.mxu0 %v4665
      %4685 = vmatprep.subr.bf16.mxu0 0
      %4686 = vmatpush1.bf16.msra.mxu0 %v4664
      %4687 = vmatprep.subr.bf16.mxu0 0
      %4688 = vmatpush1.bf16.msra.mxu0 %v4663
      %4689 = vmatprep.subr.bf16.mxu0 0
      %4690 = vmatpush1.bf16.msra.mxu0 %v4662
      %4691 = vmatprep.subr.bf16.mxu0 0
      %4692 = vmatpush1.bf16.msra.mxu0 %v4661
      %4693 = vmatprep.subr.bf16.mxu0 0
      %4694 = vmatpush2.bf16.msra.mxu0 0
      %4695 = vmatprep.subr.bf16.mxu0 0
      %4696 = vmatpush2.bf16.msra.mxu0 0
      %4697 = vmatprep.subr.bf16.mxu0 0
      %4698 = vmatpush2.bf16.msra.mxu0 0
      %4699 = vmatprep.subr.bf16.mxu0 0
      %4700 = vmatpush2.bf16.msra.mxu0 0
      %4701 = vmatprep.subr.bf16.mxu0 0
      %4702 = vmatpush2.bf16.msra.mxu0 0
      %4703 = vmatprep.subr.bf16.mxu0 0
      %4704 = vmatpush2.bf16.msra.mxu0 0
      %4705 = vmatprep.subr.bf16.mxu0 0
      %4706 = vmatpush2.bf16.msra.mxu0 0
      %4707 = vmatprep.subr.bf16.mxu0 0
      %4708 = vmatpush2.bf16.msra.mxu0 0
      %4709 = vmatprep.mubr.bf16.mxu0 0
      %4710 = vmatmul.mubr.bf16.gmra.mxu0 %v4588
      %v4711 = vpop.f32.mrf.mxu0
      %v4712 = vadd.f32 0.0, %v4711
      %v4713 = vpop.f32.mrf.mxu0
      %v4714 = vpop.f32.mrf.mxu0
      %v4715 = vadd.f32 0.0, %v4714
      %v4716 = vpop.f32.mrf.mxu0
      %4717 = vmatprep.mubr.bf16.mxu0 0
      %4718 = vmatmul.mubr.bf16.gmra.mxu0 %v4589
      %v4719 = vpop.f32.mrf.mxu0
      %v4720 = vadd.f32 0.0, %v4719
      %v4721 = vpop.f32.mrf.mxu0
      %v4722 = vpop.f32.mrf.mxu0
      %v4723 = vadd.f32 0.0, %v4722
      %v4724 = vpop.f32.mrf.mxu0
      %4725 = vmatprep.mubr.bf16.mxu0 0
      %4726 = vmatmul.mubr.bf16.gmra.mxu0 %v4590
      %v4727 = vpop.f32.mrf.mxu0
      %v4728 = vadd.f32 0.0, %v4727
      %v4729 = vpop.f32.mrf.mxu0
      %v4730 = vpop.f32.mrf.mxu0
      %v4731 = vadd.f32 0.0, %v4730
      %v4732 = vpop.f32.mrf.mxu0
      %4733 = vmatprep.mubr.bf16.mxu0 0
      %4734 = vmatmul.mubr.bf16.gmra.mxu0 %v4591
      %v4735 = vpop.f32.mrf.mxu0
      %v4736 = vadd.f32 0.0, %v4735
      %v4737 = vpop.f32.mrf.mxu0
      %v4738 = vpop.f32.mrf.mxu0
      %v4739 = vadd.f32 0.0, %v4738
      %v4740 = vpop.f32.mrf.mxu0
      %4741 = vmatprep.mubr.bf16.mxu0 0
      %4742 = vmatmul.mubr.bf16.gmra.mxu0 %v4592
      %v4743 = vpop.f32.mrf.mxu0
      %v4744 = vadd.f32 0.0, %v4743
      %v4745 = vpop.f32.mrf.mxu0
      %v4746 = vpop.f32.mrf.mxu0
      %v4747 = vadd.f32 0.0, %v4746
      %v4748 = vpop.f32.mrf.mxu0
      %4749 = vmatprep.mubr.bf16.mxu0 0
      %4750 = vmatmul.mubr.bf16.gmra.mxu0 %v4593
      %v4751 = vpop.f32.mrf.mxu0
      %v4752 = vadd.f32 0.0, %v4751
      %v4753 = vpop.f32.mrf.mxu0
      %v4754 = vpop.f32.mrf.mxu0
      %v4755 = vadd.f32 0.0, %v4754
      %v4756 = vpop.f32.mrf.mxu0
      %4757 = vmatprep.mubr.bf16.mxu0 0
      %4758 = vmatmul.mubr.bf16.gmra.mxu0 %v4594
      %v4759 = vpop.f32.mrf.mxu0
      %v4760 = vadd.f32 0.0, %v4759
      %v4761 = vpop.f32.mrf.mxu0
      %v4762 = vpop.f32.mrf.mxu0
      %v4763 = vadd.f32 0.0, %v4762
      %v4764 = vpop.f32.mrf.mxu0
      %4765 = vmatprep.mubr.bf16.mxu0 0
      %4766 = vmatmul.mubr.bf16.gmra.mxu0 %v4595
      %v4767 = vpop.f32.mrf.mxu0
      %v4768 = vadd.f32 0.0, %v4767
      %v4769 = vpop.f32.mrf.mxu0
      %v4770 = vpop.f32.mrf.mxu0
      %v4771 = vadd.f32 0.0, %v4770
      %v4772 = vpop.f32.mrf.mxu0
      %4773 = vdwg.mxu0
      %v4774 = vadd.f32 %v4596, %v4712
      %v4775 = vadd.f32 %v4597, %v4715
      %v4776 = vadd.f32 %v4598, %v4720
      %v4777 = vadd.f32 %v4599, %v4723
      %v4778 = vadd.f32 %v4600, %v4728
      %v4779 = vadd.f32 %v4601, %v4731
      %v4780 = vadd.f32 %v4602, %v4736
      %v4781 = vadd.f32 %v4603, %v4739
      %v4782 = vadd.f32 %v4604, %v4744
      %v4783 = vadd.f32 %v4605, %v4747
      %v4784 = vadd.f32 %v4606, %v4752
      %v4785 = vadd.f32 %v4607, %v4755
      %v4786 = vadd.f32 %v4608, %v4760
      %v4787 = vadd.f32 %v4609, %v4763
      %v4788 = vadd.f32 %v4610, %v4768
      %v4789 = vadd.f32 %v4611, %v4771
      %4790 = vst [vmem:[#allocation5] sm:$0xff] %v4774
      %4791 = vst [vmem:[#allocation5 + $0x8] sm:$0xff] %v4775
      %4792 = vst [vmem:[#allocation5 + $0x10] sm:$0xff] %v4776
      %4793 = vst [vmem:[#allocation5 + $0x18] sm:$0xff] %v4777
      %4794 = vst [vmem:[#allocation5 + $0x20] sm:$0xff] %v4778
      %4795 = vst [vmem:[#allocation5 + $0x28] sm:$0xff] %v4779
      %4796 = vst [vmem:[#allocation5 + $0x30] sm:$0xff] %v4780
      %4797 = vst [vmem:[#allocation5 + $0x38] sm:$0xff] %v4781
      %4798 = vst [vmem:[#allocation5 + $0x40] sm:$0xff] %v4782
      %4799 = vst [vmem:[#allocation5 + $0x48] sm:$0xff] %v4783
      %4800 = vst [vmem:[#allocation5 + $0x50] sm:$0xff] %v4784
      %4801 = vst [vmem:[#allocation5 + $0x58] sm:$0xff] %v4785
      %4802 = vst [vmem:[#allocation5 + $0x60] sm:$0xff] %v4786
      %4803 = vst [vmem:[#allocation5 + $0x68] sm:$0xff] %v4787
      %4804 = vst [vmem:[#allocation5 + $0x70] sm:$0xff] %v4788
      %4805 = vst [vmem:[#allocation5 + $0x78] sm:$0xff] %v4789
      %v4806 = vld [vmem:[%s4337 + $0x2] sm:$0xff]
      %v4807 = vld [vmem:[%s4337 + $0xa] sm:$0xff]
      %v4808 = vld [vmem:[%s4337 + $0x1a] sm:$0xff]
      %v4809 = vld [vmem:[%s4337 + $0x22] sm:$0xff]
      %v4810 = vld [vmem:[%s4337 + $0x32] sm:$0xff]
      %v4811 = vld [vmem:[%s4337 + $0x3a] sm:$0xff]
      %v4812 = vld [vmem:[%s4337 + $0x4a] sm:$0xff]
      %v4813 = vld [vmem:[%s4337 + $0x52] sm:$0xff]
      %v4814 = vld [vmem:[%s4337 + $0x62] sm:$0xff]
      %v4815 = vld [vmem:[%s4337 + $0x6a] sm:$0xff]
      %v4816 = vld [vmem:[%s4337 + $0x7a] sm:$0xff]
      %v4817 = vld [vmem:[%s4337 + $0x82] sm:$0xff]
      %v4818 = vld [vmem:[%s4337 + $0x92] sm:$0xff]
      %v4819 = vld [vmem:[%s4337 + $0x9a] sm:$0xff]
      %v4820 = vld [vmem:[%s4337 + $0xaa] sm:$0xff]
      %v4821 = vld [vmem:[%s4337 + $0xb2] sm:$0xff]
      %v4822 = vpack.c.bf16 %v4807, %v4806
      %v4823 = vpack.c.bf16 %v4809, %v4808
      %v4824 = vpack.c.bf16 %v4811, %v4810
      %v4825 = vpack.c.bf16 %v4813, %v4812
      %v4826 = vpack.c.bf16 %v4815, %v4814
      %v4827 = vpack.c.bf16 %v4817, %v4816
      %v4828 = vpack.c.bf16 %v4819, %v4818
      %v4829 = vpack.c.bf16 %v4821, %v4820
      %v4830 = vld [vmem:[#allocation5] sm:$0xff]
      %v4831 = vld [vmem:[#allocation5 + $0x8] sm:$0xff]
      %v4832 = vld [vmem:[#allocation5 + $0x10] sm:$0xff]
      %v4833 = vld [vmem:[#allocation5 + $0x18] sm:$0xff]
      %v4834 = vld [vmem:[#allocation5 + $0x20] sm:$0xff]
      %v4835 = vld [vmem:[#allocation5 + $0x28] sm:$0xff]
      %v4836 = vld [vmem:[#allocation5 + $0x30] sm:$0xff]
      %v4837 = vld [vmem:[#allocation5 + $0x38] sm:$0xff]
      %v4838 = vld [vmem:[#allocation5 + $0x40] sm:$0xff]
      %v4839 = vld [vmem:[#allocation5 + $0x48] sm:$0xff]
      %v4840 = vld [vmem:[#allocation5 + $0x50] sm:$0xff]
      %v4841 = vld [vmem:[#allocation5 + $0x58] sm:$0xff]
      %v4842 = vld [vmem:[#allocation5 + $0x60] sm:$0xff]
      %v4843 = vld [vmem:[#allocation5 + $0x68] sm:$0xff]
      %v4844 = vld [vmem:[#allocation5 + $0x70] sm:$0xff]
      %v4845 = vld [vmem:[#allocation5 + $0x78] sm:$0xff]
      %s4846 = scalar_lea.vmem %s6, 512
      %v4847 = vld [vmem:[%s4846] sm:$0xf]
      %v4848 = vld [vmem:[%s4846 + $0x4] sm:$0xf]
      %v4849 = vld [vmem:[%s4846 + $0x8] sm:$0xf]
      %v4850 = vld [vmem:[%s4846 + $0xc] sm:$0xf]
      %v4851 = vld [vmem:[%s4846 + $0x10] sm:$0xf]
      %v4852 = vld [vmem:[%s4846 + $0x14] sm:$0xf]
      %v4853 = vld [vmem:[%s4846 + $0x18] sm:$0xf]
      %v4854 = vld [vmem:[%s4846 + $0x1c] sm:$0xf]
      %v4855 = vld [vmem:[%s4846 + $0x20] sm:$0xf]
      %v4856 = vld [vmem:[%s4846 + $0x24] sm:$0xf]
      %v4857 = vld [vmem:[%s4846 + $0x28] sm:$0xf]
      %v4858 = vld [vmem:[%s4846 + $0x2c] sm:$0xf]
      %v4859 = vld [vmem:[%s4846 + $0x30] sm:$0xf]
      %v4860 = vld [vmem:[%s4846 + $0x34] sm:$0xf]
      %v4861 = vld [vmem:[%s4846 + $0x38] sm:$0xf]
      %v4862 = vld [vmem:[%s4846 + $0x3c] sm:$0xf]
      %v4879 = vunpack.c.l.b16 %v4847
      %v4880 = vunpack.c.l.b16 %v4848
      %v4881 = vunpack.c.l.b16 %v4849
      %v4882 = vunpack.c.l.b16 %v4850
      %v4883 = vunpack.c.l.b16 %v4851
      %v4884 = vunpack.c.l.b16 %v4852
      %v4885 = vunpack.c.l.b16 %v4853
      %v4886 = vunpack.c.l.b16 %v4854
      %v4887 = vunpack.c.l.b16 %v4855
      %v4888 = vunpack.c.l.b16 %v4856
      %v4889 = vunpack.c.l.b16 %v4857
      %v4890 = vunpack.c.l.b16 %v4858
      %v4891 = vunpack.c.l.b16 %v4859
      %v4892 = vunpack.c.l.b16 %v4860
      %v4893 = vunpack.c.l.b16 %v4861
      %v4894 = vunpack.c.l.b16 %v4862
      %v4895 = vpack.c.b16 %v4880, %v4879
      %v4896 = vpack.c.b16 %v4882, %v4881
      %v4897 = vpack.c.b16 %v4884, %v4883
      %v4898 = vpack.c.b16 %v4886, %v4885
      %v4899 = vpack.c.b16 %v4888, %v4887
      %v4900 = vpack.c.b16 %v4890, %v4889
      %v4901 = vpack.c.b16 %v4892, %v4891
      %v4902 = vpack.c.b16 %v4894, %v4893
      %4911 = vmatprep.subr.bf16.mxu0 0
      %4912 = vmatpush1.bf16.msra.mxu0 %v4902
      %4913 = vmatprep.subr.bf16.mxu0 0
      %4914 = vmatpush1.bf16.msra.mxu0 %v4901
      %4915 = vmatprep.subr.bf16.mxu0 0
      %4916 = vmatpush1.bf16.msra.mxu0 %v4900
      %4917 = vmatprep.subr.bf16.mxu0 0
      %4918 = vmatpush1.bf16.msra.mxu0 %v4899
      %4919 = vmatprep.subr.bf16.mxu0 0
      %4920 = vmatpush1.bf16.msra.mxu0 %v4898
      %4921 = vmatprep.subr.bf16.mxu0 0
      %4922 = vmatpush1.bf16.msra.mxu0 %v4897
      %4923 = vmatprep.subr.bf16.mxu0 0
      %4924 = vmatpush1.bf16.msra.mxu0 %v4896
      %4925 = vmatprep.subr.bf16.mxu0 0
      %4926 = vmatpush1.bf16.msra.mxu0 %v4895
      %4927 = vmatprep.subr.bf16.mxu0 0
      %4928 = vmatpush2.bf16.msra.mxu0 0
      %4929 = vmatprep.subr.bf16.mxu0 0
      %4930 = vmatpush2.bf16.msra.mxu0 0
      %4931 = vmatprep.subr.bf16.mxu0 0
      %4932 = vmatpush2.bf16.msra.mxu0 0
      %4933 = vmatprep.subr.bf16.mxu0 0
      %4934 = vmatpush2.bf16.msra.mxu0 0
      %4935 = vmatprep.subr.bf16.mxu0 0
      %4936 = vmatpush2.bf16.msra.mxu0 0
      %4937 = vmatprep.subr.bf16.mxu0 0
      %4938 = vmatpush2.bf16.msra.mxu0 0
      %4939 = vmatprep.subr.bf16.mxu0 0
      %4940 = vmatpush2.bf16.msra.mxu0 0
      %4941 = vmatprep.subr.bf16.mxu0 0
      %4942 = vmatpush2.bf16.msra.mxu0 0
      %4943 = vmatprep.mubr.bf16.mxu0 0
      %4944 = vmatmul.mubr.bf16.gmra.mxu0 %v4822
      %v4945 = vpop.f32.mrf.mxu0
      %v4946 = vadd.f32 0.0, %v4945
      %v4947 = vpop.f32.mrf.mxu0
      %v4948 = vpop.f32.mrf.mxu0
      %v4949 = vadd.f32 0.0, %v4948
      %v4950 = vpop.f32.mrf.mxu0
      %4951 = vmatprep.mubr.bf16.mxu0 0
      %4952 = vmatmul.mubr.bf16.gmra.mxu0 %v4823
      %v4953 = vpop.f32.mrf.mxu0
      %v4954 = vadd.f32 0.0, %v4953
      %v4955 = vpop.f32.mrf.mxu0
      %v4956 = vpop.f32.mrf.mxu0
      %v4957 = vadd.f32 0.0, %v4956
      %v4958 = vpop.f32.mrf.mxu0
      %4959 = vmatprep.mubr.bf16.mxu0 0
      %4960 = vmatmul.mubr.bf16.gmra.mxu0 %v4824
      %v4961 = vpop.f32.mrf.mxu0
      %v4962 = vadd.f32 0.0, %v4961
      %v4963 = vpop.f32.mrf.mxu0
      %v4964 = vpop.f32.mrf.mxu0
      %v4965 = vadd.f32 0.0, %v4964
      %v4966 = vpop.f32.mrf.mxu0
      %4967 = vmatprep.mubr.bf16.mxu0 0
      %4968 = vmatmul.mubr.bf16.gmra.mxu0 %v4825
      %v4969 = vpop.f32.mrf.mxu0
      %v4970 = vadd.f32 0.0, %v4969
      %v4971 = vpop.f32.mrf.mxu0
      %v4972 = vpop.f32.mrf.mxu0
      %v4973 = vadd.f32 0.0, %v4972
      %v4974 = vpop.f32.mrf.mxu0
      %4975 = vmatprep.mubr.bf16.mxu0 0
      %4976 = vmatmul.mubr.bf16.gmra.mxu0 %v4826
      %v4977 = vpop.f32.mrf.mxu0
      %v4978 = vadd.f32 0.0, %v4977
      %v4979 = vpop.f32.mrf.mxu0
      %v4980 = vpop.f32.mrf.mxu0
      %v4981 = vadd.f32 0.0, %v4980
      %v4982 = vpop.f32.mrf.mxu0
      %4983 = vmatprep.mubr.bf16.mxu0 0
      %4984 = vmatmul.mubr.bf16.gmra.mxu0 %v4827
      %v4985 = vpop.f32.mrf.mxu0
      %v4986 = vadd.f32 0.0, %v4985
      %v4987 = vpop.f32.mrf.mxu0
      %v4988 = vpop.f32.mrf.mxu0
      %v4989 = vadd.f32 0.0, %v4988
      %v4990 = vpop.f32.mrf.mxu0
      %4991 = vmatprep.mubr.bf16.mxu0 0
      %4992 = vmatmul.mubr.bf16.gmra.mxu0 %v4828
      %v4993 = vpop.f32.mrf.mxu0
      %v4994 = vadd.f32 0.0, %v4993
      %v4995 = vpop.f32.mrf.mxu0
      %v4996 = vpop.f32.mrf.mxu0
      %v4997 = vadd.f32 0.0, %v4996
      %v4998 = vpop.f32.mrf.mxu0
      %4999 = vmatprep.mubr.bf16.mxu0 0
      %5000 = vmatmul.mubr.bf16.gmra.mxu0 %v4829
      %v5001 = vpop.f32.mrf.mxu0
      %v5002 = vadd.f32 0.0, %v5001
      %v5003 = vpop.f32.mrf.mxu0
      %v5004 = vpop.f32.mrf.mxu0
      %v5005 = vadd.f32 0.0, %v5004
      %v5006 = vpop.f32.mrf.mxu0
      %5007 = vdwg.mxu0
      %v5008 = vadd.f32 %v4830, %v4946
      %v5009 = vadd.f32 %v4831, %v4949
      %v5010 = vadd.f32 %v4832, %v4954
      %v5011 = vadd.f32 %v4833, %v4957
      %v5012 = vadd.f32 %v4834, %v4962
      %v5013 = vadd.f32 %v4835, %v4965
      %v5014 = vadd.f32 %v4836, %v4970
      %v5015 = vadd.f32 %v4837, %v4973
      %v5016 = vadd.f32 %v4838, %v4978
      %v5017 = vadd.f32 %v4839, %v4981
      %v5018 = vadd.f32 %v4840, %v4986
      %v5019 = vadd.f32 %v4841, %v4989
      %v5020 = vadd.f32 %v4842, %v4994
      %v5021 = vadd.f32 %v4843, %v4997
      %v5022 = vadd.f32 %v4844, %v5002
      %v5023 = vadd.f32 %v4845, %v5005
      %5024 = vst [vmem:[#allocation5] sm:$0xff] %v5008
      %5025 = vst [vmem:[#allocation5 + $0x8] sm:$0xff] %v5009
      %5026 = vst [vmem:[#allocation5 + $0x10] sm:$0xff] %v5010
      %5027 = vst [vmem:[#allocation5 + $0x18] sm:$0xff] %v5011
      %5028 = vst [vmem:[#allocation5 + $0x20] sm:$0xff] %v5012
      %5029 = vst [vmem:[#allocation5 + $0x28] sm:$0xff] %v5013
      %5030 = vst [vmem:[#allocation5 + $0x30] sm:$0xff] %v5014
      %5031 = vst [vmem:[#allocation5 + $0x38] sm:$0xff] %v5015
      %5032 = vst [vmem:[#allocation5 + $0x40] sm:$0xff] %v5016
      %5033 = vst [vmem:[#allocation5 + $0x48] sm:$0xff] %v5017
      %5034 = vst [vmem:[#allocation5 + $0x50] sm:$0xff] %v5018
      %5035 = vst [vmem:[#allocation5 + $0x58] sm:$0xff] %v5019
      %5036 = vst [vmem:[#allocation5 + $0x60] sm:$0xff] %v5020
      %5037 = vst [vmem:[#allocation5 + $0x68] sm:$0xff] %v5021
      %5038 = vst [vmem:[#allocation5 + $0x70] sm:$0xff] %v5022
      %5039 = vst [vmem:[#allocation5 + $0x78] sm:$0xff] %v5023
      %v5040 = vld [vmem:[#allocation5] sm:$0xff]
      %v5041 = vld [vmem:[#allocation5 + $0x8] sm:$0xff]
      %v5042 = vld [vmem:[#allocation5 + $0x10] sm:$0xff]
      %v5043 = vld [vmem:[#allocation5 + $0x18] sm:$0xff]
      %v5044 = vld [vmem:[#allocation5 + $0x20] sm:$0xff]
      %v5045 = vld [vmem:[#allocation5 + $0x28] sm:$0xff]
      %v5046 = vld [vmem:[#allocation5 + $0x30] sm:$0xff]
      %v5047 = vld [vmem:[#allocation5 + $0x38] sm:$0xff]
      %v5048 = vld [vmem:[#allocation5 + $0x40] sm:$0xff]
      %v5049 = vld [vmem:[#allocation5 + $0x48] sm:$0xff]
      %v5050 = vld [vmem:[#allocation5 + $0x50] sm:$0xff]
      %v5051 = vld [vmem:[#allocation5 + $0x58] sm:$0xff]
      %v5052 = vld [vmem:[#allocation5 + $0x60] sm:$0xff]
      %v5053 = vld [vmem:[#allocation5 + $0x68] sm:$0xff]
      %v5054 = vld [vmem:[#allocation5 + $0x70] sm:$0xff]
      %v5055 = vld [vmem:[#allocation5 + $0x78] sm:$0xff]
      %v5056 = vld [vmem:[%s7] sm:$0x1]
      %v5058 = vlaneseq
      %v5059 = vshrl.u32 %v5058, 7
      %v5060 = vsub.s32 0, %v5059
      %v5061 = vrot.slane %v5056, %v5060
      %v5063 = vmul.f32 %v5040, %v5061
      %v5064 = vmul.f32 %v5041, %v5061
      %v5065 = vmul.f32 %v5042, %v5061
      %v5066 = vmul.f32 %v5043, %v5061
      %v5067 = vmul.f32 %v5044, %v5061
      %v5068 = vmul.f32 %v5045, %v5061
      %v5069 = vmul.f32 %v5046, %v5061
      %v5070 = vmul.f32 %v5047, %v5061
      %v5071 = vmul.f32 %v5048, %v5061
      %v5072 = vmul.f32 %v5049, %v5061
      %v5073 = vmul.f32 %v5050, %v5061
      %v5074 = vmul.f32 %v5051, %v5061
      %v5075 = vmul.f32 %v5052, %v5061
      %v5076 = vmul.f32 %v5053, %v5061
      %v5077 = vmul.f32 %v5054, %v5061
      %v5078 = vmul.f32 %v5055, %v5061
      %v5079 = vld [vmem:[%s8] sm:$0x1]
      %v5081 = vlaneseq
      %v5082 = vshrl.u32 %v5081, 7
      %v5083 = vsub.s32 0, %v5082
      %v5084 = vrot.slane %v5079, %v5083
      %v5086 = vadd.f32 %v5063, %v5084
      %v5087 = vadd.f32 %v5064, %v5084
      %v5088 = vadd.f32 %v5065, %v5084
      %v5089 = vadd.f32 %v5066, %v5084
      %v5090 = vadd.f32 %v5067, %v5084
      %v5091 = vadd.f32 %v5068, %v5084
      %v5092 = vadd.f32 %v5069, %v5084
      %v5093 = vadd.f32 %v5070, %v5084
      %v5094 = vadd.f32 %v5071, %v5084
      %v5095 = vadd.f32 %v5072, %v5084
      %v5096 = vadd.f32 %v5073, %v5084
      %v5097 = vadd.f32 %v5074, %v5084
      %v5098 = vadd.f32 %v5075, %v5084
      %v5099 = vadd.f32 %v5076, %v5084
      %v5100 = vadd.f32 %v5077, %v5084
      %v5101 = vadd.f32 %v5078, %v5084
      %v5102 = vmax.f32 %v5086, 0.0
      %v5103 = vmax.f32 %v5087, 0.0
      %v5104 = vmax.f32 %v5088, 0.0
      %v5105 = vmax.f32 %v5089, 0.0
      %v5106 = vmax.f32 %v5090, 0.0
      %v5107 = vmax.f32 %v5091, 0.0
      %v5108 = vmax.f32 %v5092, 0.0
      %v5109 = vmax.f32 %v5093, 0.0
      %v5110 = vmax.f32 %v5094, 0.0
      %v5111 = vmax.f32 %v5095, 0.0
      %v5112 = vmax.f32 %v5096, 0.0
      %v5113 = vmax.f32 %v5097, 0.0
      %v5114 = vmax.f32 %v5098, 0.0
      %v5115 = vmax.f32 %v5099, 0.0
      %v5116 = vmax.f32 %v5100, 0.0
      %v5117 = vmax.f32 %v5101, 0.0
      %5118 = vst [vmem:[%s495] sm:$0xff] %v5102
      %5119 = vst [vmem:[%s495 + $0x8] sm:$0xff] %v5103
      %5120 = vst [vmem:[%s495 + $0x10] sm:$0xff] %v5104
      %5121 = vst [vmem:[%s495 + $0x18] sm:$0xff] %v5105
      %5122 = vst [vmem:[%s495 + $0x20] sm:$0xff] %v5106
      %5123 = vst [vmem:[%s495 + $0x28] sm:$0xff] %v5107
      %5124 = vst [vmem:[%s495 + $0x30] sm:$0xff] %v5108
      %5125 = vst [vmem:[%s495 + $0x38] sm:$0xff] %v5109
      %5126 = vst [vmem:[%s495 + $0x40] sm:$0xff] %v5110
      %5127 = vst [vmem:[%s495 + $0x48] sm:$0xff] %v5111
      %5128 = vst [vmem:[%s495 + $0x50] sm:$0xff] %v5112
      %5129 = vst [vmem:[%s495 + $0x58] sm:$0xff] %v5113
      %5130 = vst [vmem:[%s495 + $0x60] sm:$0xff] %v5114
      %5131 = vst [vmem:[%s495 + $0x68] sm:$0xff] %v5115
      %5132 = vst [vmem:[%s495 + $0x70] sm:$0xff] %v5116
      %5133 = vst [vmem:[%s495 + $0x78] sm:$0xff] %v5117
      %s5134 = smul.u32 8, %s25
      %p5135 = scmp.lt.s32.totalorder %s24, 1
      %s5136 = scalar_select %p5135, %s24, 1
      %p5137 = scmp.lt.s32.totalorder %s5134, 15
      %s5138 = scalar_select %p5137, %s5134, 15
      %s5139 = smul.addr %s5138, 2
      %s5140 = smul.addr %s5136, 32
      %s5141 = sadd.s32 %s5139, %s5140
      %s5142 = smul.addr %s5141, 8
      %s5143 = scalar_lea.vmem %s9, %s5142
      // Predicated region
      $region73: #{double_conv_forward.1} parent=55 // pred_check
        %p5144 = pneg %p274
      $region74: #{double_conv_forward.1} parent=55 // pred_check_branch
        %5146 = sbr.rel (%p5144) target = $region76
      $region75: #{double_conv_forward.1} parent=55 // pred_region
        %s5147 = smul.u32 8, %s25
      $region76: #{double_conv_forward.1} parent=55 // pred_fallthru
        _
    $region56: #{double_conv_forward.1} parent=5 // pred_fallthru
      _
    %p5148 = scmp.le.s32.totalorder 2, %s15
    // Predicated region
    $region77: #{double_conv_forward.1} parent=5 // pred_check
      %p5149 = pneg %p5148
    $region78: #{double_conv_forward.1} parent=5 // pred_check_branch
      %5151 = sbr.rel (%p5149) target = $region80
    $region79: #{double_conv_forward.1} parent=5 // pred_region
      %s5152 = ssub.s32 %s15, 2
      // Predicated region
      $region81: #{double_conv_forward.1} parent=79 // pred_check
        %p5153 = pneg %p280
      $region82: #{double_conv_forward.1} parent=79 // pred_check_branch
        %5155 = sbr.rel (%p5153) target = $region84
      $region83: #{double_conv_forward.1} parent=79 // pred_region
        %s5156 = smul.u32 8, %s27
        %p5157 = scmp.lt.s32.totalorder %s26, 1
        %s5158 = scalar_select %p5157, %s26, 1
        %p5159 = scmp.lt.s32.totalorder %s5156, 15
        %s5160 = scalar_select %p5159, %s5156, 15
        %s5161 = smul.addr %s5160, 2
        %s5162 = smul.addr %s5158, 32
        %s5163 = sadd.s32 %s5161, %s5162
        %s5164 = smul.addr %s5163, 8
        %s5165 = scalar_lea.vmem %s9, %s5164
      $region84: #{double_conv_forward.1} parent=79 // pred_fallthru
        _
    $region80: #{double_conv_forward.1} parent=5 // pred_fallthru
      _
  $region6: #{double_conv_forward.1} parent=0 // loop_footer
    %s19 = sadd.s32 1, %s15
  $region7: #{double_conv_forward.1} parent=0 // loop_footer_branch
    %14 = sbr.rel target = $region3
  $region8: #{double_conv_forward.1} parent=0 // loop_exit
    _

</llo_original>
